<compile_context>
chip_gen: v7x
topology: tpu7x:2x2x1
jax: 0.10.0
libtpu: 0.0.40
codegen_flags: <defaults>
</compile_context>

<pallas_src>
import functools

import jax
import jax.numpy as jnp
from jax.experimental import pallas as pl
from jax.experimental.pallas import tpu as pltpu

NUM_GROUP = 4
GN_EPS = 1e-3
LANE = 128
# TODO(synk): LrkConv2d (RGP low-rank reparam conv) source is not provided; its forward
#             is semantically a plain Conv2d with the effective (full-rank) weight, so it
#             is implemented here as a standard conv with deterministic weights.


# ----------------------------- Pallas kernels ------------------------------------


def _conv_gn_relu_kernel(p_ref, w_ref, b_ref, g_ref, beta_ref, gm_ref, gmt_ref,
                         o_ref, *, count):
    """One batch sample per grid step: conv (im2col matmul) -> GroupNorm -> ReLU.

    p:(1,M,K) bf16 patches, w:(K,Op) bf16, b/g/beta:(1,Op) f32,
    gm:(Op,G) group one-hot with zero rows for padded channels, gmt:(G,Op).
    """
    y = jnp.dot(p_ref[0], w_ref[...], preferred_element_type=jnp.float32) + b_ref[...]
    # Per-(sample, group) mean: row-sum (sublane reduce) + tiny (Op,G) one-hot matmul.
    cs = jnp.sum(y, axis=0, keepdims=True)                                        # (1, Op)
    mean_g = jnp.dot(cs, gm_ref[...], preferred_element_type=jnp.float32) * (1.0 / count)
    mean_ch = jnp.dot(mean_g, gmt_ref[...], preferred_element_type=jnp.float32)   # (1, Op)
    # Two-pass centered variance (numerically safer than E[y^2] - mean^2).
    d = y - mean_ch
    cs2 = jnp.sum(d * d, axis=0, keepdims=True)                                   # (1, Op)
    var_g = jnp.dot(cs2, gm_ref[...], preferred_element_type=jnp.float32) * (1.0 / count)
    inv_g = jax.lax.rsqrt(var_g + GN_EPS)
    inv_ch = jnp.dot(inv_g, gmt_ref[...], preferred_element_type=jnp.float32)     # (1, Op)
    # Fold GN affine into a single per-channel scale-and-shift, then ReLU.
    scale = inv_ch * g_ref[...]
    shift = beta_ref[...] - mean_ch * scale
    o_ref[0] = jnp.maximum(y * scale + shift, 0.0)


def _maxpool_kernel(x_ref, o_ref):
    # x: (9, R, 128) pooling taps -> elementwise VPU maximum chain (no cross-sublane reduce)
    m = x_ref[0]
    for i in range(1, x_ref.shape[0]):
        m = jnp.maximum(m, x_ref[i])
    o_ref[...] = m


# ----------------------------- JAX glue -------------------------------------------


def _round_up(v, m):
    return -(-v // m) * m


def _im2col_nhwc(x, k, stride, padding):
    """x: (N, H, W, C) -> patches (N, Ho*Wo, k*k*C) with tap-major / channel-minor cols."""
    if padding:
        x = jnp.pad(x, ((0, 0), (padding, padding), (padding, padding), (0, 0)))
    N, H, W, C = x.shape
    Ho = (H - k) // stride + 1
    Wo = (W - k) // stride + 1
    slabs = [x[:, di:di + stride * (Ho - 1) + 1:stride,
                  dj:dj + stride * (Wo - 1) + 1:stride, :]
             for di in range(k) for dj in range(k)]
    p = jnp.stack(slabs, axis=3)                     # (N, Ho, Wo, k*k, C)
    return p.reshape(N, Ho * Wo, k * k * C), Ho, Wo


def basic_conv2d(x_nhwc, params, *, stride=1, padding=0):
    """Conv2d -> GroupNorm(NUM_GROUP, eps=1e-3) -> ReLU.  NHWC in, NHWC out."""
    weight, bias, gamma, beta = params["w"], params["b"], params["gamma"], params["beta"]
    O, C, k, _ = weight.shape
    G = NUM_GROUP
    Cg = O // G
    Op = _round_up(O, LANE)               # lane-dense output channels (unmasked stores)
    Cgp = Op // G                         # pad per group so group structure is preserved

    p, Ho, Wo = _im2col_nhwc(x_nhwc, k, stride, padding)
    N, M, K0 = p.shape
    Kp = _round_up(K0, 16)                # keep bf16 sublane packing of the weight tidy
    if Kp != K0:
        p = jnp.pad(p, ((0, 0), (0, 0), (0, Kp - K0)))

    wm = jnp.transpose(weight, (2, 3, 1, 0)).reshape(K0, O)   # matches im2col column order
    if Kp != K0:
        wm = jnp.pad(wm, ((0, Kp - K0), (0, 0)))
    wm = (jnp.zeros((Kp, G, Cgp), jnp.float32)
            .at[:, :, :Cg].set(wm.reshape(Kp, G, Cg))
            .reshape(Kp, Op))

    def pad_vec(v):
        return (jnp.zeros((G, Cgp), jnp.float32)
                  .at[:, :Cg].set(v.reshape(G, Cg))
                  .reshape(1, Op))

    b_p, g_p, beta_p = pad_vec(bias), pad_vec(gamma), pad_vec(beta)

    grp = jnp.arange(Op) // Cgp
    in_grp = jnp.arange(Op) % Cgp
    gm = ((grp[:, None] == jnp.arange(G)[None, :])
          & (in_grp[:, None] < Cg)).astype(jnp.float32)        # zero rows for pad channels
    gmt = jnp.transpose(gm)

    p_bf = p.astype(jnp.bfloat16)
    wm_bf = wm.astype(jnp.bfloat16)

    out = pl.pallas_call(
        functools.partial(_conv_gn_relu_kernel, count=float(Ho * Wo * Cg)),
        out_shape=jax.ShapeDtypeStruct((N, M, Op), jnp.float32),
        grid=(N,),
        in_specs=[
            pl.BlockSpec((1, M, Kp), lambda n: (n, 0, 0)),
            pl.BlockSpec((Kp, Op), lambda n: (0, 0)),
            pl.BlockSpec((1, Op), lambda n: (0, 0)),
            pl.BlockSpec((1, Op), lambda n: (0, 0)),
            pl.BlockSpec((1, Op), lambda n: (0, 0)),
            pl.BlockSpec((Op, G), lambda n: (0, 0)),
            pl.BlockSpec((G, Op), lambda n: (0, 0)),
        ],
        out_specs=pl.BlockSpec((1, M, Op), lambda n: (n, 0, 0)),
        compiler_params=pltpu.CompilerParams(
            dimension_semantics=("parallel",),          # shards batch across TCs (v7x)
            vmem_limit_bytes=32 * 1024 * 1024),
    )(p_bf, wm_bf, b_p, g_p, beta_p, gm, gmt)

    # Drop padded channels; stay NHWC for the next conv in the chain.
    out = out.reshape(N, M, G, Cgp)[:, :, :, :Cg].reshape(N, Ho, Wo, O)
    return out


def max_pool2d_3x3_s2(x):
    """F.max_pool2d(x, kernel_size=3, stride=2) on NCHW input (returns NCHW)."""
    N, C, H, W = x.shape
    k, s = 3, 2
    Ho = (H - k) // s + 1
    Wo = (W - k) // s + 1
    slabs = [x[:, :, di:di + s * (Ho - 1) + 1:s, dj:dj + s * (Wo - 1) + 1:s].reshape(-1)
             for di in range(k) for dj in range(k)]
    L = N * C * Ho * Wo
    Lp = _round_up(L, 8 * LANE)
    R = Lp // LANE
    neg = jnp.finfo(jnp.float32).min
    stacked = jnp.stack(slabs, axis=0)                                    # (9, L)
    stacked = jnp.pad(stacked, ((0, 0), (0, Lp - L)), constant_values=neg)
    stacked = stacked.reshape(k * k, R, LANE)

    out = pl.pallas_call(
        _maxpool_kernel,
        out_shape=jax.ShapeDtypeStruct((R, LANE), jnp.float32),
        grid=(1,),
        in_specs=[pl.BlockSpec((k * k, R, LANE), lambda i: (0, 0, 0))],
        out_specs=pl.BlockSpec((R, LANE), lambda i: (0, 0)),
    )(stacked)
    return out.reshape(Lp)[:L].reshape(N, C, Ho, Wo)


# ----------------------------- InceptionB -----------------------------------------


def _init_basic_conv_params(key, in_c, out_c, k):
    k1, k2, k3, k4 = jax.random.split(key, 4)
    return dict(
        w=0.1 * jax.random.normal(k1, (out_c, in_c, k, k), jnp.float32),
        b=0.05 * jax.random.normal(k2, (out_c,), jnp.float32),
        gamma=1.0 + 0.1 * jax.random.normal(k3, (out_c,), jnp.float32),
        beta=0.05 * jax.random.normal(k4, (out_c,), jnp.float32),
    )


def init_inception_b_params(key, in_channels):
    k1, k2, k3, k4 = jax.random.split(key, 4)
    return dict(
        branch3x3=_init_basic_conv_params(k1, in_channels, 96, 3),
        branch3x3dbl_1=_init_basic_conv_params(k2, in_channels, 32, 1),
        branch3x3dbl_2=_init_basic_conv_params(k3, 32, 48, 3),
        branch3x3dbl_3=_init_basic_conv_params(k4, 48, 48, 3),
    )


def inception_b_forward(x, params):
    # Convert to channel-last once; chained convs stay NHWC (no per-layer NCHW round trips).
    x_nhwc = jnp.transpose(x, (0, 2, 3, 1))
    branch3x3 = basic_conv2d(x_nhwc, params["branch3x3"], stride=2, padding=0)
    b = basic_conv2d(x_nhwc, params["branch3x3dbl_1"], stride=1, padding=0)
    b = basic_conv2d(b, params["branch3x3dbl_2"], stride=1, padding=1)
    branch3x3dbl = basic_conv2d(b, params["branch3x3dbl_3"], stride=2, padding=0)
    branch_pool = max_pool2d_3x3_s2(x)
    return jnp.concatenate(
        [jnp.transpose(branch3x3, (0, 3, 1, 2)),
         jnp.transpose(branch3x3dbl, (0, 3, 1, 2)),
         branch_pool], axis=1)


if __name__ == "__main__":
    key = jax.random.PRNGKey(0)
    kx, kp = jax.random.split(key)
    N, C, H, W = 2, 4, 16, 16
    x = jax.random.normal(kx, (N, C, H, W), jnp.float32)
    params = init_inception_b_params(kp, C)

    fwd = jax.jit(inception_b_forward)
    out = jax.block_until_ready(fwd(x, params))

    Ho = (H - 3) // 2 + 1
    assert out.shape == (N, 96 + 48 + C, Ho, Ho), out.shape
    assert bool(jnp.all(jnp.isfinite(out)))
    print("KERNEL_OK")
</pallas_src>

<mosaic_0001>
module attributes {stable_mosaic.version = 11 : i64} {
  func.func @_conv_gn_relu_kernel(%arg0: i32, %arg1: memref<1x256x16xbf16, #tpu.memory_space<vmem>>, %arg2: memref<16x128xbf16, #tpu.memory_space<vmem>>, %arg3: memref<1x128xf32, #tpu.memory_space<vmem>>, %arg4: memref<1x128xf32, #tpu.memory_space<vmem>>, %arg5: memref<1x128xf32, #tpu.memory_space<vmem>>, %arg6: memref<128x4xf32, #tpu.memory_space<vmem>>, %arg7: memref<4x128xf32, #tpu.memory_space<vmem>>, %arg8: memref<1x256x128xf32, #tpu.memory_space<vmem>>) attributes {dimension_semantics = [#tpu.dimension_semantics<parallel>], iteration_bounds = array<i64: 2>, scalar_prefetch = 0 : i64, scratch_operands = 0 : i64, tpu.core_type = #tpu.core_type<tc>, window_params = [{transform_indices = @transform_0, window_bounds = array<i64: 1, 256, 16>}, {pipeline_mode = #tpu.pipeline_mode<synchronous>, transform_indices = @transform_1, window_bounds = array<i64: 16, 128>}, {pipeline_mode = #tpu.pipeline_mode<synchronous>, transform_indices = @transform_2, window_bounds = array<i64: 1, 128>}, {pipeline_mode = #tpu.pipeline_mode<synchronous>, transform_indices = @transform_3, window_bounds = array<i64: 1, 128>}, {pipeline_mode = #tpu.pipeline_mode<synchronous>, transform_indices = @transform_4, window_bounds = array<i64: 1, 128>}, {pipeline_mode = #tpu.pipeline_mode<synchronous>, transform_indices = @transform_5, window_bounds = array<i64: 128, 4>}, {pipeline_mode = #tpu.pipeline_mode<synchronous>, transform_indices = @transform_6, window_bounds = array<i64: 4, 128>}, {transform_indices = @transform_7, window_bounds = array<i64: 1, 256, 128>}]} {
    %c0 = arith.constant 0 : index
    %c0_0 = arith.constant 0 : index
    %c0_1 = arith.constant 0 : index
    %0 = vector.load %arg1[%c0, %c0_0, %c0_1] : memref<1x256x16xbf16, #tpu.memory_space<vmem>>, vector<1x256x16xbf16>
    %1 = vector.shape_cast %0 : vector<1x256x16xbf16> to vector<256x16xbf16>
    %c0_2 = arith.constant 0 : index
    %c0_3 = arith.constant 0 : index
    %2 = vector.load %arg2[%c0_2, %c0_3] : memref<16x128xbf16, #tpu.memory_space<vmem>>, vector<16x128xbf16>
    %cst = arith.constant dense<0.000000e+00> : vector<256x128xf32>
    %3 = tpu.matmul %1, %2, %cst {dimension_numbers = #tpu.dot_dimension_numbers<[1], [0], [0], [1], [0, 0, 1, 1], [], []>} : vector<256x16xbf16>, vector<16x128xbf16>, vector<256x128xf32> -> vector<256x128xf32>
    %c0_4 = arith.constant 0 : index
    %c0_5 = arith.constant 0 : index
    %4 = vector.load %arg3[%c0_4, %c0_5] : memref<1x128xf32, #tpu.memory_space<vmem>>, vector<1x128xf32>
    %5 = vector.broadcast %4 : vector<1x128xf32> to vector<256x128xf32>
    %6 = arith.addf %3, %5 : vector<256x128xf32>
    %cst_6 = arith.constant dense<0.000000e+00> : vector<128xf32>
    %7 = vector.multi_reduction <add>, %6, %cst_6 [0] : vector<256x128xf32> to vector<128xf32>
    %8 = vector.shape_cast %7 : vector<128xf32> to vector<1x128xf32>
    %c0_7 = arith.constant 0 : index
    %c0_8 = arith.constant 0 : index
    %9 = vector.load %arg6[%c0_7, %c0_8] : memref<128x4xf32, #tpu.memory_space<vmem>>, vector<128x4xf32>
    %cst_9 = arith.constant dense<0.000000e+00> : vector<1x4xf32>
    %10 = tpu.matmul %8, %9, %cst_9 {dimension_numbers = #tpu.dot_dimension_numbers<[1], [0], [0], [1], [0, 0, 1, 1], [], []>} : vector<1x128xf32>, vector<128x4xf32>, vector<1x4xf32> -> vector<1x4xf32>
    %cst_10 = arith.constant 4.8828125E-4 : f32
    %11 = vector.broadcast %cst_10 : f32 to vector<1x4xf32>
    %12 = arith.mulf %10, %11 : vector<1x4xf32>
    %c0_11 = arith.constant 0 : index
    %c0_12 = arith.constant 0 : index
    %13 = vector.load %arg7[%c0_11, %c0_12] : memref<4x128xf32, #tpu.memory_space<vmem>>, vector<4x128xf32>
    %cst_13 = arith.constant dense<0.000000e+00> : vector<1x128xf32>
    %14 = tpu.matmul %12, %13, %cst_13 {dimension_numbers = #tpu.dot_dimension_numbers<[1], [0], [0], [1], [0, 0, 1, 1], [], []>} : vector<1x4xf32>, vector<4x128xf32>, vector<1x128xf32> -> vector<1x128xf32>
    %15 = vector.broadcast %14 : vector<1x128xf32> to vector<256x128xf32>
    %16 = arith.subf %6, %15 : vector<256x128xf32>
    %17 = arith.mulf %16, %16 : vector<256x128xf32>
    %cst_14 = arith.constant dense<0.000000e+00> : vector<128xf32>
    %18 = vector.multi_reduction <add>, %17, %cst_14 [0] : vector<256x128xf32> to vector<128xf32>
    %19 = vector.shape_cast %18 : vector<128xf32> to vector<1x128xf32>
    %c0_15 = arith.constant 0 : index
    %c0_16 = arith.constant 0 : index
    %20 = vector.load %arg6[%c0_15, %c0_16] : memref<128x4xf32, #tpu.memory_space<vmem>>, vector<128x4xf32>
    %cst_17 = arith.constant dense<0.000000e+00> : vector<1x4xf32>
    %21 = tpu.matmul %19, %20, %cst_17 {dimension_numbers = #tpu.dot_dimension_numbers<[1], [0], [0], [1], [0, 0, 1, 1], [], []>} : vector<1x128xf32>, vector<128x4xf32>, vector<1x4xf32> -> vector<1x4xf32>
    %cst_18 = arith.constant 4.8828125E-4 : f32
    %22 = vector.broadcast %cst_18 : f32 to vector<1x4xf32>
    %23 = arith.mulf %21, %22 : vector<1x4xf32>
    %cst_19 = arith.constant 1.000000e-03 : f32
    %24 = vector.broadcast %cst_19 : f32 to vector<1x4xf32>
    %25 = arith.addf %23, %24 : vector<1x4xf32>
    %26 = math.rsqrt %25 : vector<1x4xf32>
    %c0_20 = arith.constant 0 : index
    %c0_21 = arith.constant 0 : index
    %27 = vector.load %arg7[%c0_20, %c0_21] : memref<4x128xf32, #tpu.memory_space<vmem>>, vector<4x128xf32>
    %cst_22 = arith.constant dense<0.000000e+00> : vector<1x128xf32>
    %28 = tpu.matmul %26, %27, %cst_22 {dimension_numbers = #tpu.dot_dimension_numbers<[1], [0], [0], [1], [0, 0, 1, 1], [], []>} : vector<1x4xf32>, vector<4x128xf32>, vector<1x128xf32> -> vector<1x128xf32>
    %c0_23 = arith.constant 0 : index
    %c0_24 = arith.constant 0 : index
    %29 = vector.load %arg4[%c0_23, %c0_24] : memref<1x128xf32, #tpu.memory_space<vmem>>, vector<1x128xf32>
    %30 = arith.mulf %28, %29 : vector<1x128xf32>
    %c0_25 = arith.constant 0 : index
    %c0_26 = arith.constant 0 : index
    %31 = vector.load %arg5[%c0_25, %c0_26] : memref<1x128xf32, #tpu.memory_space<vmem>>, vector<1x128xf32>
    %32 = arith.mulf %14, %30 : vector<1x128xf32>
    %33 = arith.subf %31, %32 : vector<1x128xf32>
    %34 = vector.broadcast %30 : vector<1x128xf32> to vector<256x128xf32>
    %35 = arith.mulf %6, %34 : vector<256x128xf32>
    %36 = vector.broadcast %33 : vector<1x128xf32> to vector<256x128xf32>
    %37 = arith.addf %35, %36 : vector<256x128xf32>
    %cst_27 = arith.constant 0.000000e+00 : f32
    %38 = vector.broadcast %cst_27 : f32 to vector<256x128xf32>
    %39 = arith.maximumf %37, %38 : vector<256x128xf32>
    %c0_28 = arith.constant 0 : index
    %c0_29 = arith.constant 0 : index
    %c0_30 = arith.constant 0 : index
    %40 = vector.load %arg8[%c0_28, %c0_29, %c0_30] : memref<1x256x128xf32, #tpu.memory_space<vmem>>, vector<1x256x128xf32>
    %41 = vector.shape_cast %40 : vector<1x256x128xf32> to vector<256x128xf32>
    %42 = vector.shape_cast %39 : vector<256x128xf32> to vector<1x256x128xf32>
    tpu.vector_store %arg8[%c0_28, %c0_29, %c0_30], %42 {strides = array<i32>} : memref<1x256x128xf32, #tpu.memory_space<vmem>>, vector<1x256x128xf32>,
    return
  }
  func.func @transform_0(%arg0: i32) -> (i32, i32, i32) {
    %c0_i32 = arith.constant 0 : i32
    %c0_i32_0 = arith.constant 0 : i32
    %c0_i32_1 = arith.constant 0 : i32
    return %arg0, %c0_i32, %c0_i32_0 : i32, i32, i32
  }
  func.func @transform_1(%arg0: i32) -> (i32, i32) {
    %c0_i32 = arith.constant 0 : i32
    %c0_i32_0 = arith.constant 0 : i32
    %c0_i32_1 = arith.constant 0 : i32
    return %c0_i32, %c0_i32_0 : i32, i32
  }
  func.func @transform_2(%arg0: i32) -> (i32, i32) {
    %c0_i32 = arith.constant 0 : i32
    %c0_i32_0 = arith.constant 0 : i32
    %c0_i32_1 = arith.constant 0 : i32
    return %c0_i32, %c0_i32_0 : i32, i32
  }
  func.func @transform_3(%arg0: i32) -> (i32, i32) {
    %c0_i32 = arith.constant 0 : i32
    %c0_i32_0 = arith.constant 0 : i32
    %c0_i32_1 = arith.constant 0 : i32
    return %c0_i32, %c0_i32_0 : i32, i32
  }
  func.func @transform_4(%arg0: i32) -> (i32, i32) {
    %c0_i32 = arith.constant 0 : i32
    %c0_i32_0 = arith.constant 0 : i32
    %c0_i32_1 = arith.constant 0 : i32
    return %c0_i32, %c0_i32_0 : i32, i32
  }
  func.func @transform_5(%arg0: i32) -> (i32, i32) {
    %c0_i32 = arith.constant 0 : i32
    %c0_i32_0 = arith.constant 0 : i32
    %c0_i32_1 = arith.constant 0 : i32
    return %c0_i32, %c0_i32_0 : i32, i32
  }
  func.func @transform_6(%arg0: i32) -> (i32, i32) {
    %c0_i32 = arith.constant 0 : i32
    %c0_i32_0 = arith.constant 0 : i32
    %c0_i32_1 = arith.constant 0 : i32
    return %c0_i32, %c0_i32_0 : i32, i32
  }
  func.func @transform_7(%arg0: i32) -> (i32, i32, i32) {
    %c0_i32 = arith.constant 0 : i32
    %c0_i32_0 = arith.constant 0 : i32
    %c0_i32_1 = arith.constant 0 : i32
    return %arg0, %c0_i32, %c0_i32_0 : i32, i32, i32
  }
}

module attributes {stable_mosaic.version = 11 : i64} {
  func.func @_conv_gn_relu_kernel(%arg0: i32, %arg1: memref<1x256x288xbf16, #tpu.memory_space<vmem>>, %arg2: memref<288x128xbf16, #tpu.memory_space<vmem>>, %arg3: memref<1x128xf32, #tpu.memory_space<vmem>>, %arg4: memref<1x128xf32, #tpu.memory_space<vmem>>, %arg5: memref<1x128xf32, #tpu.memory_space<vmem>>, %arg6: memref<128x4xf32, #tpu.memory_space<vmem>>, %arg7: memref<4x128xf32, #tpu.memory_space<vmem>>, %arg8: memref<1x256x128xf32, #tpu.memory_space<vmem>>) attributes {dimension_semantics = [#tpu.dimension_semantics<parallel>], iteration_bounds = array<i64: 2>, scalar_prefetch = 0 : i64, scratch_operands = 0 : i64, tpu.core_type = #tpu.core_type<tc>, window_params = [{transform_indices = @transform_0, window_bounds = array<i64: 1, 256, 288>}, {pipeline_mode = #tpu.pipeline_mode<synchronous>, transform_indices = @transform_1, window_bounds = array<i64: 288, 128>}, {pipeline_mode = #tpu.pipeline_mode<synchronous>, transform_indices = @transform_2, window_bounds = array<i64: 1, 128>}, {pipeline_mode = #tpu.pipeline_mode<synchronous>, transform_indices = @transform_3, window_bounds = array<i64: 1, 128>}, {pipeline_mode = #tpu.pipeline_mode<synchronous>, transform_indices = @transform_4, window_bounds = array<i64: 1, 128>}, {pipeline_mode = #tpu.pipeline_mode<synchronous>, transform_indices = @transform_5, window_bounds = array<i64: 128, 4>}, {pipeline_mode = #tpu.pipeline_mode<synchronous>, transform_indices = @transform_6, window_bounds = array<i64: 4, 128>}, {transform_indices = @transform_7, window_bounds = array<i64: 1, 256, 128>}]} {
    %c0 = arith.constant 0 : index
    %c0_0 = arith.constant 0 : index
    %c0_1 = arith.constant 0 : index
    %0 = vector.load %arg1[%c0, %c0_0, %c0_1] : memref<1x256x288xbf16, #tpu.memory_space<vmem>>, vector<1x256x288xbf16>
    %1 = vector.shape_cast %0 : vector<1x256x288xbf16> to vector<256x288xbf16>
    %c0_2 = arith.constant 0 : index
    %c0_3 = arith.constant 0 : index
    %2 = vector.load %arg2[%c0_2, %c0_3] : memref<288x128xbf16, #tpu.memory_space<vmem>>, vector<288x128xbf16>
    %cst = arith.constant dense<0.000000e+00> : vector<256x128xf32>
    %3 = tpu.matmul %1, %2, %cst {dimension_numbers = #tpu.dot_dimension_numbers<[1], [0], [0], [1], [0, 0, 1, 1], [], []>} : vector<256x288xbf16>, vector<288x128xbf16>, vector<256x128xf32> -> vector<256x128xf32>
    %c0_4 = arith.constant 0 : index
    %c0_5 = arith.constant 0 : index
    %4 = vector.load %arg3[%c0_4, %c0_5] : memref<1x128xf32, #tpu.memory_space<vmem>>, vector<1x128xf32>
    %5 = vector.broadcast %4 : vector<1x128xf32> to vector<256x128xf32>
    %6 = arith.addf %3, %5 : vector<256x128xf32>
    %cst_6 = arith.constant dense<0.000000e+00> : vector<128xf32>
    %7 = vector.multi_reduction <add>, %6, %cst_6 [0] : vector<256x128xf32> to vector<128xf32>
    %8 = vector.shape_cast %7 : vector<128xf32> to vector<1x128xf32>
    %c0_7 = arith.constant 0 : index
    %c0_8 = arith.constant 0 : index
    %9 = vector.load %arg6[%c0_7, %c0_8] : memref<128x4xf32, #tpu.memory_space<vmem>>, vector<128x4xf32>
    %cst_9 = arith.constant dense<0.000000e+00> : vector<1x4xf32>
    %10 = tpu.matmul %8, %9, %cst_9 {dimension_numbers = #tpu.dot_dimension_numbers<[1], [0], [0], [1], [0, 0, 1, 1], [], []>} : vector<1x128xf32>, vector<128x4xf32>, vector<1x4xf32> -> vector<1x4xf32>
    %cst_10 = arith.constant 3.25520843E-4 : f32
    %11 = vector.broadcast %cst_10 : f32 to vector<1x4xf32>
    %12 = arith.mulf %10, %11 : vector<1x4xf32>
    %c0_11 = arith.constant 0 : index
    %c0_12 = arith.constant 0 : index
    %13 = vector.load %arg7[%c0_11, %c0_12] : memref<4x128xf32, #tpu.memory_space<vmem>>, vector<4x128xf32>
    %cst_13 = arith.constant dense<0.000000e+00> : vector<1x128xf32>
    %14 = tpu.matmul %12, %13, %cst_13 {dimension_numbers = #tpu.dot_dimension_numbers<[1], [0], [0], [1], [0, 0, 1, 1], [], []>} : vector<1x4xf32>, vector<4x128xf32>, vector<1x128xf32> -> vector<1x128xf32>
    %15 = vector.broadcast %14 : vector<1x128xf32> to vector<256x128xf32>
    %16 = arith.subf %6, %15 : vector<256x128xf32>
    %17 = arith.mulf %16, %16 : vector<256x128xf32>
    %cst_14 = arith.constant dense<0.000000e+00> : vector<128xf32>
    %18 = vector.multi_reduction <add>, %17, %cst_14 [0] : vector<256x128xf32> to vector<128xf32>
    %19 = vector.shape_cast %18 : vector<128xf32> to vector<1x128xf32>
    %c0_15 = arith.constant 0 : index
    %c0_16 = arith.constant 0 : index
    %20 = vector.load %arg6[%c0_15, %c0_16] : memref<128x4xf32, #tpu.memory_space<vmem>>, vector<128x4xf32>
    %cst_17 = arith.constant dense<0.000000e+00> : vector<1x4xf32>
    %21 = tpu.matmul %19, %20, %cst_17 {dimension_numbers = #tpu.dot_dimension_numbers<[1], [0], [0], [1], [0, 0, 1, 1], [], []>} : vector<1x128xf32>, vector<128x4xf32>, vector<1x4xf32> -> vector<1x4xf32>
    %cst_18 = arith.constant 3.25520843E-4 : f32
    %22 = vector.broadcast %cst_18 : f32 to vector<1x4xf32>
    %23 = arith.mulf %21, %22 : vector<1x4xf32>
    %cst_19 = arith.constant 1.000000e-03 : f32
    %24 = vector.broadcast %cst_19 : f32 to vector<1x4xf32>
    %25 = arith.addf %23, %24 : vector<1x4xf32>
    %26 = math.rsqrt %25 : vector<1x4xf32>
    %c0_20 = arith.constant 0 : index
    %c0_21 = arith.constant 0 : index
    %27 = vector.load %arg7[%c0_20, %c0_21] : memref<4x128xf32, #tpu.memory_space<vmem>>, vector<4x128xf32>
    %cst_22 = arith.constant dense<0.000000e+00> : vector<1x128xf32>
    %28 = tpu.matmul %26, %27, %cst_22 {dimension_numbers = #tpu.dot_dimension_numbers<[1], [0], [0], [1], [0, 0, 1, 1], [], []>} : vector<1x4xf32>, vector<4x128xf32>, vector<1x128xf32> -> vector<1x128xf32>
    %c0_23 = arith.constant 0 : index
    %c0_24 = arith.constant 0 : index
    %29 = vector.load %arg4[%c0_23, %c0_24] : memref<1x128xf32, #tpu.memory_space<vmem>>, vector<1x128xf32>
    %30 = arith.mulf %28, %29 : vector<1x128xf32>
    %c0_25 = arith.constant 0 : index
    %c0_26 = arith.constant 0 : index
    %31 = vector.load %arg5[%c0_25, %c0_26] : memref<1x128xf32, #tpu.memory_space<vmem>>, vector<1x128xf32>
    %32 = arith.mulf %14, %30 : vector<1x128xf32>
    %33 = arith.subf %31, %32 : vector<1x128xf32>
    %34 = vector.broadcast %30 : vector<1x128xf32> to vector<256x128xf32>
    %35 = arith.mulf %6, %34 : vector<256x128xf32>
    %36 = vector.broadcast %33 : vector<1x128xf32> to vector<256x128xf32>
    %37 = arith.addf %35, %36 : vector<256x128xf32>
    %cst_27 = arith.constant 0.000000e+00 : f32
    %38 = vector.broadcast %cst_27 : f32 to vector<256x128xf32>
    %39 = arith.maximumf %37, %38 : vector<256x128xf32>
    %c0_28 = arith.constant 0 : index
    %c0_29 = arith.constant 0 : index
    %c0_30 = arith.constant 0 : index
    %40 = vector.load %arg8[%c0_28, %c0_29, %c0_30] : memref<1x256x128xf32, #tpu.memory_space<vmem>>, vector<1x256x128xf32>
    %41 = vector.shape_cast %40 : vector<1x256x128xf32> to vector<256x128xf32>
    %42 = vector.shape_cast %39 : vector<256x128xf32> to vector<1x256x128xf32>
    tpu.vector_store %arg8[%c0_28, %c0_29, %c0_30], %42 {strides = array<i32>} : memref<1x256x128xf32, #tpu.memory_space<vmem>>, vector<1x256x128xf32>,
    return
  }
  func.func @transform_0(%arg0: i32) -> (i32, i32, i32) {
    %c0_i32 = arith.constant 0 : i32
    %c0_i32_0 = arith.constant 0 : i32
    %c0_i32_1 = arith.constant 0 : i32
    return %arg0, %c0_i32, %c0_i32_0 : i32, i32, i32
  }
  func.func @transform_1(%arg0: i32) -> (i32, i32) {
    %c0_i32 = arith.constant 0 : i32
    %c0_i32_0 = arith.constant 0 : i32
    %c0_i32_1 = arith.constant 0 : i32
    return %c0_i32, %c0_i32_0 : i32, i32
  }
  func.func @transform_2(%arg0: i32) -> (i32, i32) {
    %c0_i32 = arith.constant 0 : i32
    %c0_i32_0 = arith.constant 0 : i32
    %c0_i32_1 = arith.constant 0 : i32
    return %c0_i32, %c0_i32_0 : i32, i32
  }
  func.func @transform_3(%arg0: i32) -> (i32, i32) {
    %c0_i32 = arith.constant 0 : i32
    %c0_i32_0 = arith.constant 0 : i32
    %c0_i32_1 = arith.constant 0 : i32
    return %c0_i32, %c0_i32_0 : i32, i32
  }
  func.func @transform_4(%arg0: i32) -> (i32, i32) {
    %c0_i32 = arith.constant 0 : i32
    %c0_i32_0 = arith.constant 0 : i32
    %c0_i32_1 = arith.constant 0 : i32
    return %c0_i32, %c0_i32_0 : i32, i32
  }
  func.func @transform_5(%arg0: i32) -> (i32, i32) {
    %c0_i32 = arith.constant 0 : i32
    %c0_i32_0 = arith.constant 0 : i32
    %c0_i32_1 = arith.constant 0 : i32
    return %c0_i32, %c0_i32_0 : i32, i32
  }
  func.func @transform_6(%arg0: i32) -> (i32, i32) {
    %c0_i32 = arith.constant 0 : i32
    %c0_i32_0 = arith.constant 0 : i32
    %c0_i32_1 = arith.constant 0 : i32
    return %c0_i32, %c0_i32_0 : i32, i32
  }
  func.func @transform_7(%arg0: i32) -> (i32, i32, i32) {
    %c0_i32 = arith.constant 0 : i32
    %c0_i32_0 = arith.constant 0 : i32
    %c0_i32_1 = arith.constant 0 : i32
    return %arg0, %c0_i32, %c0_i32_0 : i32, i32, i32
  }
}

module attributes {stable_mosaic.version = 11 : i64} {
  func.func @_conv_gn_relu_kernel(%arg0: i32, %arg1: memref<1x49x432xbf16, #tpu.memory_space<vmem>>, %arg2: memref<432x128xbf16, #tpu.memory_space<vmem>>, %arg3: memref<1x128xf32, #tpu.memory_space<vmem>>, %arg4: memref<1x128xf32, #tpu.memory_space<vmem>>, %arg5: memref<1x128xf32, #tpu.memory_space<vmem>>, %arg6: memref<128x4xf32, #tpu.memory_space<vmem>>, %arg7: memref<4x128xf32, #tpu.memory_space<vmem>>, %arg8: memref<1x49x128xf32, #tpu.memory_space<vmem>>) attributes {dimension_semantics = [#tpu.dimension_semantics<parallel>], iteration_bounds = array<i64: 2>, scalar_prefetch = 0 : i64, scratch_operands = 0 : i64, tpu.core_type = #tpu.core_type<tc>, window_params = [{transform_indices = @transform_0, window_bounds = array<i64: 1, 49, 432>}, {pipeline_mode = #tpu.pipeline_mode<synchronous>, transform_indices = @transform_1, window_bounds = array<i64: 432, 128>}, {pipeline_mode = #tpu.pipeline_mode<synchronous>, transform_indices = @transform_2, window_bounds = array<i64: 1, 128>}, {pipeline_mode = #tpu.pipeline_mode<synchronous>, transform_indices = @transform_3, window_bounds = array<i64: 1, 128>}, {pipeline_mode = #tpu.pipeline_mode<synchronous>, transform_indices = @transform_4, window_bounds = array<i64: 1, 128>}, {pipeline_mode = #tpu.pipeline_mode<synchronous>, transform_indices = @transform_5, window_bounds = array<i64: 128, 4>}, {pipeline_mode = #tpu.pipeline_mode<synchronous>, transform_indices = @transform_6, window_bounds = array<i64: 4, 128>}, {transform_indices = @transform_7, window_bounds = array<i64: 1, 49, 128>}]} {
    %c0 = arith.constant 0 : index
    %c0_0 = arith.constant 0 : index
    %c0_1 = arith.constant 0 : index
    %0 = vector.load %arg1[%c0, %c0_0, %c0_1] : memref<1x49x432xbf16, #tpu.memory_space<vmem>>, vector<1x49x432xbf16>
    %1 = vector.shape_cast %0 : vector<1x49x432xbf16> to vector<49x432xbf16>
    %c0_2 = arith.constant 0 : index
    %c0_3 = arith.constant 0 : index
    %2 = vector.load %arg2[%c0_2, %c0_3] : memref<432x128xbf16, #tpu.memory_space<vmem>>, vector<432x128xbf16>
    %cst = arith.constant dense<0.000000e+00> : vector<49x128xf32>
    %3 = tpu.matmul %1, %2, %cst {dimension_numbers = #tpu.dot_dimension_numbers<[1], [0], [0], [1], [0, 0, 1, 1], [], []>} : vector<49x432xbf16>, vector<432x128xbf16>, vector<49x128xf32> -> vector<49x128xf32>
    %c0_4 = arith.constant 0 : index
    %c0_5 = arith.constant 0 : index
    %4 = vector.load %arg3[%c0_4, %c0_5] : memref<1x128xf32, #tpu.memory_space<vmem>>, vector<1x128xf32>
    %5 = vector.broadcast %4 : vector<1x128xf32> to vector<49x128xf32>
    %6 = arith.addf %3, %5 : vector<49x128xf32>
    %cst_6 = arith.constant dense<0.000000e+00> : vector<128xf32>
    %7 = vector.multi_reduction <add>, %6, %cst_6 [0] : vector<49x128xf32> to vector<128xf32>
    %8 = vector.shape_cast %7 : vector<128xf32> to vector<1x128xf32>
    %c0_7 = arith.constant 0 : index
    %c0_8 = arith.constant 0 : index
    %9 = vector.load %arg6[%c0_7, %c0_8] : memref<128x4xf32, #tpu.memory_space<vmem>>, vector<128x4xf32>
    %cst_9 = arith.constant dense<0.000000e+00> : vector<1x4xf32>
    %10 = tpu.matmul %8, %9, %cst_9 {dimension_numbers = #tpu.dot_dimension_numbers<[1], [0], [0], [1], [0, 0, 1, 1], [], []>} : vector<1x128xf32>, vector<128x4xf32>, vector<1x4xf32> -> vector<1x4xf32>
    %cst_10 = arith.constant 0.00170068024 : f32
    %11 = vector.broadcast %cst_10 : f32 to vector<1x4xf32>
    %12 = arith.mulf %10, %11 : vector<1x4xf32>
    %c0_11 = arith.constant 0 : index
    %c0_12 = arith.constant 0 : index
    %13 = vector.load %arg7[%c0_11, %c0_12] : memref<4x128xf32, #tpu.memory_space<vmem>>, vector<4x128xf32>
    %cst_13 = arith.constant dense<0.000000e+00> : vector<1x128xf32>
    %14 = tpu.matmul %12, %13, %cst_13 {dimension_numbers = #tpu.dot_dimension_numbers<[1], [0], [0], [1], [0, 0, 1, 1], [], []>} : vector<1x4xf32>, vector<4x128xf32>, vector<1x128xf32> -> vector<1x128xf32>
    %15 = vector.broadcast %14 : vector<1x128xf32> to vector<49x128xf32>
    %16 = arith.subf %6, %15 : vector<49x128xf32>
    %17 = arith.mulf %16, %16 : vector<49x128xf32>
    %cst_14 = arith.constant dense<0.000000e+00> : vector<128xf32>
    %18 = vector.multi_reduction <add>, %17, %cst_14 [0] : vector<49x128xf32> to vector<128xf32>
    %19 = vector.shape_cast %18 : vector<128xf32> to vector<1x128xf32>
    %c0_15 = arith.constant 0 : index
    %c0_16 = arith.constant 0 : index
    %20 = vector.load %arg6[%c0_15, %c0_16] : memref<128x4xf32, #tpu.memory_space<vmem>>, vector<128x4xf32>
    %cst_17 = arith.constant dense<0.000000e+00> : vector<1x4xf32>
    %21 = tpu.matmul %19, %20, %cst_17 {dimension_numbers = #tpu.dot_dimension_numbers<[1], [0], [0], [1], [0, 0, 1, 1], [], []>} : vector<1x128xf32>, vector<128x4xf32>, vector<1x4xf32> -> vector<1x4xf32>
    %cst_18 = arith.constant 0.00170068024 : f32
    %22 = vector.broadcast %cst_18 : f32 to vector<1x4xf32>
    %23 = arith.mulf %21, %22 : vector<1x4xf32>
    %cst_19 = arith.constant 1.000000e-03 : f32
    %24 = vector.broadcast %cst_19 : f32 to vector<1x4xf32>
    %25 = arith.addf %23, %24 : vector<1x4xf32>
    %26 = math.rsqrt %25 : vector<1x4xf32>
    %c0_20 = arith.constant 0 : index
    %c0_21 = arith.constant 0 : index
    %27 = vector.load %arg7[%c0_20, %c0_21] : memref<4x128xf32, #tpu.memory_space<vmem>>, vector<4x128xf32>
    %cst_22 = arith.constant dense<0.000000e+00> : vector<1x128xf32>
    %28 = tpu.matmul %26, %27, %cst_22 {dimension_numbers = #tpu.dot_dimension_numbers<[1], [0], [0], [1], [0, 0, 1, 1], [], []>} : vector<1x4xf32>, vector<4x128xf32>, vector<1x128xf32> -> vector<1x128xf32>
    %c0_23 = arith.constant 0 : index
    %c0_24 = arith.constant 0 : index
    %29 = vector.load %arg4[%c0_23, %c0_24] : memref<1x128xf32, #tpu.memory_space<vmem>>, vector<1x128xf32>
    %30 = arith.mulf %28, %29 : vector<1x128xf32>
    %c0_25 = arith.constant 0 : index
    %c0_26 = arith.constant 0 : index
    %31 = vector.load %arg5[%c0_25, %c0_26] : memref<1x128xf32, #tpu.memory_space<vmem>>, vector<1x128xf32>
    %32 = arith.mulf %14, %30 : vector<1x128xf32>
    %33 = arith.subf %31, %32 : vector<1x128xf32>
    %34 = vector.broadcast %30 : vector<1x128xf32> to vector<49x128xf32>
    %35 = arith.mulf %6, %34 : vector<49x128xf32>
    %36 = vector.broadcast %33 : vector<1x128xf32> to vector<49x128xf32>
    %37 = arith.addf %35, %36 : vector<49x128xf32>
    %cst_27 = arith.constant 0.000000e+00 : f32
    %38 = vector.broadcast %cst_27 : f32 to vector<49x128xf32>
    %39 = arith.maximumf %37, %38 : vector<49x128xf32>
    %c0_28 = arith.constant 0 : index
    %c0_29 = arith.constant 0 : index
    %c0_30 = arith.constant 0 : index
    %40 = vector.load %arg8[%c0_28, %c0_29, %c0_30] : memref<1x49x128xf32, #tpu.memory_space<vmem>>, vector<1x49x128xf32>
    %41 = vector.shape_cast %40 : vector<1x49x128xf32> to vector<49x128xf32>
    %42 = vector.shape_cast %39 : vector<49x128xf32> to vector<1x49x128xf32>
    tpu.vector_store %arg8[%c0_28, %c0_29, %c0_30], %42 {strides = array<i32>} : memref<1x49x128xf32, #tpu.memory_space<vmem>>, vector<1x49x128xf32>,
    return
  }
  func.func @transform_0(%arg0: i32) -> (i32, i32, i32) {
    %c0_i32 = arith.constant 0 : i32
    %c0_i32_0 = arith.constant 0 : i32
    %c0_i32_1 = arith.constant 0 : i32
    return %arg0, %c0_i32, %c0_i32_0 : i32, i32, i32
  }
  func.func @transform_1(%arg0: i32) -> (i32, i32) {
    %c0_i32 = arith.constant 0 : i32
    %c0_i32_0 = arith.constant 0 : i32
    %c0_i32_1 = arith.constant 0 : i32
    return %c0_i32, %c0_i32_0 : i32, i32
  }
  func.func @transform_2(%arg0: i32) -> (i32, i32) {
    %c0_i32 = arith.constant 0 : i32
    %c0_i32_0 = arith.constant 0 : i32
    %c0_i32_1 = arith.constant 0 : i32
    return %c0_i32, %c0_i32_0 : i32, i32
  }
  func.func @transform_3(%arg0: i32) -> (i32, i32) {
    %c0_i32 = arith.constant 0 : i32
    %c0_i32_0 = arith.constant 0 : i32
    %c0_i32_1 = arith.constant 0 : i32
    return %c0_i32, %c0_i32_0 : i32, i32
  }
  func.func @transform_4(%arg0: i32) -> (i32, i32) {
    %c0_i32 = arith.constant 0 : i32
    %c0_i32_0 = arith.constant 0 : i32
    %c0_i32_1 = arith.constant 0 : i32
    return %c0_i32, %c0_i32_0 : i32, i32
  }
  func.func @transform_5(%arg0: i32) -> (i32, i32) {
    %c0_i32 = arith.constant 0 : i32
    %c0_i32_0 = arith.constant 0 : i32
    %c0_i32_1 = arith.constant 0 : i32
    return %c0_i32, %c0_i32_0 : i32, i32
  }
  func.func @transform_6(%arg0: i32) -> (i32, i32) {
    %c0_i32 = arith.constant 0 : i32
    %c0_i32_0 = arith.constant 0 : i32
    %c0_i32_1 = arith.constant 0 : i32
    return %c0_i32, %c0_i32_0 : i32, i32
  }
  func.func @transform_7(%arg0: i32) -> (i32, i32, i32) {
    %c0_i32 = arith.constant 0 : i32
    %c0_i32_0 = arith.constant 0 : i32
    %c0_i32_1 = arith.constant 0 : i32
    return %arg0, %c0_i32, %c0_i32_0 : i32, i32, i32
  }
}

module attributes {stable_mosaic.version = 11 : i64} {
  func.func @_conv_gn_relu_kernel(%arg0: i32, %arg1: memref<1x49x48xbf16, #tpu.memory_space<vmem>>, %arg2: memref<48x128xbf16, #tpu.memory_space<vmem>>, %arg3: memref<1x128xf32, #tpu.memory_space<vmem>>, %arg4: memref<1x128xf32, #tpu.memory_space<vmem>>, %arg5: memref<1x128xf32, #tpu.memory_space<vmem>>, %arg6: memref<128x4xf32, #tpu.memory_space<vmem>>, %arg7: memref<4x128xf32, #tpu.memory_space<vmem>>, %arg8: memref<1x49x128xf32, #tpu.memory_space<vmem>>) attributes {dimension_semantics = [#tpu.dimension_semantics<parallel>], iteration_bounds = array<i64: 2>, scalar_prefetch = 0 : i64, scratch_operands = 0 : i64, tpu.core_type = #tpu.core_type<tc>, window_params = [{transform_indices = @transform_0, window_bounds = array<i64: 1, 49, 48>}, {pipeline_mode = #tpu.pipeline_mode<synchronous>, transform_indices = @transform_1, window_bounds = array<i64: 48, 128>}, {pipeline_mode = #tpu.pipeline_mode<synchronous>, transform_indices = @transform_2, window_bounds = array<i64: 1, 128>}, {pipeline_mode = #tpu.pipeline_mode<synchronous>, transform_indices = @transform_3, window_bounds = array<i64: 1, 128>}, {pipeline_mode = #tpu.pipeline_mode<synchronous>, transform_indices = @transform_4, window_bounds = array<i64: 1, 128>}, {pipeline_mode = #tpu.pipeline_mode<synchronous>, transform_indices = @transform_5, window_bounds = array<i64: 128, 4>}, {pipeline_mode = #tpu.pipeline_mode<synchronous>, transform_indices = @transform_6, window_bounds = array<i64: 4, 128>}, {transform_indices = @transform_7, window_bounds = array<i64: 1, 49, 128>}]} {
    %c0 = arith.constant 0 : index
    %c0_0 = arith.constant 0 : index
    %c0_1 = arith.constant 0 : index
    %0 = vector.load %arg1[%c0, %c0_0, %c0_1] : memref<1x49x48xbf16, #tpu.memory_space<vmem>>, vector<1x49x48xbf16>
    %1 = vector.shape_cast %0 : vector<1x49x48xbf16> to vector<49x48xbf16>
    %c0_2 = arith.constant 0 : index
    %c0_3 = arith.constant 0 : index
    %2 = vector.load %arg2[%c0_2, %c0_3] : memref<48x128xbf16, #tpu.memory_space<vmem>>, vector<48x128xbf16>
    %cst = arith.constant dense<0.000000e+00> : vector<49x128xf32>
    %3 = tpu.matmul %1, %2, %cst {dimension_numbers = #tpu.dot_dimension_numbers<[1], [0], [0], [1], [0, 0, 1, 1], [], []>} : vector<49x48xbf16>, vector<48x128xbf16>, vector<49x128xf32> -> vector<49x128xf32>
    %c0_4 = arith.constant 0 : index
    %c0_5 = arith.constant 0 : index
    %4 = vector.load %arg3[%c0_4, %c0_5] : memref<1x128xf32, #tpu.memory_space<vmem>>, vector<1x128xf32>
    %5 = vector.broadcast %4 : vector<1x128xf32> to vector<49x128xf32>
    %6 = arith.addf %3, %5 : vector<49x128xf32>
    %cst_6 = arith.constant dense<0.000000e+00> : vector<128xf32>
    %7 = vector.multi_reduction <add>, %6, %cst_6 [0] : vector<49x128xf32> to vector<128xf32>
    %8 = vector.shape_cast %7 : vector<128xf32> to vector<1x128xf32>
    %c0_7 = arith.constant 0 : index
    %c0_8 = arith.constant 0 : index
    %9 = vector.load %arg6[%c0_7, %c0_8] : memref<128x4xf32, #tpu.memory_space<vmem>>, vector<128x4xf32>
    %cst_9 = arith.constant dense<0.000000e+00> : vector<1x4xf32>
    %10 = tpu.matmul %8, %9, %cst_9 {dimension_numbers = #tpu.dot_dimension_numbers<[1], [0], [0], [1], [0, 0, 1, 1], [], []>} : vector<1x128xf32>, vector<128x4xf32>, vector<1x4xf32> -> vector<1x4xf32>
    %cst_10 = arith.constant 8.50340118E-4 : f32
    %11 = vector.broadcast %cst_10 : f32 to vector<1x4xf32>
    %12 = arith.mulf %10, %11 : vector<1x4xf32>
    %c0_11 = arith.constant 0 : index
    %c0_12 = arith.constant 0 : index
    %13 = vector.load %arg7[%c0_11, %c0_12] : memref<4x128xf32, #tpu.memory_space<vmem>>, vector<4x128xf32>
    %cst_13 = arith.constant dense<0.000000e+00> : vector<1x128xf32>
    %14 = tpu.matmul %12, %13, %cst_13 {dimension_numbers = #tpu.dot_dimension_numbers<[1], [0], [0], [1], [0, 0, 1, 1], [], []>} : vector<1x4xf32>, vector<4x128xf32>, vector<1x128xf32> -> vector<1x128xf32>
    %15 = vector.broadcast %14 : vector<1x128xf32> to vector<49x128xf32>
    %16 = arith.subf %6, %15 : vector<49x128xf32>
    %17 = arith.mulf %16, %16 : vector<49x128xf32>
    %cst_14 = arith.constant dense<0.000000e+00> : vector<128xf32>
    %18 = vector.multi_reduction <add>, %17, %cst_14 [0] : vector<49x128xf32> to vector<128xf32>
    %19 = vector.shape_cast %18 : vector<128xf32> to vector<1x128xf32>
    %c0_15 = arith.constant 0 : index
    %c0_16 = arith.constant 0 : index
    %20 = vector.load %arg6[%c0_15, %c0_16] : memref<128x4xf32, #tpu.memory_space<vmem>>, vector<128x4xf32>
    %cst_17 = arith.constant dense<0.000000e+00> : vector<1x4xf32>
    %21 = tpu.matmul %19, %20, %cst_17 {dimension_numbers = #tpu.dot_dimension_numbers<[1], [0], [0], [1], [0, 0, 1, 1], [], []>} : vector<1x128xf32>, vector<128x4xf32>, vector<1x4xf32> -> vector<1x4xf32>
    %cst_18 = arith.constant 8.50340118E-4 : f32
    %22 = vector.broadcast %cst_18 : f32 to vector<1x4xf32>
    %23 = arith.mulf %21, %22 : vector<1x4xf32>
    %cst_19 = arith.constant 1.000000e-03 : f32
    %24 = vector.broadcast %cst_19 : f32 to vector<1x4xf32>
    %25 = arith.addf %23, %24 : vector<1x4xf32>
    %26 = math.rsqrt %25 : vector<1x4xf32>
    %c0_20 = arith.constant 0 : index
    %c0_21 = arith.constant 0 : index
    %27 = vector.load %arg7[%c0_20, %c0_21] : memref<4x128xf32, #tpu.memory_space<vmem>>, vector<4x128xf32>
    %cst_22 = arith.constant dense<0.000000e+00> : vector<1x128xf32>
    %28 = tpu.matmul %26, %27, %cst_22 {dimension_numbers = #tpu.dot_dimension_numbers<[1], [0], [0], [1], [0, 0, 1, 1], [], []>} : vector<1x4xf32>, vector<4x128xf32>, vector<1x128xf32> -> vector<1x128xf32>
    %c0_23 = arith.constant 0 : index
    %c0_24 = arith.constant 0 : index
    %29 = vector.load %arg4[%c0_23, %c0_24] : memref<1x128xf32, #tpu.memory_space<vmem>>, vector<1x128xf32>
    %30 = arith.mulf %28, %29 : vector<1x128xf32>
    %c0_25 = arith.constant 0 : index
    %c0_26 = arith.constant 0 : index
    %31 = vector.load %arg5[%c0_25, %c0_26] : memref<1x128xf32, #tpu.memory_space<vmem>>, vector<1x128xf32>
    %32 = arith.mulf %14, %30 : vector<1x128xf32>
    %33 = arith.subf %31, %32 : vector<1x128xf32>
    %34 = vector.broadcast %30 : vector<1x128xf32> to vector<49x128xf32>
    %35 = arith.mulf %6, %34 : vector<49x128xf32>
    %36 = vector.broadcast %33 : vector<1x128xf32> to vector<49x128xf32>
    %37 = arith.addf %35, %36 : vector<49x128xf32>
    %cst_27 = arith.constant 0.000000e+00 : f32
    %38 = vector.broadcast %cst_27 : f32 to vector<49x128xf32>
    %39 = arith.maximumf %37, %38 : vector<49x128xf32>
    %c0_28 = arith.constant 0 : index
    %c0_29 = arith.constant 0 : index
    %c0_30 = arith.constant 0 : index
    %40 = vector.load %arg8[%c0_28, %c0_29, %c0_30] : memref<1x49x128xf32, #tpu.memory_space<vmem>>, vector<1x49x128xf32>
    %41 = vector.shape_cast %40 : vector<1x49x128xf32> to vector<49x128xf32>
    %42 = vector.shape_cast %39 : vector<49x128xf32> to vector<1x49x128xf32>
    tpu.vector_store %arg8[%c0_28, %c0_29, %c0_30], %42 {strides = array<i32>} : memref<1x49x128xf32, #tpu.memory_space<vmem>>, vector<1x49x128xf32>,
    return
  }
  func.func @transform_0(%arg0: i32) -> (i32, i32, i32) {
    %c0_i32 = arith.constant 0 : i32
    %c0_i32_0 = arith.constant 0 : i32
    %c0_i32_1 = arith.constant 0 : i32
    return %arg0, %c0_i32, %c0_i32_0 : i32, i32, i32
  }
  func.func @transform_1(%arg0: i32) -> (i32, i32) {
    %c0_i32 = arith.constant 0 : i32
    %c0_i32_0 = arith.constant 0 : i32
    %c0_i32_1 = arith.constant 0 : i32
    return %c0_i32, %c0_i32_0 : i32, i32
  }
  func.func @transform_2(%arg0: i32) -> (i32, i32) {
    %c0_i32 = arith.constant 0 : i32
    %c0_i32_0 = arith.constant 0 : i32
    %c0_i32_1 = arith.constant 0 : i32
    return %c0_i32, %c0_i32_0 : i32, i32
  }
  func.func @transform_3(%arg0: i32) -> (i32, i32) {
    %c0_i32 = arith.constant 0 : i32
    %c0_i32_0 = arith.constant 0 : i32
    %c0_i32_1 = arith.constant 0 : i32
    return %c0_i32, %c0_i32_0 : i32, i32
  }
  func.func @transform_4(%arg0: i32) -> (i32, i32) {
    %c0_i32 = arith.constant 0 : i32
    %c0_i32_0 = arith.constant 0 : i32
    %c0_i32_1 = arith.constant 0 : i32
    return %c0_i32, %c0_i32_0 : i32, i32
  }
  func.func @transform_5(%arg0: i32) -> (i32, i32) {
    %c0_i32 = arith.constant 0 : i32
    %c0_i32_0 = arith.constant 0 : i32
    %c0_i32_1 = arith.constant 0 : i32
    return %c0_i32, %c0_i32_0 : i32, i32
  }
  func.func @transform_6(%arg0: i32) -> (i32, i32) {
    %c0_i32 = arith.constant 0 : i32
    %c0_i32_0 = arith.constant 0 : i32
    %c0_i32_1 = arith.constant 0 : i32
    return %c0_i32, %c0_i32_0 : i32, i32
  }
  func.func @transform_7(%arg0: i32) -> (i32, i32, i32) {
    %c0_i32 = arith.constant 0 : i32
    %c0_i32_0 = arith.constant 0 : i32
    %c0_i32_1 = arith.constant 0 : i32
    return %arg0, %c0_i32, %c0_i32_0 : i32, i32, i32
  }
}

module attributes {stable_mosaic.version = 11 : i64} {
  func.func @_maxpool_kernel(%arg0: i32, %arg1: memref<9x8x128xf32, #tpu.memory_space<vmem>>, %arg2: memref<8x128xf32, #tpu.memory_space<vmem>>) attributes {dimension_semantics = [#tpu.dimension_semantics<arbitrary>], iteration_bounds = array<i64: 1>, scalar_prefetch = 0 : i64, scratch_operands = 0 : i64, tpu.core_type = #tpu.core_type<tc>, window_params = [{pipeline_mode = #tpu.pipeline_mode<synchronous>, transform_indices = @transform_0, window_bounds = array<i64: 9, 8, 128>}, {pipeline_mode = #tpu.pipeline_mode<synchronous>, transform_indices = @transform_1, window_bounds = array<i64: 8, 128>}]} {
    %c0 = arith.constant 0 : index
    %c0_0 = arith.constant 0 : index
    %c0_1 = arith.constant 0 : index
    %0 = vector.load %arg1[%c0, %c0_0, %c0_1] : memref<9x8x128xf32, #tpu.memory_space<vmem>>, vector<1x8x128xf32>
    %1 = vector.shape_cast %0 : vector<1x8x128xf32> to vector<8x128xf32>
    %c1 = arith.constant 1 : index
    %c0_2 = arith.constant 0 : index
    %c0_3 = arith.constant 0 : index
    %2 = vector.load %arg1[%c1, %c0_2, %c0_3] : memref<9x8x128xf32, #tpu.memory_space<vmem>>, vector<1x8x128xf32>
    %3 = vector.shape_cast %2 : vector<1x8x128xf32> to vector<8x128xf32>
    %4 = arith.maximumf %1, %3 : vector<8x128xf32>
    %c2 = arith.constant 2 : index
    %c0_4 = arith.constant 0 : index
    %c0_5 = arith.constant 0 : index
    %5 = vector.load %arg1[%c2, %c0_4, %c0_5] : memref<9x8x128xf32, #tpu.memory_space<vmem>>, vector<1x8x128xf32>
    %6 = vector.shape_cast %5 : vector<1x8x128xf32> to vector<8x128xf32>
    %7 = arith.maximumf %4, %6 : vector<8x128xf32>
    %c3 = arith.constant 3 : index
    %c0_6 = arith.constant 0 : index
    %c0_7 = arith.constant 0 : index
    %8 = vector.load %arg1[%c3, %c0_6, %c0_7] : memref<9x8x128xf32, #tpu.memory_space<vmem>>, vector<1x8x128xf32>
    %9 = vector.shape_cast %8 : vector<1x8x128xf32> to vector<8x128xf32>
    %10 = arith.maximumf %7, %9 : vector<8x128xf32>
    %c4 = arith.constant 4 : index
    %c0_8 = arith.constant 0 : index
    %c0_9 = arith.constant 0 : index
    %11 = vector.load %arg1[%c4, %c0_8, %c0_9] : memref<9x8x128xf32, #tpu.memory_space<vmem>>, vector<1x8x128xf32>
    %12 = vector.shape_cast %11 : vector<1x8x128xf32> to vector<8x128xf32>
    %13 = arith.maximumf %10, %12 : vector<8x128xf32>
    %c5 = arith.constant 5 : index
    %c0_10 = arith.constant 0 : index
    %c0_11 = arith.constant 0 : index
    %14 = vector.load %arg1[%c5, %c0_10, %c0_11] : memref<9x8x128xf32, #tpu.memory_space<vmem>>, vector<1x8x128xf32>
    %15 = vector.shape_cast %14 : vector<1x8x128xf32> to vector<8x128xf32>
    %16 = arith.maximumf %13, %15 : vector<8x128xf32>
    %c6 = arith.constant 6 : index
    %c0_12 = arith.constant 0 : index
    %c0_13 = arith.constant 0 : index
    %17 = vector.load %arg1[%c6, %c0_12, %c0_13] : memref<9x8x128xf32, #tpu.memory_space<vmem>>, vector<1x8x128xf32>
    %18 = vector.shape_cast %17 : vector<1x8x128xf32> to vector<8x128xf32>
    %19 = arith.maximumf %16, %18 : vector<8x128xf32>
    %c7 = arith.constant 7 : index
    %c0_14 = arith.constant 0 : index
    %c0_15 = arith.constant 0 : index
    %20 = vector.load %arg1[%c7, %c0_14, %c0_15] : memref<9x8x128xf32, #tpu.memory_space<vmem>>, vector<1x8x128xf32>
    %21 = vector.shape_cast %20 : vector<1x8x128xf32> to vector<8x128xf32>
    %22 = arith.maximumf %19, %21 : vector<8x128xf32>
    %c8 = arith.constant 8 : index
    %c0_16 = arith.constant 0 : index
    %c0_17 = arith.constant 0 : index
    %23 = vector.load %arg1[%c8, %c0_16, %c0_17] : memref<9x8x128xf32, #tpu.memory_space<vmem>>, vector<1x8x128xf32>
    %24 = vector.shape_cast %23 : vector<1x8x128xf32> to vector<8x128xf32>
    %25 = arith.maximumf %22, %24 : vector<8x128xf32>
    %c0_18 = arith.constant 0 : index
    %c0_19 = arith.constant 0 : index
    %26 = vector.load %arg2[%c0_18, %c0_19] : memref<8x128xf32, #tpu.memory_space<vmem>>, vector<8x128xf32>
    tpu.vector_store %arg2[%c0_18, %c0_19], %25 {strides = array<i32>} : memref<8x128xf32, #tpu.memory_space<vmem>>, vector<8x128xf32>,
    return
  }
  func.func @transform_0(%arg0: i32) -> (i32, i32, i32) {
    %c0_i32 = arith.constant 0 : i32
    %c0_i32_0 = arith.constant 0 : i32
    %c0_i32_1 = arith.constant 0 : i32
    %c0_i32_2 = arith.constant 0 : i32
    return %c0_i32, %c0_i32_0, %c0_i32_1 : i32, i32, i32
  }
  func.func @transform_1(%arg0: i32) -> (i32, i32) {
    %c0_i32 = arith.constant 0 : i32
    %c0_i32_0 = arith.constant 0 : i32
    %c0_i32_1 = arith.constant 0 : i32
    return %c0_i32, %c0_i32_0 : i32, i32
  }
}

</mosaic_0001>

<llo_original>
// kernel: inception_b_forward.6
$region0: #{inception_b_forward.6}
  #allocation0 [shape = 'u32[]', space=smem, size = 0x4, offset = 0x4, fixed_abs, tag = 'smem constant byte address 0x4 - core index']
  #allocation1 [shape = 'u32[144,128]{1,0:T(1,128)}', space=vmem, size = 0x12000, scoped, tag = 'internal scratch']
  %s0 = inlined_call_operand.vmem [shape: bf16[2,256,16], index: 0, kind: input, shape index: {}]
  %s1 = inlined_call_operand.vmem [shape: bf16[16,128], index: 1, kind: input, shape index: {}]
  %s2 = inlined_call_operand.vmem [shape: f32[1,128], index: 2, kind: input, shape index: {}]
  %s3 = inlined_call_operand.vmem [shape: f32[1,128], index: 3, kind: input, shape index: {}]
  %s4 = inlined_call_operand.vmem [shape: f32[1,128], index: 4, kind: input, shape index: {}]
  %s5 = inlined_call_operand.vmem [shape: f32[128,4], index: 5, kind: input, shape index: {}]
  %s6 = inlined_call_operand.vmem [shape: f32[4,128], index: 6, kind: input, shape index: {}]
  %s7 = inlined_call_operand.vmem [shape: f32[2,256,128], index: 7, kind: output, shape index: {}]
  %s8 = sld [smem:[#allocation0]]
  $region61: #{inception_b_forward.6} parent=0
    _
  %s10 = ssub.s32 1, %s8
  %s11 = scalar_select 0, %s10, %s8
  loop: start=0, step=1, limit=4
  $region2: #{inception_b_forward.6} parent=0 // loop_pre_header
    _
  $region3: #{inception_b_forward.6} parent=0 // loop_header
    %s13 = sphi 0, %s17
    %p14 = scmp.ge.s32.totalorder %s13, 4
    %s23 = sphi 0, %s25
    %s26 = sphi 0, %s23
    %s27 = sphi 0, %s26
    %s43 = sphi 0, %s27
    %s47 = sphi 0, %s47
    %s49 = sphi 0, %s47
    %s50 = sphi 0, %s49
    %s64 = sphi 0, %s50
    %s68 = sphi 0, %s68
    %s70 = sphi 0, %s68
    %s71 = sphi 0, %s70
    %s85 = sphi 0, %s71
    %s89 = sphi 0, %s89
    %s91 = sphi 0, %s89
    %s92 = sphi 0, %s91
    %s106 = sphi 0, %s92
    %s110 = sphi 0, %s110
    %s112 = sphi 0, %s110
    %s113 = sphi 0, %s112
    %s127 = sphi 0, %s113
    %s131 = sphi 0, %s131
    %s133 = sphi 0, %s131
    %s134 = sphi 0, %s133
    %s148 = sphi 0, %s134
    %s152 = sphi 0, %s152
    %s154 = sphi 0, %s152
    %s155 = sphi 0, %s154
    %s169 = sphi 0, %s155
    %s175 = sphi 0, %s177
    %s178 = sphi 0, %s175
    %s179 = sphi 0, %s178
    %s195 = sphi 0, %s179
  $region4: #{inception_b_forward.6} parent=0 // loop_header_branch
    %16 = sbr.rel (%p14) target = $region8
  $region5: #{inception_b_forward.6} parent=0 // loop_body
    %s18 = ssub.s32 %s13, 1
    %s19 = ssub.s32 %s13, 2
    %s20 = sadd.s32 %s13, 1
    %s21 = ssub.s32 %s13, %s20
    %p22 = scmp.eq.s32.totalorder %s21, 0
    %s24 = sadd.s32 %s23, 1
    %s25 = scalar_select %p22, %s23, %s24
    %p28 = pneg %p22
    %p29 = scmp.eq.s32.totalorder %s13, 1
    %p30 = por %p28, %p29
    %p31 = scmp.ne.s32.totalorder %s23, %s26
    %p32 = scmp.eq.s32.totalorder %s13, 0
    %p33 = por %p31, %p32
    %p34 = scmp.ne.s32.totalorder %s23, %s26
    %p35 = scmp.eq.s32.totalorder %s18, 1
    %p36 = por %p34, %p35
    %p37 = scmp.ne.s32.totalorder %s26, %s27
    %p38 = scmp.eq.s32.totalorder %s18, 0
    %p39 = por %p37, %p38
    %p40 = scmp.ne.s32.totalorder %s26, %s27
    %p41 = scmp.eq.s32.totalorder %s19, 1
    %p42 = por %p40, %p41
    %p44 = scmp.ne.s32.totalorder %s27, %s43
    %p45 = scmp.eq.s32.totalorder %s19, 0
    %p46 = por %p44, %p45
    %s48 = sadd.s32 %s47, 1
    %p51 = scmp.eq.s32.totalorder %s13, 1
    %p52 = scmp.ne.s32.totalorder %s47, %s49
    %p53 = scmp.eq.s32.totalorder %s13, 0
    %p54 = por %p52, %p53
    %p55 = scmp.ne.s32.totalorder %s47, %s49
    %p56 = scmp.eq.s32.totalorder %s18, 1
    %p57 = por %p55, %p56
    %p58 = scmp.ne.s32.totalorder %s49, %s50
    %p59 = scmp.eq.s32.totalorder %s18, 0
    %p60 = por %p58, %p59
    %p61 = scmp.ne.s32.totalorder %s49, %s50
    %p62 = scmp.eq.s32.totalorder %s19, 1
    %p63 = por %p61, %p62
    %p65 = scmp.ne.s32.totalorder %s50, %s64
    %p66 = scmp.eq.s32.totalorder %s19, 0
    %p67 = por %p65, %p66
    %s69 = sadd.s32 %s68, 1
    %p72 = scmp.eq.s32.totalorder %s13, 1
    %p73 = scmp.ne.s32.totalorder %s68, %s70
    %p74 = scmp.eq.s32.totalorder %s13, 0
    %p75 = por %p73, %p74
    %p76 = scmp.ne.s32.totalorder %s68, %s70
    %p77 = scmp.eq.s32.totalorder %s18, 1
    %p78 = por %p76, %p77
    %p79 = scmp.ne.s32.totalorder %s70, %s71
    %p80 = scmp.eq.s32.totalorder %s18, 0
    %p81 = por %p79, %p80
    %p82 = scmp.ne.s32.totalorder %s70, %s71
    %p83 = scmp.eq.s32.totalorder %s19, 1
    %p84 = por %p82, %p83
    %p86 = scmp.ne.s32.totalorder %s71, %s85
    %p87 = scmp.eq.s32.totalorder %s19, 0
    %p88 = por %p86, %p87
    %s90 = sadd.s32 %s89, 1
    %p93 = scmp.eq.s32.totalorder %s13, 1
    %p94 = scmp.ne.s32.totalorder %s89, %s91
    %p95 = scmp.eq.s32.totalorder %s13, 0
    %p96 = por %p94, %p95
    %p97 = scmp.ne.s32.totalorder %s89, %s91
    %p98 = scmp.eq.s32.totalorder %s18, 1
    %p99 = por %p97, %p98
    %p100 = scmp.ne.s32.totalorder %s91, %s92
    %p101 = scmp.eq.s32.totalorder %s18, 0
    %p102 = por %p100, %p101
    %p103 = scmp.ne.s32.totalorder %s91, %s92
    %p104 = scmp.eq.s32.totalorder %s19, 1
    %p105 = por %p103, %p104
    %p107 = scmp.ne.s32.totalorder %s92, %s106
    %p108 = scmp.eq.s32.totalorder %s19, 0
    %p109 = por %p107, %p108
    %s111 = sadd.s32 %s110, 1
    %p114 = scmp.eq.s32.totalorder %s13, 1
    %p115 = scmp.ne.s32.totalorder %s110, %s112
    %p116 = scmp.eq.s32.totalorder %s13, 0
    %p117 = por %p115, %p116
    %p118 = scmp.ne.s32.totalorder %s110, %s112
    %p119 = scmp.eq.s32.totalorder %s18, 1
    %p120 = por %p118, %p119
    %p121 = scmp.ne.s32.totalorder %s112, %s113
    %p122 = scmp.eq.s32.totalorder %s18, 0
    %p123 = por %p121, %p122
    %p124 = scmp.ne.s32.totalorder %s112, %s113
    %p125 = scmp.eq.s32.totalorder %s19, 1
    %p126 = por %p124, %p125
    %p128 = scmp.ne.s32.totalorder %s113, %s127
    %p129 = scmp.eq.s32.totalorder %s19, 0
    %p130 = por %p128, %p129
    %s132 = sadd.s32 %s131, 1
    %p135 = scmp.eq.s32.totalorder %s13, 1
    %p136 = scmp.ne.s32.totalorder %s131, %s133
    %p137 = scmp.eq.s32.totalorder %s13, 0
    %p138 = por %p136, %p137
    %p139 = scmp.ne.s32.totalorder %s131, %s133
    %p140 = scmp.eq.s32.totalorder %s18, 1
    %p141 = por %p139, %p140
    %p142 = scmp.ne.s32.totalorder %s133, %s134
    %p143 = scmp.eq.s32.totalorder %s18, 0
    %p144 = por %p142, %p143
    %p145 = scmp.ne.s32.totalorder %s133, %s134
    %p146 = scmp.eq.s32.totalorder %s19, 1
    %p147 = por %p145, %p146
    %p149 = scmp.ne.s32.totalorder %s134, %s148
    %p150 = scmp.eq.s32.totalorder %s19, 0
    %p151 = por %p149, %p150
    %s153 = sadd.s32 %s152, 1
    %p156 = scmp.eq.s32.totalorder %s13, 1
    %p157 = scmp.ne.s32.totalorder %s152, %s154
    %p158 = scmp.eq.s32.totalorder %s13, 0
    %p159 = por %p157, %p158
    %p160 = scmp.ne.s32.totalorder %s152, %s154
    %p161 = scmp.eq.s32.totalorder %s18, 1
    %p162 = por %p160, %p161
    %p163 = scmp.ne.s32.totalorder %s154, %s155
    %p164 = scmp.eq.s32.totalorder %s18, 0
    %p165 = por %p163, %p164
    %p166 = scmp.ne.s32.totalorder %s154, %s155
    %p167 = scmp.eq.s32.totalorder %s19, 1
    %p168 = por %p166, %p167
    %p170 = scmp.ne.s32.totalorder %s155, %s169
    %p171 = scmp.eq.s32.totalorder %s19, 0
    %p172 = por %p170, %p171
    %s173 = ssub.s32 %s13, %s20
    %p174 = scmp.eq.s32.totalorder %s173, 0
    %s176 = sadd.s32 %s175, 1
    %s177 = scalar_select %p174, %s175, %s176
    %p180 = pneg %p174
    %p181 = scmp.eq.s32.totalorder %s13, 1
    %p182 = por %p180, %p181
    %p183 = scmp.ne.s32.totalorder %s175, %s178
    %p184 = scmp.eq.s32.totalorder %s13, 0
    %p185 = por %p183, %p184
    %p186 = scmp.ne.s32.totalorder %s175, %s178
    %p187 = scmp.eq.s32.totalorder %s18, 1
    %p188 = por %p186, %p187
    %p189 = scmp.ne.s32.totalorder %s178, %s179
    %p190 = scmp.eq.s32.totalorder %s18, 0
    %p191 = por %p189, %p190
    %p192 = scmp.ne.s32.totalorder %s178, %s179
    %p193 = scmp.eq.s32.totalorder %s19, 1
    %p194 = por %p192, %p193
    %p196 = scmp.ne.s32.totalorder %s179, %s195
    %p197 = scmp.eq.s32.totalorder %s19, 0
    %p198 = por %p196, %p197
    %p199 = scmp.le.s32.totalorder 1, %s13
    %p200 = scmp.lt.s32.totalorder %s13, 3
    %p201 = pnand %p199, %p200
    %p202 = pneg %p201
    // Predicated region
    $region9: #{inception_b_forward.6} parent=5 // pred_check
      _
    $region10: #{inception_b_forward.6} parent=5 // pred_check_branch
      %204 = sbr.rel (%p201) target = $region12
    $region11: #{inception_b_forward.6} parent=5 // pred_region
      %s205 = ssub.s32 %s13, 1
      // Predicated region
      $region13: #{inception_b_forward.6} parent=11 // pred_check
        %p206 = pneg %p60
      $region14: #{inception_b_forward.6} parent=11 // pred_check_branch
        %208 = sbr.rel (%p206) target = $region16
      $region15: #{inception_b_forward.6} parent=11 // pred_region
        _
      $region16: #{inception_b_forward.6} parent=11 // pred_fallthru
        _
      // Predicated region
      $region17: #{inception_b_forward.6} parent=11 // pred_check
        %p209 = pneg %p81
      $region18: #{inception_b_forward.6} parent=11 // pred_check_branch
        %211 = sbr.rel (%p209) target = $region20
      $region19: #{inception_b_forward.6} parent=11 // pred_region
        _
      $region20: #{inception_b_forward.6} parent=11 // pred_fallthru
        _
      // Predicated region
      $region21: #{inception_b_forward.6} parent=11 // pred_check
        %p212 = pneg %p102
      $region22: #{inception_b_forward.6} parent=11 // pred_check_branch
        %214 = sbr.rel (%p212) target = $region24
      $region23: #{inception_b_forward.6} parent=11 // pred_region
        _
      $region24: #{inception_b_forward.6} parent=11 // pred_fallthru
        _
      // Predicated region
      $region25: #{inception_b_forward.6} parent=11 // pred_check
        %p215 = pneg %p123
      $region26: #{inception_b_forward.6} parent=11 // pred_check_branch
        %217 = sbr.rel (%p215) target = $region28
      $region27: #{inception_b_forward.6} parent=11 // pred_region
        _
      $region28: #{inception_b_forward.6} parent=11 // pred_fallthru
        _
      // Predicated region
      $region29: #{inception_b_forward.6} parent=11 // pred_check
        %p218 = pneg %p144
      $region30: #{inception_b_forward.6} parent=11 // pred_check_branch
        %220 = sbr.rel (%p218) target = $region32
      $region31: #{inception_b_forward.6} parent=11 // pred_region
        _
      $region32: #{inception_b_forward.6} parent=11 // pred_fallthru
        _
      // Predicated region
      $region33: #{inception_b_forward.6} parent=11 // pred_check
        %p221 = pneg %p165
      $region34: #{inception_b_forward.6} parent=11 // pred_check_branch
        %223 = sbr.rel (%p221) target = $region36
      $region35: #{inception_b_forward.6} parent=11 // pred_region
        _
      $region36: #{inception_b_forward.6} parent=11 // pred_fallthru
        _
    $region12: #{inception_b_forward.6} parent=5 // pred_fallthru
      _
    %p224 = scmp.lt.s32.totalorder %s13, 2
    // Predicated region
    $region37: #{inception_b_forward.6} parent=5 // pred_check
      %p225 = pneg %p224
    $region38: #{inception_b_forward.6} parent=5 // pred_check_branch
      %227 = sbr.rel (%p225) target = $region40
    $region39: #{inception_b_forward.6} parent=5 // pred_region
      // Predicated region
      $region41: #{inception_b_forward.6} parent=39 // pred_check
        %p228 = pneg %p33
      $region42: #{inception_b_forward.6} parent=39 // pred_check_branch
        %230 = sbr.rel (%p228) target = $region44
      $region43: #{inception_b_forward.6} parent=39 // pred_region
        %p231 = scmp.lt.s32.totalorder %s13, 1
        %s232 = scalar_select %p231, %s13, 1
        %s233 = smul.addr %s232, 32
        %s234 = smul.addr %s233, 4
        %s235 = scalar_lea.vmem %s0, %s234
      $region44: #{inception_b_forward.6} parent=39 // pred_fallthru
        _
    $region40: #{inception_b_forward.6} parent=5 // pred_fallthru
      _
    %p236 = scmp.le.s32.totalorder 1, %s13
    %p237 = scmp.lt.s32.totalorder %s13, 3
    %p238 = pnand %p236, %p237
    %p239 = pneg %p238
    // Predicated region
    $region45: #{inception_b_forward.6} parent=5 // pred_check
      _
    $region46: #{inception_b_forward.6} parent=5 // pred_check_branch
      %241 = sbr.rel (%p238) target = $region48
    $region47: #{inception_b_forward.6} parent=5 // pred_region
      %s242 = ssub.s32 %s13, 1
      %p243 = scmp.lt.s32.totalorder %s18, 1
      %s244 = scalar_select %p243, %s18, 1
      %s245 = smul.addr %s244, 32
      %s246 = smul.addr %s245, 4
      %s247 = scalar_lea.vmem %s0, %s246
      %p248 = pneg %p39
      %p249 = pneg %p36
      %p250 = pneg %p60
      %p251 = pneg %p57
      %p252 = pneg %p81
      %p253 = pneg %p78
      %p254 = pneg %p102
      %p255 = pneg %p99
      %p256 = pneg %p123
      %p257 = pneg %p120
      %p258 = pneg %p144
      %p259 = pneg %p141
      %p260 = pneg %p165
      %p261 = pneg %p162
      %p262 = pneg %p191
      %p263 = pneg %p188
      %p264 = scmp.lt.s32.totalorder %s18, 1
      %s265 = scalar_select %p264, %s18, 1
      %s266 = smul.addr %s265, 32
      %s267 = smul.addr %s266, 8
      %s268 = scalar_lea.vmem %s7, %s267
      %p269 = scmp.lt.s32.totalorder %s18, 1
      %s270 = scalar_select %p269, %s18, 1
      %s271 = smul.addr %s270, 32
      %s272 = smul.addr %s271, 4
      %s273 = scalar_lea.vmem %s0, %s272
      %p274 = scmp.lt.s32.totalorder %s18, 1
      %s275 = scalar_select %p274, %s18, 1
      %s276 = smul.addr %s275, 32
      %s277 = smul.addr %s276, 8
      %s278 = scalar_lea.vmem %s7, %s277
      %v280 = vld [vmem:[%s273] sm:$0xf]
      %v281 = vld [vmem:[%s273 + $0x4] sm:$0xf]
      %v282 = vld [vmem:[%s273 + $0x8] sm:$0xf]
      %v283 = vld [vmem:[%s273 + $0xc] sm:$0xf]
      %v284 = vld [vmem:[%s273 + $0x10] sm:$0xf]
      %v285 = vld [vmem:[%s273 + $0x14] sm:$0xf]
      %v286 = vld [vmem:[%s273 + $0x18] sm:$0xf]
      %v287 = vld [vmem:[%s273 + $0x1c] sm:$0xf]
      %v288 = vld [vmem:[%s273 + $0x20] sm:$0xf]
      %v289 = vld [vmem:[%s273 + $0x24] sm:$0xf]
      %v290 = vld [vmem:[%s273 + $0x28] sm:$0xf]
      %v291 = vld [vmem:[%s273 + $0x2c] sm:$0xf]
      %v292 = vld [vmem:[%s273 + $0x30] sm:$0xf]
      %v293 = vld [vmem:[%s273 + $0x34] sm:$0xf]
      %v294 = vld [vmem:[%s273 + $0x38] sm:$0xf]
      %v295 = vld [vmem:[%s273 + $0x3c] sm:$0xf]
      %v296 = vld [vmem:[%s273 + $0x40] sm:$0xf]
      %v297 = vld [vmem:[%s273 + $0x44] sm:$0xf]
      %v298 = vld [vmem:[%s273 + $0x48] sm:$0xf]
      %v299 = vld [vmem:[%s273 + $0x4c] sm:$0xf]
      %v300 = vld [vmem:[%s273 + $0x50] sm:$0xf]
      %v301 = vld [vmem:[%s273 + $0x54] sm:$0xf]
      %v302 = vld [vmem:[%s273 + $0x58] sm:$0xf]
      %v303 = vld [vmem:[%s273 + $0x5c] sm:$0xf]
      %v304 = vld [vmem:[%s273 + $0x60] sm:$0xf]
      %v305 = vld [vmem:[%s273 + $0x64] sm:$0xf]
      %v306 = vld [vmem:[%s273 + $0x68] sm:$0xf]
      %v307 = vld [vmem:[%s273 + $0x6c] sm:$0xf]
      %v308 = vld [vmem:[%s273 + $0x70] sm:$0xf]
      %v309 = vld [vmem:[%s273 + $0x74] sm:$0xf]
      %v310 = vld [vmem:[%s273 + $0x78] sm:$0xf]
      %v311 = vld [vmem:[%s273 + $0x7c] sm:$0xf]
      %v312 = vld [vmem:[%s1] sm:$0xf]
      %v313 = vld [vmem:[%s1 + $0x4] sm:$0xf]
      %v314 = vld [vmem:[%s2] sm:$0x1]
      %v316 = vlaneseq
      %v317 = vshrl.u32 %v316, 7
      %v318 = vsub.s32 0, %v317
      %v319 = vrot.slane %v314, %v318
      %v353 = vunpack.c.l.b16 %v280
      %v354 = vunpack.c.l.b16 %v281
      %v355 = vunpack.c.l.b16 %v282
      %v356 = vunpack.c.l.b16 %v283
      %v357 = vunpack.c.l.b16 %v284
      %v358 = vunpack.c.l.b16 %v285
      %v359 = vunpack.c.l.b16 %v286
      %v360 = vunpack.c.l.b16 %v287
      %v361 = vunpack.c.l.b16 %v288
      %v362 = vunpack.c.l.b16 %v289
      %v363 = vunpack.c.l.b16 %v290
      %v364 = vunpack.c.l.b16 %v291
      %v365 = vunpack.c.l.b16 %v292
      %v366 = vunpack.c.l.b16 %v293
      %v367 = vunpack.c.l.b16 %v294
      %v368 = vunpack.c.l.b16 %v295
      %v369 = vunpack.c.l.b16 %v296
      %v370 = vunpack.c.l.b16 %v297
      %v371 = vunpack.c.l.b16 %v298
      %v372 = vunpack.c.l.b16 %v299
      %v373 = vunpack.c.l.b16 %v300
      %v374 = vunpack.c.l.b16 %v301
      %v375 = vunpack.c.l.b16 %v302
      %v376 = vunpack.c.l.b16 %v303
      %v377 = vunpack.c.l.b16 %v304
      %v378 = vunpack.c.l.b16 %v305
      %v379 = vunpack.c.l.b16 %v306
      %v380 = vunpack.c.l.b16 %v307
      %v381 = vunpack.c.l.b16 %v308
      %v382 = vunpack.c.l.b16 %v309
      %v383 = vunpack.c.l.b16 %v310
      %v384 = vunpack.c.l.b16 %v311
      %v385 = vpack.c.b16 %v354, %v353
      %v386 = vpack.c.b16 %v356, %v355
      %v387 = vpack.c.b16 %v358, %v357
      %v388 = vpack.c.b16 %v360, %v359
      %v389 = vpack.c.b16 %v362, %v361
      %v390 = vpack.c.b16 %v364, %v363
      %v391 = vpack.c.b16 %v366, %v365
      %v392 = vpack.c.b16 %v368, %v367
      %v393 = vpack.c.b16 %v370, %v369
      %v394 = vpack.c.b16 %v372, %v371
      %v395 = vpack.c.b16 %v374, %v373
      %v396 = vpack.c.b16 %v376, %v375
      %v397 = vpack.c.b16 %v378, %v377
      %v398 = vpack.c.b16 %v380, %v379
      %v399 = vpack.c.b16 %v382, %v381
      %v400 = vpack.c.b16 %v384, %v383
      %v403 = vunpack.c.l.b16 %v312
      %v404 = vunpack.c.l.b16 %v313
      %v405 = vpack.c.b16 %v404, %v403
      %vm407 = vcmask 130048
      %v409 = vsel %vm407, %v385, 0
      %v412 = vsel %vm407, %v386, 0
      %v415 = vsel %vm407, %v387, 0
      %v418 = vsel %vm407, %v388, 0
      %v421 = vsel %vm407, %v389, 0
      %v424 = vsel %vm407, %v390, 0
      %v427 = vsel %vm407, %v391, 0
      %v430 = vsel %vm407, %v392, 0
      %v433 = vsel %vm407, %v393, 0
      %v436 = vsel %vm407, %v394, 0
      %v439 = vsel %vm407, %v395, 0
      %v442 = vsel %vm407, %v396, 0
      %v445 = vsel %vm407, %v397, 0
      %v448 = vsel %vm407, %v398, 0
      %v451 = vsel %vm407, %v399, 0
      %v454 = vsel %vm407, %v400, 0
      %456 = vmatprep.subr.bf16.mxu0 0
      %457 = vmatpush1.bf16.msra.mxu0 %v405
      %458 = vmatprep.subr.bf16.mxu0 0
      %459 = vmatpush1.bf16.msra.mxu0 0
      %460 = vmatprep.subr.bf16.mxu0 0
      %461 = vmatpush1.bf16.msra.mxu0 0
      %462 = vmatprep.subr.bf16.mxu0 0
      %463 = vmatpush1.bf16.msra.mxu0 0
      %464 = vmatprep.subr.bf16.mxu0 0
      %465 = vmatpush1.bf16.msra.mxu0 0
      %466 = vmatprep.subr.bf16.mxu0 0
      %467 = vmatpush1.bf16.msra.mxu0 0
      %468 = vmatprep.subr.bf16.mxu0 0
      %469 = vmatpush1.bf16.msra.mxu0 0
      %470 = vmatprep.subr.bf16.mxu0 0
      %471 = vmatpush1.bf16.msra.mxu0 0
      %472 = vmatprep.subr.bf16.mxu0 0
      %473 = vmatpush1.bf16.msra.mxu0 0
      %474 = vmatprep.subr.bf16.mxu0 0
      %475 = vmatpush1.bf16.msra.mxu0 0
      %476 = vmatprep.subr.bf16.mxu0 0
      %477 = vmatpush1.bf16.msra.mxu0 0
      %478 = vmatprep.subr.bf16.mxu0 0
      %479 = vmatpush1.bf16.msra.mxu0 0
      %480 = vmatprep.subr.bf16.mxu0 0
      %481 = vmatpush1.bf16.msra.mxu0 0
      %482 = vmatprep.subr.bf16.mxu0 0
      %483 = vmatpush1.bf16.msra.mxu0 0
      %484 = vmatprep.subr.bf16.mxu0 0
      %485 = vmatpush1.bf16.msra.mxu0 0
      %486 = vmatprep.subr.bf16.mxu0 0
      %487 = vmatpush1.bf16.msra.mxu0 0
      %488 = vmatprep.mubr.bf16.mxu0 0
      %489 = vmatmul.mubr.bf16.gmra.mrb[0].mxu0 %v409
      %v490 = vpop.f32.mrb[0].mxu0
      %v491 = vadd.f32 %v319, %v490
      %v492 = vpop.f32.mrb[0].mxu0
      %v493 = vpop.f32.mrb[0].mxu0
      %v494 = vadd.f32 %v319, %v493
      %v495 = vpop.f32.mrb[0].mxu0
      %496 = vmatprep.mubr.bf16.mxu0 0
      %497 = vmatmul.mubr.bf16.gmra.mrb[0].mxu0 %v412
      %v498 = vpop.f32.mrb[0].mxu0
      %v499 = vadd.f32 %v319, %v498
      %v500 = vpop.f32.mrb[0].mxu0
      %v501 = vpop.f32.mrb[0].mxu0
      %v502 = vadd.f32 %v319, %v501
      %v503 = vpop.f32.mrb[0].mxu0
      %504 = vmatprep.mubr.bf16.mxu0 0
      %505 = vmatmul.mubr.bf16.gmra.mrb[0].mxu0 %v415
      %v506 = vpop.f32.mrb[0].mxu0
      %v507 = vadd.f32 %v319, %v506
      %v508 = vpop.f32.mrb[0].mxu0
      %v509 = vpop.f32.mrb[0].mxu0
      %v510 = vadd.f32 %v319, %v509
      %v511 = vpop.f32.mrb[0].mxu0
      %512 = vmatprep.mubr.bf16.mxu0 0
      %513 = vmatmul.mubr.bf16.gmra.mrb[0].mxu0 %v418
      %v514 = vpop.f32.mrb[0].mxu0
      %v515 = vadd.f32 %v319, %v514
      %v516 = vpop.f32.mrb[0].mxu0
      %v517 = vpop.f32.mrb[0].mxu0
      %v518 = vadd.f32 %v319, %v517
      %v519 = vpop.f32.mrb[0].mxu0
      %520 = vmatprep.mubr.bf16.mxu0 0
      %521 = vmatmul.mubr.bf16.gmra.mrb[0].mxu0 %v421
      %v522 = vpop.f32.mrb[0].mxu0
      %v523 = vadd.f32 %v319, %v522
      %v524 = vpop.f32.mrb[0].mxu0
      %v525 = vpop.f32.mrb[0].mxu0
      %v526 = vadd.f32 %v319, %v525
      %v527 = vpop.f32.mrb[0].mxu0
      %528 = vmatprep.mubr.bf16.mxu0 0
      %529 = vmatmul.mubr.bf16.gmra.mrb[0].mxu0 %v424
      %v530 = vpop.f32.mrb[0].mxu0
      %v531 = vadd.f32 %v319, %v530
      %v532 = vpop.f32.mrb[0].mxu0
      %v533 = vpop.f32.mrb[0].mxu0
      %v534 = vadd.f32 %v319, %v533
      %v535 = vpop.f32.mrb[0].mxu0
      %536 = vmatprep.mubr.bf16.mxu0 0
      %537 = vmatmul.mubr.bf16.gmra.mrb[0].mxu0 %v427
      %v538 = vpop.f32.mrb[0].mxu0
      %v539 = vadd.f32 %v319, %v538
      %v540 = vpop.f32.mrb[0].mxu0
      %v541 = vpop.f32.mrb[0].mxu0
      %v542 = vadd.f32 %v319, %v541
      %v543 = vpop.f32.mrb[0].mxu0
      %544 = vmatprep.mubr.bf16.mxu0 0
      %545 = vmatmul.mubr.bf16.gmra.mrb[0].mxu0 %v430
      %v546 = vpop.f32.mrb[0].mxu0
      %v547 = vadd.f32 %v319, %v546
      %v548 = vpop.f32.mrb[0].mxu0
      %v549 = vpop.f32.mrb[0].mxu0
      %v550 = vadd.f32 %v319, %v549
      %v551 = vpop.f32.mrb[0].mxu0
      %552 = vmatprep.mubr.bf16.mxu0 0
      %553 = vmatmul.mubr.bf16.gmra.mrb[0].mxu0 %v433
      %v554 = vpop.f32.mrb[0].mxu0
      %v555 = vadd.f32 %v319, %v554
      %v556 = vpop.f32.mrb[0].mxu0
      %v557 = vpop.f32.mrb[0].mxu0
      %v558 = vadd.f32 %v319, %v557
      %v559 = vpop.f32.mrb[0].mxu0
      %560 = vmatprep.mubr.bf16.mxu0 0
      %561 = vmatmul.mubr.bf16.gmra.mrb[0].mxu0 %v436
      %v562 = vpop.f32.mrb[0].mxu0
      %v563 = vadd.f32 %v319, %v562
      %v564 = vpop.f32.mrb[0].mxu0
      %v565 = vpop.f32.mrb[0].mxu0
      %v566 = vadd.f32 %v319, %v565
      %v567 = vpop.f32.mrb[0].mxu0
      %568 = vmatprep.mubr.bf16.mxu0 0
      %569 = vmatmul.mubr.bf16.gmra.mrb[0].mxu0 %v439
      %v570 = vpop.f32.mrb[0].mxu0
      %v571 = vadd.f32 %v319, %v570
      %v572 = vpop.f32.mrb[0].mxu0
      %v573 = vpop.f32.mrb[0].mxu0
      %v574 = vadd.f32 %v319, %v573
      %v575 = vpop.f32.mrb[0].mxu0
      %576 = vmatprep.mubr.bf16.mxu0 0
      %577 = vmatmul.mubr.bf16.gmra.mrb[0].mxu0 %v442
      %v578 = vpop.f32.mrb[0].mxu0
      %v579 = vadd.f32 %v319, %v578
      %v580 = vpop.f32.mrb[0].mxu0
      %v581 = vpop.f32.mrb[0].mxu0
      %v582 = vadd.f32 %v319, %v581
      %v583 = vpop.f32.mrb[0].mxu0
      %584 = vmatprep.mubr.bf16.mxu0 0
      %585 = vmatmul.mubr.bf16.gmra.mrb[0].mxu0 %v445
      %v586 = vpop.f32.mrb[0].mxu0
      %v587 = vadd.f32 %v319, %v586
      %v588 = vpop.f32.mrb[0].mxu0
      %v589 = vpop.f32.mrb[0].mxu0
      %v590 = vadd.f32 %v319, %v589
      %v591 = vpop.f32.mrb[0].mxu0
      %592 = vmatprep.mubr.bf16.mxu0 0
      %593 = vmatmul.mubr.bf16.gmra.mrb[0].mxu0 %v448
      %v594 = vpop.f32.mrb[0].mxu0
      %v595 = vadd.f32 %v319, %v594
      %v596 = vpop.f32.mrb[0].mxu0
      %v597 = vpop.f32.mrb[0].mxu0
      %v598 = vadd.f32 %v319, %v597
      %v599 = vpop.f32.mrb[0].mxu0
      %600 = vmatprep.mubr.bf16.mxu0 0
      %601 = vmatmul.mubr.bf16.gmra.mrb[0].mxu0 %v451
      %v602 = vpop.f32.mrb[0].mxu0
      %v603 = vadd.f32 %v319, %v602
      %v604 = vpop.f32.mrb[0].mxu0
      %v605 = vpop.f32.mrb[0].mxu0
      %v606 = vadd.f32 %v319, %v605
      %v607 = vpop.f32.mrb[0].mxu0
      %608 = vmatprep.mubr.bf16.mxu0 0
      %609 = vmatmul.mubr.bf16.gmra.mrb[0].mxu0 %v454
      %v610 = vpop.f32.mrb[0].mxu0
      %v611 = vadd.f32 %v319, %v610
      %v612 = vpop.f32.mrb[0].mxu0
      %v613 = vpop.f32.mrb[0].mxu0
      %v614 = vadd.f32 %v319, %v613
      %v615 = vpop.f32.mrb[0].mxu0
      %616 = vdwg.mxu0
      %v617 = vadd.f32 %v491, %v494
      %v618 = vadd.f32 %v617, %v499
      %v619 = vadd.f32 %v618, %v502
      %v620 = vadd.f32 %v619, %v507
      %v621 = vadd.f32 %v620, %v510
      %v622 = vadd.f32 %v621, %v515
      %v623 = vadd.f32 %v622, %v518
      %v624 = vadd.f32 %v623, %v523
      %v625 = vadd.f32 %v624, %v526
      %v626 = vadd.f32 %v625, %v531
      %v627 = vadd.f32 %v626, %v534
      %v628 = vadd.f32 %v627, %v539
      %v629 = vadd.f32 %v628, %v542
      %v630 = vadd.f32 %v629, %v547
      %v631 = vadd.f32 %v630, %v550
      %v632 = vadd.f32 %v631, %v555
      %v633 = vadd.f32 %v632, %v558
      %v634 = vadd.f32 %v633, %v563
      %v635 = vadd.f32 %v634, %v566
      %v636 = vadd.f32 %v635, %v571
      %v637 = vadd.f32 %v636, %v574
      %v638 = vadd.f32 %v637, %v579
      %v639 = vadd.f32 %v638, %v582
      %v640 = vadd.f32 %v639, %v587
      %v641 = vadd.f32 %v640, %v590
      %v642 = vadd.f32 %v641, %v595
      %v643 = vadd.f32 %v642, %v598
      %v644 = vadd.f32 %v643, %v603
      %v645 = vadd.f32 %v644, %v606
      %v646 = vadd.f32 %v645, %v611
      %v647 = vadd.f32 %v646, %v614
      %v648 = vrot.slane %v647, 4
      %v649 = vadd.f32 %v647, %v648
      %v650 = vrot.slane %v649, 2
      %v651 = vadd.f32 %v649, %v650
      %v652 = vrot.slane %v651, 1
      %v653 = vadd.f32 %v651, %v652
      %v654 = vld [vmem:[%s5] sm:$0xff]
      %v655 = vld [vmem:[%s5 + $0x8] sm:$0xff]
      %v656 = vld [vmem:[%s5 + $0x10] sm:$0xff]
      %v657 = vld [vmem:[%s5 + $0x18] sm:$0xff]
      %v658 = vld [vmem:[%s5 + $0x20] sm:$0xff]
      %v659 = vld [vmem:[%s5 + $0x28] sm:$0xff]
      %v660 = vld [vmem:[%s5 + $0x30] sm:$0xff]
      %v661 = vld [vmem:[%s5 + $0x38] sm:$0xff]
      %v662 = vld [vmem:[%s5 + $0x40] sm:$0xff]
      %v663 = vld [vmem:[%s5 + $0x48] sm:$0xff]
      %v664 = vld [vmem:[%s5 + $0x50] sm:$0xff]
      %v665 = vld [vmem:[%s5 + $0x58] sm:$0xff]
      %v666 = vld [vmem:[%s5 + $0x60] sm:$0xff]
      %v667 = vld [vmem:[%s5 + $0x68] sm:$0xff]
      %v668 = vld [vmem:[%s5 + $0x70] sm:$0xff]
      %v669 = vld [vmem:[%s5 + $0x78] sm:$0xff]
      %670 = vmatprep.subr.mxu0 0.0
      %671 = vmatpush1.msra.mxu0 %v654
      %672 = vmatprep.subr.mxu0 0.0
      %673 = vmatpush1.msra.mxu0 %v655
      %674 = vmatprep.subr.mxu0 0.0
      %675 = vmatpush1.msra.mxu0 %v656
      %676 = vmatprep.subr.mxu0 0.0
      %677 = vmatpush1.msra.mxu0 %v657
      %678 = vmatprep.subr.mxu0 0.0
      %679 = vmatpush1.msra.mxu0 %v658
      %680 = vmatprep.subr.mxu0 0.0
      %681 = vmatpush1.msra.mxu0 %v659
      %682 = vmatprep.subr.mxu0 0.0
      %683 = vmatpush1.msra.mxu0 %v660
      %684 = vmatprep.subr.mxu0 0.0
      %685 = vmatpush1.msra.mxu0 %v661
      %686 = vmatprep.subr.mxu0 0.0
      %687 = vmatpush1.msra.mxu0 %v662
      %688 = vmatprep.subr.mxu0 0.0
      %689 = vmatpush1.msra.mxu0 %v663
      %690 = vmatprep.subr.mxu0 0.0
      %691 = vmatpush1.msra.mxu0 %v664
      %692 = vmatprep.subr.mxu0 0.0
      %693 = vmatpush1.msra.mxu0 %v665
      %694 = vmatprep.subr.mxu0 0.0
      %695 = vmatpush1.msra.mxu0 %v666
      %696 = vmatprep.subr.mxu0 0.0
      %697 = vmatpush1.msra.mxu0 %v667
      %698 = vmatprep.subr.mxu0 0.0
      %699 = vmatpush1.msra.mxu0 %v668
      %700 = vmatprep.subr.mxu0 0.0
      %701 = vmatpush1.msra.mxu0 %v669
      %702 = vmatprep.subr.mxu0 0.0
      %703 = vmatpush1.msra.mxu0 0.0
      %704 = vmatprep.subr.mxu0 0.0
      %705 = vmatpush1.msra.mxu0 0.0
      %706 = vmatprep.subr.mxu0 0.0
      %707 = vmatpush1.msra.mxu0 0.0
      %708 = vmatprep.subr.mxu0 0.0
      %709 = vmatpush1.msra.mxu0 0.0
      %710 = vmatprep.subr.mxu0 0.0
      %711 = vmatpush1.msra.mxu0 0.0
      %712 = vmatprep.subr.mxu0 0.0
      %713 = vmatpush1.msra.mxu0 0.0
      %714 = vmatprep.subr.mxu0 0.0
      %715 = vmatpush1.msra.mxu0 0.0
      %716 = vmatprep.subr.mxu0 0.0
      %717 = vmatpush1.msra.mxu0 0.0
      %718 = vmatprep.subr.mxu0 0.0
      %719 = vmatpush1.msra.mxu0 0.0
      %720 = vmatprep.subr.mxu0 0.0
      %721 = vmatpush1.msra.mxu0 0.0
      %722 = vmatprep.subr.mxu0 0.0
      %723 = vmatpush1.msra.mxu0 0.0
      %724 = vmatprep.subr.mxu0 0.0
      %725 = vmatpush1.msra.mxu0 0.0
      %726 = vmatprep.subr.mxu0 0.0
      %727 = vmatpush1.msra.mxu0 0.0
      %728 = vmatprep.subr.mxu0 0.0
      %729 = vmatpush1.msra.mxu0 0.0
      %730 = vmatprep.subr.mxu0 0.0
      %731 = vmatpush1.msra.mxu0 0.0
      %732 = vmatprep.subr.mxu0 0.0
      %733 = vmatpush1.msra.mxu0 0.0
      %734 = vmatprep.mubr.f32.mxu0 0.0
      %735 = vmatmul.mubr.f32.gmra.mrb[0].mxu0 %v653
      %v736 = vpop.f32.mrb[0].mxu0
      %v737 = vadd.f32 0.0, %v736
      %v738 = vpop.f32.mrb[0].mxu0
      %739 = vdwg.mxu0
      %v740 = vmul.f32 %v737, 0.00048828125
      %v741 = vld [vmem:[%s6] sm:$0xf]
      %vm742 = vcmask 31744
      %v744 = vsel %vm742, %v740, 0
      %vm746 = vcmask 1043456
      %v748 = vsel %vm746, %v741, 0
      %750 = vmatprep.subr.mxu0 0.0
      %751 = vmatpush1.msra.mxu0 %v748
      %752 = vmatprep.subr.mxu0 0.0
      %753 = vmatpush1.msra.mxu0 0.0
      %754 = vmatprep.subr.mxu0 0.0
      %755 = vmatpush1.msra.mxu0 0.0
      %756 = vmatprep.subr.mxu0 0.0
      %757 = vmatpush1.msra.mxu0 0.0
      %758 = vmatprep.subr.mxu0 0.0
      %759 = vmatpush1.msra.mxu0 0.0
      %760 = vmatprep.subr.mxu0 0.0
      %761 = vmatpush1.msra.mxu0 0.0
      %762 = vmatprep.subr.mxu0 0.0
      %763 = vmatpush1.msra.mxu0 0.0
      %764 = vmatprep.subr.mxu0 0.0
      %765 = vmatpush1.msra.mxu0 0.0
      %766 = vmatprep.subr.mxu0 0.0
      %767 = vmatpush1.msra.mxu0 0.0
      %768 = vmatprep.subr.mxu0 0.0
      %769 = vmatpush1.msra.mxu0 0.0
      %770 = vmatprep.subr.mxu0 0.0
      %771 = vmatpush1.msra.mxu0 0.0
      %772 = vmatprep.subr.mxu0 0.0
      %773 = vmatpush1.msra.mxu0 0.0
      %774 = vmatprep.subr.mxu0 0.0
      %775 = vmatpush1.msra.mxu0 0.0
      %776 = vmatprep.subr.mxu0 0.0
      %777 = vmatpush1.msra.mxu0 0.0
      %778 = vmatprep.subr.mxu0 0.0
      %779 = vmatpush1.msra.mxu0 0.0
      %780 = vmatprep.subr.mxu0 0.0
      %781 = vmatpush1.msra.mxu0 0.0
      %782 = vmatprep.subr.mxu0 0.0
      %783 = vmatpush1.msra.mxu0 0.0
      %784 = vmatprep.subr.mxu0 0.0
      %785 = vmatpush1.msra.mxu0 0.0
      %786 = vmatprep.subr.mxu0 0.0
      %787 = vmatpush1.msra.mxu0 0.0
      %788 = vmatprep.subr.mxu0 0.0
      %789 = vmatpush1.msra.mxu0 0.0
      %790 = vmatprep.subr.mxu0 0.0
      %791 = vmatpush1.msra.mxu0 0.0
      %792 = vmatprep.subr.mxu0 0.0
      %793 = vmatpush1.msra.mxu0 0.0
      %794 = vmatprep.subr.mxu0 0.0
      %795 = vmatpush1.msra.mxu0 0.0
      %796 = vmatprep.subr.mxu0 0.0
      %797 = vmatpush1.msra.mxu0 0.0
      %798 = vmatprep.subr.mxu0 0.0
      %799 = vmatpush1.msra.mxu0 0.0
      %800 = vmatprep.subr.mxu0 0.0
      %801 = vmatpush1.msra.mxu0 0.0
      %802 = vmatprep.subr.mxu0 0.0
      %803 = vmatpush1.msra.mxu0 0.0
      %804 = vmatprep.subr.mxu0 0.0
      %805 = vmatpush1.msra.mxu0 0.0
      %806 = vmatprep.subr.mxu0 0.0
      %807 = vmatpush1.msra.mxu0 0.0
      %808 = vmatprep.subr.mxu0 0.0
      %809 = vmatpush1.msra.mxu0 0.0
      %810 = vmatprep.subr.mxu0 0.0
      %811 = vmatpush1.msra.mxu0 0.0
      %812 = vmatprep.subr.mxu0 0.0
      %813 = vmatpush1.msra.mxu0 0.0
      %814 = vmatprep.mubr.f32.mxu0 0.0
      %815 = vmatmul.mubr.f32.gmra.mrb[0].mxu0 %v744
      %v816 = vpop.f32.mrb[0].mxu0
      %v817 = vadd.f32 0.0, %v816
      %v818 = vpop.f32.mrb[0].mxu0
      %819 = vdwg.mxu0
      %v820 = vlaneseq
      %v821 = vshrl.u32 %v820, 7
      %v822 = vsub.s32 0, %v821
      %v823 = vrot.slane %v817, %v822
      %v824 = vsub.f32 %v491, %v823
      %v825 = vsub.f32 %v494, %v823
      %v826 = vsub.f32 %v499, %v823
      %v827 = vsub.f32 %v502, %v823
      %v828 = vsub.f32 %v507, %v823
      %v829 = vsub.f32 %v510, %v823
      %v830 = vsub.f32 %v515, %v823
      %v831 = vsub.f32 %v518, %v823
      %v832 = vsub.f32 %v523, %v823
      %v833 = vsub.f32 %v526, %v823
      %v834 = vsub.f32 %v531, %v823
      %v835 = vsub.f32 %v534, %v823
      %v836 = vsub.f32 %v539, %v823
      %v837 = vsub.f32 %v542, %v823
      %v838 = vsub.f32 %v547, %v823
      %v839 = vsub.f32 %v550, %v823
      %v840 = vsub.f32 %v555, %v823
      %v841 = vsub.f32 %v558, %v823
      %v842 = vsub.f32 %v563, %v823
      %v843 = vsub.f32 %v566, %v823
      %v844 = vsub.f32 %v571, %v823
      %v845 = vsub.f32 %v574, %v823
      %v846 = vsub.f32 %v579, %v823
      %v847 = vsub.f32 %v582, %v823
      %v848 = vsub.f32 %v587, %v823
      %v849 = vsub.f32 %v590, %v823
      %v850 = vsub.f32 %v595, %v823
      %v851 = vsub.f32 %v598, %v823
      %v852 = vsub.f32 %v603, %v823
      %v853 = vsub.f32 %v606, %v823
      %v854 = vsub.f32 %v611, %v823
      %v855 = vsub.f32 %v614, %v823
      %v856 = vmul.f32 %v824, %v824
      %v857 = vmul.f32 %v825, %v825
      %v858 = vmul.f32 %v826, %v826
      %v859 = vmul.f32 %v827, %v827
      %v860 = vmul.f32 %v828, %v828
      %v861 = vmul.f32 %v829, %v829
      %v862 = vmul.f32 %v830, %v830
      %v863 = vmul.f32 %v831, %v831
      %v864 = vmul.f32 %v832, %v832
      %v865 = vmul.f32 %v833, %v833
      %v866 = vmul.f32 %v834, %v834
      %v867 = vmul.f32 %v835, %v835
      %v868 = vmul.f32 %v836, %v836
      %v869 = vmul.f32 %v837, %v837
      %v870 = vmul.f32 %v838, %v838
      %v871 = vmul.f32 %v839, %v839
      %v872 = vmul.f32 %v840, %v840
      %v873 = vmul.f32 %v841, %v841
      %v874 = vmul.f32 %v842, %v842
      %v875 = vmul.f32 %v843, %v843
      %v876 = vmul.f32 %v844, %v844
      %v877 = vmul.f32 %v845, %v845
      %v878 = vmul.f32 %v846, %v846
      %v879 = vmul.f32 %v847, %v847
      %v880 = vmul.f32 %v848, %v848
      %v881 = vmul.f32 %v849, %v849
      %v882 = vmul.f32 %v850, %v850
      %v883 = vmul.f32 %v851, %v851
      %v884 = vmul.f32 %v852, %v852
      %v885 = vmul.f32 %v853, %v853
      %v886 = vmul.f32 %v854, %v854
      %v887 = vmul.f32 %v855, %v855
      %v888 = vadd.f32 %v856, %v857
      %v889 = vadd.f32 %v888, %v858
      %v890 = vadd.f32 %v889, %v859
      %v891 = vadd.f32 %v890, %v860
      %v892 = vadd.f32 %v891, %v861
      %v893 = vadd.f32 %v892, %v862
      %v894 = vadd.f32 %v893, %v863
      %v895 = vadd.f32 %v894, %v864
      %v896 = vadd.f32 %v895, %v865
      %v897 = vadd.f32 %v896, %v866
      %v898 = vadd.f32 %v897, %v867
      %v899 = vadd.f32 %v898, %v868
      %v900 = vadd.f32 %v899, %v869
      %v901 = vadd.f32 %v900, %v870
      %v902 = vadd.f32 %v901, %v871
      %v903 = vadd.f32 %v902, %v872
      %v904 = vadd.f32 %v903, %v873
      %v905 = vadd.f32 %v904, %v874
      %v906 = vadd.f32 %v905, %v875
      %v907 = vadd.f32 %v906, %v876
      %v908 = vadd.f32 %v907, %v877
      %v909 = vadd.f32 %v908, %v878
      %v910 = vadd.f32 %v909, %v879
      %v911 = vadd.f32 %v910, %v880
      %v912 = vadd.f32 %v911, %v881
      %v913 = vadd.f32 %v912, %v882
      %v914 = vadd.f32 %v913, %v883
      %v915 = vadd.f32 %v914, %v884
      %v916 = vadd.f32 %v915, %v885
      %v917 = vadd.f32 %v916, %v886
      %v918 = vadd.f32 %v917, %v887
      %v919 = vrot.slane %v918, 4
      %v920 = vadd.f32 %v918, %v919
      %v921 = vrot.slane %v920, 2
      %v922 = vadd.f32 %v920, %v921
      %v923 = vrot.slane %v922, 1
      %v924 = vadd.f32 %v922, %v923
      %925 = vmatprep.subr.mxu0 0.0
      %926 = vmatpush1.msra.mxu0 %v654
      %927 = vmatprep.subr.mxu0 0.0
      %928 = vmatpush1.msra.mxu0 %v655
      %929 = vmatprep.subr.mxu0 0.0
      %930 = vmatpush1.msra.mxu0 %v656
      %931 = vmatprep.subr.mxu0 0.0
      %932 = vmatpush1.msra.mxu0 %v657
      %933 = vmatprep.subr.mxu0 0.0
      %934 = vmatpush1.msra.mxu0 %v658
      %935 = vmatprep.subr.mxu0 0.0
      %936 = vmatpush1.msra.mxu0 %v659
      %937 = vmatprep.subr.mxu0 0.0
      %938 = vmatpush1.msra.mxu0 %v660
      %939 = vmatprep.subr.mxu0 0.0
      %940 = vmatpush1.msra.mxu0 %v661
      %941 = vmatprep.subr.mxu0 0.0
      %942 = vmatpush1.msra.mxu0 %v662
      %943 = vmatprep.subr.mxu0 0.0
      %944 = vmatpush1.msra.mxu0 %v663
      %945 = vmatprep.subr.mxu0 0.0
      %946 = vmatpush1.msra.mxu0 %v664
      %947 = vmatprep.subr.mxu0 0.0
      %948 = vmatpush1.msra.mxu0 %v665
      %949 = vmatprep.subr.mxu0 0.0
      %950 = vmatpush1.msra.mxu0 %v666
      %951 = vmatprep.subr.mxu0 0.0
      %952 = vmatpush1.msra.mxu0 %v667
      %953 = vmatprep.subr.mxu0 0.0
      %954 = vmatpush1.msra.mxu0 %v668
      %955 = vmatprep.subr.mxu0 0.0
      %956 = vmatpush1.msra.mxu0 %v669
      %957 = vmatprep.subr.mxu0 0.0
      %958 = vmatpush1.msra.mxu0 0.0
      %959 = vmatprep.subr.mxu0 0.0
      %960 = vmatpush1.msra.mxu0 0.0
      %961 = vmatprep.subr.mxu0 0.0
      %962 = vmatpush1.msra.mxu0 0.0
      %963 = vmatprep.subr.mxu0 0.0
      %964 = vmatpush1.msra.mxu0 0.0
      %965 = vmatprep.subr.mxu0 0.0
      %966 = vmatpush1.msra.mxu0 0.0
      %967 = vmatprep.subr.mxu0 0.0
      %968 = vmatpush1.msra.mxu0 0.0
      %969 = vmatprep.subr.mxu0 0.0
      %970 = vmatpush1.msra.mxu0 0.0
      %971 = vmatprep.subr.mxu0 0.0
      %972 = vmatpush1.msra.mxu0 0.0
      %973 = vmatprep.subr.mxu0 0.0
      %974 = vmatpush1.msra.mxu0 0.0
      %975 = vmatprep.subr.mxu0 0.0
      %976 = vmatpush1.msra.mxu0 0.0
      %977 = vmatprep.subr.mxu0 0.0
      %978 = vmatpush1.msra.mxu0 0.0
      %979 = vmatprep.subr.mxu0 0.0
      %980 = vmatpush1.msra.mxu0 0.0
      %981 = vmatprep.subr.mxu0 0.0
      %982 = vmatpush1.msra.mxu0 0.0
      %983 = vmatprep.subr.mxu0 0.0
      %984 = vmatpush1.msra.mxu0 0.0
      %985 = vmatprep.subr.mxu0 0.0
      %986 = vmatpush1.msra.mxu0 0.0
      %987 = vmatprep.subr.mxu0 0.0
      %988 = vmatpush1.msra.mxu0 0.0
      %989 = vmatprep.mubr.f32.mxu0 0.0
      %990 = vmatmul.mubr.f32.gmra.mrb[0].mxu0 %v924
      %v991 = vpop.f32.mrb[0].mxu0
      %v992 = vadd.f32 0.0, %v991
      %v993 = vpop.f32.mrb[0].mxu0
      %994 = vdwg.mxu0
      %v995 = vmul.f32 %v992, 0.00048828125
      %v996 = vadd.f32 %v995, 0.001
      %v997 = vrsqrt.pop %v996
      %v999 = vsel %vm742, %v997, 0
      %1001 = vmatprep.subr.mxu0 0.0
      %1002 = vmatpush1.msra.mxu0 %v748
      %1003 = vmatprep.subr.mxu0 0.0
      %1004 = vmatpush1.msra.mxu0 0.0
      %1005 = vmatprep.subr.mxu0 0.0
      %1006 = vmatpush1.msra.mxu0 0.0
      %1007 = vmatprep.subr.mxu0 0.0
      %1008 = vmatpush1.msra.mxu0 0.0
      %1009 = vmatprep.subr.mxu0 0.0
      %1010 = vmatpush1.msra.mxu0 0.0
      %1011 = vmatprep.subr.mxu0 0.0
      %1012 = vmatpush1.msra.mxu0 0.0
      %1013 = vmatprep.subr.mxu0 0.0
      %1014 = vmatpush1.msra.mxu0 0.0
      %1015 = vmatprep.subr.mxu0 0.0
      %1016 = vmatpush1.msra.mxu0 0.0
      %1017 = vmatprep.subr.mxu0 0.0
      %1018 = vmatpush1.msra.mxu0 0.0
      %1019 = vmatprep.subr.mxu0 0.0
      %1020 = vmatpush1.msra.mxu0 0.0
      %1021 = vmatprep.subr.mxu0 0.0
      %1022 = vmatpush1.msra.mxu0 0.0
      %1023 = vmatprep.subr.mxu0 0.0
      %1024 = vmatpush1.msra.mxu0 0.0
      %1025 = vmatprep.subr.mxu0 0.0
      %1026 = vmatpush1.msra.mxu0 0.0
      %1027 = vmatprep.subr.mxu0 0.0
      %1028 = vmatpush1.msra.mxu0 0.0
      %1029 = vmatprep.subr.mxu0 0.0
      %1030 = vmatpush1.msra.mxu0 0.0
      %1031 = vmatprep.subr.mxu0 0.0
      %1032 = vmatpush1.msra.mxu0 0.0
      %1033 = vmatprep.subr.mxu0 0.0
      %1034 = vmatpush1.msra.mxu0 0.0
      %1035 = vmatprep.subr.mxu0 0.0
      %1036 = vmatpush1.msra.mxu0 0.0
      %1037 = vmatprep.subr.mxu0 0.0
      %1038 = vmatpush1.msra.mxu0 0.0
      %1039 = vmatprep.subr.mxu0 0.0
      %1040 = vmatpush1.msra.mxu0 0.0
      %1041 = vmatprep.subr.mxu0 0.0
      %1042 = vmatpush1.msra.mxu0 0.0
      %1043 = vmatprep.subr.mxu0 0.0
      %1044 = vmatpush1.msra.mxu0 0.0
      %1045 = vmatprep.subr.mxu0 0.0
      %1046 = vmatpush1.msra.mxu0 0.0
      %1047 = vmatprep.subr.mxu0 0.0
      %1048 = vmatpush1.msra.mxu0 0.0
      %1049 = vmatprep.subr.mxu0 0.0
      %1050 = vmatpush1.msra.mxu0 0.0
      %1051 = vmatprep.subr.mxu0 0.0
      %1052 = vmatpush1.msra.mxu0 0.0
      %1053 = vmatprep.subr.mxu0 0.0
      %1054 = vmatpush1.msra.mxu0 0.0
      %1055 = vmatprep.subr.mxu0 0.0
      %1056 = vmatpush1.msra.mxu0 0.0
      %1057 = vmatprep.subr.mxu0 0.0
      %1058 = vmatpush1.msra.mxu0 0.0
      %1059 = vmatprep.subr.mxu0 0.0
      %1060 = vmatpush1.msra.mxu0 0.0
      %1061 = vmatprep.subr.mxu0 0.0
      %1062 = vmatpush1.msra.mxu0 0.0
      %1063 = vmatprep.subr.mxu0 0.0
      %1064 = vmatpush1.msra.mxu0 0.0
      %1065 = vmatprep.mubr.f32.mxu0 0.0
      %1066 = vmatmul.mubr.f32.gmra.mrb[0].mxu0 %v999
      %v1067 = vpop.f32.mrb[0].mxu0
      %v1068 = vadd.f32 0.0, %v1067
      %v1069 = vpop.f32.mrb[0].mxu0
      %1070 = vdwg.mxu0
      %v1071 = vld [vmem:[%s3] sm:$0x1]
      %v1072 = vmul.f32 %v1068, %v1071
      %v1073 = vld [vmem:[%s4] sm:$0x1]
      %v1074 = vmul.f32 %v817, %v1072
      %v1075 = vsub.f32 %v1073, %v1074
      %v1076 = vlaneseq
      %v1077 = vshrl.u32 %v1076, 7
      %v1078 = vsub.s32 0, %v1077
      %v1079 = vrot.slane %v1072, %v1078
      %v1080 = vmul.f32 %v491, %v1079
      %v1081 = vmul.f32 %v494, %v1079
      %v1082 = vmul.f32 %v499, %v1079
      %v1083 = vmul.f32 %v502, %v1079
      %v1084 = vmul.f32 %v507, %v1079
      %v1085 = vmul.f32 %v510, %v1079
      %v1086 = vmul.f32 %v515, %v1079
      %v1087 = vmul.f32 %v518, %v1079
      %v1088 = vmul.f32 %v523, %v1079
      %v1089 = vmul.f32 %v526, %v1079
      %v1090 = vmul.f32 %v531, %v1079
      %v1091 = vmul.f32 %v534, %v1079
      %v1092 = vmul.f32 %v539, %v1079
      %v1093 = vmul.f32 %v542, %v1079
      %v1094 = vmul.f32 %v547, %v1079
      %v1095 = vmul.f32 %v550, %v1079
      %v1096 = vmul.f32 %v555, %v1079
      %v1097 = vmul.f32 %v558, %v1079
      %v1098 = vmul.f32 %v563, %v1079
      %v1099 = vmul.f32 %v566, %v1079
      %v1100 = vmul.f32 %v571, %v1079
      %v1101 = vmul.f32 %v574, %v1079
      %v1102 = vmul.f32 %v579, %v1079
      %v1103 = vmul.f32 %v582, %v1079
      %v1104 = vmul.f32 %v587, %v1079
      %v1105 = vmul.f32 %v590, %v1079
      %v1106 = vmul.f32 %v595, %v1079
      %v1107 = vmul.f32 %v598, %v1079
      %v1108 = vmul.f32 %v603, %v1079
      %v1109 = vmul.f32 %v606, %v1079
      %v1110 = vmul.f32 %v611, %v1079
      %v1111 = vmul.f32 %v614, %v1079
      %v1113 = vlaneseq
      %v1114 = vshrl.u32 %v1113, 7
      %v1115 = vsub.s32 0, %v1114
      %v1116 = vrot.slane %v1075, %v1115
      %v1118 = vadd.f32 %v1080, %v1116
      %v1119 = vadd.f32 %v1081, %v1116
      %v1120 = vadd.f32 %v1082, %v1116
      %v1121 = vadd.f32 %v1083, %v1116
      %v1122 = vadd.f32 %v1084, %v1116
      %v1123 = vadd.f32 %v1085, %v1116
      %v1124 = vadd.f32 %v1086, %v1116
      %v1125 = vadd.f32 %v1087, %v1116
      %v1126 = vadd.f32 %v1088, %v1116
      %v1127 = vadd.f32 %v1089, %v1116
      %v1128 = vadd.f32 %v1090, %v1116
      %v1129 = vadd.f32 %v1091, %v1116
      %v1130 = vadd.f32 %v1092, %v1116
      %v1131 = vadd.f32 %v1093, %v1116
      %v1132 = vadd.f32 %v1094, %v1116
      %v1133 = vadd.f32 %v1095, %v1116
      %v1134 = vadd.f32 %v1096, %v1116
      %v1135 = vadd.f32 %v1097, %v1116
      %v1136 = vadd.f32 %v1098, %v1116
      %v1137 = vadd.f32 %v1099, %v1116
      %v1138 = vadd.f32 %v1100, %v1116
      %v1139 = vadd.f32 %v1101, %v1116
      %v1140 = vadd.f32 %v1102, %v1116
      %v1141 = vadd.f32 %v1103, %v1116
      %v1142 = vadd.f32 %v1104, %v1116
      %v1143 = vadd.f32 %v1105, %v1116
      %v1144 = vadd.f32 %v1106, %v1116
      %v1145 = vadd.f32 %v1107, %v1116
      %v1146 = vadd.f32 %v1108, %v1116
      %v1147 = vadd.f32 %v1109, %v1116
      %v1148 = vadd.f32 %v1110, %v1116
      %v1149 = vadd.f32 %v1111, %v1116
      %v1150 = vmax.f32 %v1118, 0.0
      %v1151 = vmax.f32 %v1119, 0.0
      %v1152 = vmax.f32 %v1120, 0.0
      %v1153 = vmax.f32 %v1121, 0.0
      %v1154 = vmax.f32 %v1122, 0.0
      %v1155 = vmax.f32 %v1123, 0.0
      %v1156 = vmax.f32 %v1124, 0.0
      %v1157 = vmax.f32 %v1125, 0.0
      %v1158 = vmax.f32 %v1126, 0.0
      %v1159 = vmax.f32 %v1127, 0.0
      %v1160 = vmax.f32 %v1128, 0.0
      %v1161 = vmax.f32 %v1129, 0.0
      %v1162 = vmax.f32 %v1130, 0.0
      %v1163 = vmax.f32 %v1131, 0.0
      %v1164 = vmax.f32 %v1132, 0.0
      %v1165 = vmax.f32 %v1133, 0.0
      %v1166 = vmax.f32 %v1134, 0.0
      %v1167 = vmax.f32 %v1135, 0.0
      %v1168 = vmax.f32 %v1136, 0.0
      %v1169 = vmax.f32 %v1137, 0.0
      %v1170 = vmax.f32 %v1138, 0.0
      %v1171 = vmax.f32 %v1139, 0.0
      %v1172 = vmax.f32 %v1140, 0.0
      %v1173 = vmax.f32 %v1141, 0.0
      %v1174 = vmax.f32 %v1142, 0.0
      %v1175 = vmax.f32 %v1143, 0.0
      %v1176 = vmax.f32 %v1144, 0.0
      %v1177 = vmax.f32 %v1145, 0.0
      %v1178 = vmax.f32 %v1146, 0.0
      %v1179 = vmax.f32 %v1147, 0.0
      %v1180 = vmax.f32 %v1148, 0.0
      %v1181 = vmax.f32 %v1149, 0.0
      %1182 = vst [vmem:[%s278] sm:$0xff] %v1150
      %1183 = vst [vmem:[%s278 + $0x8] sm:$0xff] %v1151
      %1184 = vst [vmem:[%s278 + $0x10] sm:$0xff] %v1152
      %1185 = vst [vmem:[%s278 + $0x18] sm:$0xff] %v1153
      %1186 = vst [vmem:[%s278 + $0x20] sm:$0xff] %v1154
      %1187 = vst [vmem:[%s278 + $0x28] sm:$0xff] %v1155
      %1188 = vst [vmem:[%s278 + $0x30] sm:$0xff] %v1156
      %1189 = vst [vmem:[%s278 + $0x38] sm:$0xff] %v1157
      %1190 = vst [vmem:[%s278 + $0x40] sm:$0xff] %v1158
      %1191 = vst [vmem:[%s278 + $0x48] sm:$0xff] %v1159
      %1192 = vst [vmem:[%s278 + $0x50] sm:$0xff] %v1160
      %1193 = vst [vmem:[%s278 + $0x58] sm:$0xff] %v1161
      %1194 = vst [vmem:[%s278 + $0x60] sm:$0xff] %v1162
      %1195 = vst [vmem:[%s278 + $0x68] sm:$0xff] %v1163
      %1196 = vst [vmem:[%s278 + $0x70] sm:$0xff] %v1164
      %1197 = vst [vmem:[%s278 + $0x78] sm:$0xff] %v1165
      %1198 = vst [vmem:[%s278 + $0x80] sm:$0xff] %v1166
      %1199 = vst [vmem:[%s278 + $0x88] sm:$0xff] %v1167
      %1200 = vst [vmem:[%s278 + $0x90] sm:$0xff] %v1168
      %1201 = vst [vmem:[%s278 + $0x98] sm:$0xff] %v1169
      %1202 = vst [vmem:[%s278 + $0xa0] sm:$0xff] %v1170
      %1203 = vst [vmem:[%s278 + $0xa8] sm:$0xff] %v1171
      %1204 = vst [vmem:[%s278 + $0xb0] sm:$0xff] %v1172
      %1205 = vst [vmem:[%s278 + $0xb8] sm:$0xff] %v1173
      %1206 = vst [vmem:[%s278 + $0xc0] sm:$0xff] %v1174
      %1207 = vst [vmem:[%s278 + $0xc8] sm:$0xff] %v1175
      %1208 = vst [vmem:[%s278 + $0xd0] sm:$0xff] %v1176
      %1209 = vst [vmem:[%s278 + $0xd8] sm:$0xff] %v1177
      %1210 = vst [vmem:[%s278 + $0xe0] sm:$0xff] %v1178
      %1211 = vst [vmem:[%s278 + $0xe8] sm:$0xff] %v1179
      %1212 = vst [vmem:[%s278 + $0xf0] sm:$0xff] %v1180
      %1213 = vst [vmem:[%s278 + $0xf8] sm:$0xff] %v1181
      %p1214 = scmp.lt.s32.totalorder %s18, 1
      %s1215 = scalar_select %p1214, %s18, 1
      %s1216 = smul.addr %s1215, 32
      %s1217 = smul.addr %s1216, 8
      %s1218 = scalar_lea.vmem %s7, %s1217
      // Predicated region
      $region49: #{inception_b_forward.6} parent=47 // pred_check
        %p1219 = pneg %p188
      $region50: #{inception_b_forward.6} parent=47 // pred_check_branch
        %1221 = sbr.rel (%p1219) target = $region52
      $region51: #{inception_b_forward.6} parent=47 // pred_region
        _
      $region52: #{inception_b_forward.6} parent=47 // pred_fallthru
        _
    $region48: #{inception_b_forward.6} parent=5 // pred_fallthru
      _
    %p1222 = scmp.le.s32.totalorder 2, %s13
    // Predicated region
    $region53: #{inception_b_forward.6} parent=5 // pred_check
      %p1223 = pneg %p1222
    $region54: #{inception_b_forward.6} parent=5 // pred_check_branch
      %1225 = sbr.rel (%p1223) target = $region56
    $region55: #{inception_b_forward.6} parent=5 // pred_region
      %s1226 = ssub.s32 %s13, 2
      // Predicated region
      $region57: #{inception_b_forward.6} parent=55 // pred_check
        %p1227 = pneg %p194
      $region58: #{inception_b_forward.6} parent=55 // pred_check_branch
        %1229 = sbr.rel (%p1227) target = $region60
      $region59: #{inception_b_forward.6} parent=55 // pred_region
        %p1230 = scmp.lt.s32.totalorder %s19, 1
        %s1231 = scalar_select %p1230, %s19, 1
        %s1232 = smul.addr %s1231, 32
        %s1233 = smul.addr %s1232, 8
        %s1234 = scalar_lea.vmem %s7, %s1233
      $region60: #{inception_b_forward.6} parent=55 // pred_fallthru
        _
    $region56: #{inception_b_forward.6} parent=5 // pred_fallthru
      _
  $region6: #{inception_b_forward.6} parent=0 // loop_footer
    %s17 = sadd.s32 1, %s13
  $region7: #{inception_b_forward.6} parent=0 // loop_footer_branch
    %12 = sbr.rel target = $region3
  $region8: #{inception_b_forward.6} parent=0 // loop_exit
    _

// kernel: inception_b_forward.7
$region0: #{inception_b_forward.7}
  #allocation0 [shape = 'u32[]', space=smem, size = 0x4, offset = 0x4, fixed_abs, tag = 'smem constant byte address 0x4 - core index']
  #allocation1 [shape = 'u32[144,128]{1,0:T(1,128)}', space=vmem, size = 0x12000, scoped, tag = 'internal scratch']
  %s0 = inlined_call_operand.vmem [shape: bf16[2,256,288], index: 0, kind: input, shape index: {}]
  %s1 = inlined_call_operand.vmem [shape: bf16[288,128], index: 1, kind: input, shape index: {}]
  %s2 = inlined_call_operand.vmem [shape: f32[1,128], index: 2, kind: input, shape index: {}]
  %s3 = inlined_call_operand.vmem [shape: f32[1,128], index: 3, kind: input, shape index: {}]
  %s4 = inlined_call_operand.vmem [shape: f32[1,128], index: 4, kind: input, shape index: {}]
  %s5 = inlined_call_operand.vmem [shape: f32[128,4], index: 5, kind: input, shape index: {}]
  %s6 = inlined_call_operand.vmem [shape: f32[4,128], index: 6, kind: input, shape index: {}]
  %s7 = inlined_call_operand.vmem [shape: f32[2,256,128], index: 7, kind: output, shape index: {}]
  %s8 = sld [smem:[#allocation0]]
  $region61: #{inception_b_forward.7} parent=0
    _
  %s10 = ssub.s32 1, %s8
  %s11 = scalar_select 0, %s10, %s8
  loop: start=0, step=1, limit=4
  $region2: #{inception_b_forward.7} parent=0 // loop_pre_header
    _
  $region3: #{inception_b_forward.7} parent=0 // loop_header
    %s13 = sphi 0, %s17
    %p14 = scmp.ge.s32.totalorder %s13, 4
    %s23 = sphi 0, %s25
    %s26 = sphi 0, %s23
    %s27 = sphi 0, %s26
    %s43 = sphi 0, %s27
    %s47 = sphi 0, %s47
    %s49 = sphi 0, %s47
    %s50 = sphi 0, %s49
    %s64 = sphi 0, %s50
    %s68 = sphi 0, %s68
    %s70 = sphi 0, %s68
    %s71 = sphi 0, %s70
    %s85 = sphi 0, %s71
    %s89 = sphi 0, %s89
    %s91 = sphi 0, %s89
    %s92 = sphi 0, %s91
    %s106 = sphi 0, %s92
    %s110 = sphi 0, %s110
    %s112 = sphi 0, %s110
    %s113 = sphi 0, %s112
    %s127 = sphi 0, %s113
    %s131 = sphi 0, %s131
    %s133 = sphi 0, %s131
    %s134 = sphi 0, %s133
    %s148 = sphi 0, %s134
    %s152 = sphi 0, %s152
    %s154 = sphi 0, %s152
    %s155 = sphi 0, %s154
    %s169 = sphi 0, %s155
    %s175 = sphi 0, %s177
    %s178 = sphi 0, %s175
    %s179 = sphi 0, %s178
    %s195 = sphi 0, %s179
  $region4: #{inception_b_forward.7} parent=0 // loop_header_branch
    %16 = sbr.rel (%p14) target = $region8
  $region5: #{inception_b_forward.7} parent=0 // loop_body
    %s18 = ssub.s32 %s13, 1
    %s19 = ssub.s32 %s13, 2
    %s20 = sadd.s32 %s13, 1
    %s21 = ssub.s32 %s13, %s20
    %p22 = scmp.eq.s32.totalorder %s21, 0
    %s24 = sadd.s32 %s23, 1
    %s25 = scalar_select %p22, %s23, %s24
    %p28 = pneg %p22
    %p29 = scmp.eq.s32.totalorder %s13, 1
    %p30 = por %p28, %p29
    %p31 = scmp.ne.s32.totalorder %s23, %s26
    %p32 = scmp.eq.s32.totalorder %s13, 0
    %p33 = por %p31, %p32
    %p34 = scmp.ne.s32.totalorder %s23, %s26
    %p35 = scmp.eq.s32.totalorder %s18, 1
    %p36 = por %p34, %p35
    %p37 = scmp.ne.s32.totalorder %s26, %s27
    %p38 = scmp.eq.s32.totalorder %s18, 0
    %p39 = por %p37, %p38
    %p40 = scmp.ne.s32.totalorder %s26, %s27
    %p41 = scmp.eq.s32.totalorder %s19, 1
    %p42 = por %p40, %p41
    %p44 = scmp.ne.s32.totalorder %s27, %s43
    %p45 = scmp.eq.s32.totalorder %s19, 0
    %p46 = por %p44, %p45
    %s48 = sadd.s32 %s47, 1
    %p51 = scmp.eq.s32.totalorder %s13, 1
    %p52 = scmp.ne.s32.totalorder %s47, %s49
    %p53 = scmp.eq.s32.totalorder %s13, 0
    %p54 = por %p52, %p53
    %p55 = scmp.ne.s32.totalorder %s47, %s49
    %p56 = scmp.eq.s32.totalorder %s18, 1
    %p57 = por %p55, %p56
    %p58 = scmp.ne.s32.totalorder %s49, %s50
    %p59 = scmp.eq.s32.totalorder %s18, 0
    %p60 = por %p58, %p59
    %p61 = scmp.ne.s32.totalorder %s49, %s50
    %p62 = scmp.eq.s32.totalorder %s19, 1
    %p63 = por %p61, %p62
    %p65 = scmp.ne.s32.totalorder %s50, %s64
    %p66 = scmp.eq.s32.totalorder %s19, 0
    %p67 = por %p65, %p66
    %s69 = sadd.s32 %s68, 1
    %p72 = scmp.eq.s32.totalorder %s13, 1
    %p73 = scmp.ne.s32.totalorder %s68, %s70
    %p74 = scmp.eq.s32.totalorder %s13, 0
    %p75 = por %p73, %p74
    %p76 = scmp.ne.s32.totalorder %s68, %s70
    %p77 = scmp.eq.s32.totalorder %s18, 1
    %p78 = por %p76, %p77
    %p79 = scmp.ne.s32.totalorder %s70, %s71
    %p80 = scmp.eq.s32.totalorder %s18, 0
    %p81 = por %p79, %p80
    %p82 = scmp.ne.s32.totalorder %s70, %s71
    %p83 = scmp.eq.s32.totalorder %s19, 1
    %p84 = por %p82, %p83
    %p86 = scmp.ne.s32.totalorder %s71, %s85
    %p87 = scmp.eq.s32.totalorder %s19, 0
    %p88 = por %p86, %p87
    %s90 = sadd.s32 %s89, 1
    %p93 = scmp.eq.s32.totalorder %s13, 1
    %p94 = scmp.ne.s32.totalorder %s89, %s91
    %p95 = scmp.eq.s32.totalorder %s13, 0
    %p96 = por %p94, %p95
    %p97 = scmp.ne.s32.totalorder %s89, %s91
    %p98 = scmp.eq.s32.totalorder %s18, 1
    %p99 = por %p97, %p98
    %p100 = scmp.ne.s32.totalorder %s91, %s92
    %p101 = scmp.eq.s32.totalorder %s18, 0
    %p102 = por %p100, %p101
    %p103 = scmp.ne.s32.totalorder %s91, %s92
    %p104 = scmp.eq.s32.totalorder %s19, 1
    %p105 = por %p103, %p104
    %p107 = scmp.ne.s32.totalorder %s92, %s106
    %p108 = scmp.eq.s32.totalorder %s19, 0
    %p109 = por %p107, %p108
    %s111 = sadd.s32 %s110, 1
    %p114 = scmp.eq.s32.totalorder %s13, 1
    %p115 = scmp.ne.s32.totalorder %s110, %s112
    %p116 = scmp.eq.s32.totalorder %s13, 0
    %p117 = por %p115, %p116
    %p118 = scmp.ne.s32.totalorder %s110, %s112
    %p119 = scmp.eq.s32.totalorder %s18, 1
    %p120 = por %p118, %p119
    %p121 = scmp.ne.s32.totalorder %s112, %s113
    %p122 = scmp.eq.s32.totalorder %s18, 0
    %p123 = por %p121, %p122
    %p124 = scmp.ne.s32.totalorder %s112, %s113
    %p125 = scmp.eq.s32.totalorder %s19, 1
    %p126 = por %p124, %p125
    %p128 = scmp.ne.s32.totalorder %s113, %s127
    %p129 = scmp.eq.s32.totalorder %s19, 0
    %p130 = por %p128, %p129
    %s132 = sadd.s32 %s131, 1
    %p135 = scmp.eq.s32.totalorder %s13, 1
    %p136 = scmp.ne.s32.totalorder %s131, %s133
    %p137 = scmp.eq.s32.totalorder %s13, 0
    %p138 = por %p136, %p137
    %p139 = scmp.ne.s32.totalorder %s131, %s133
    %p140 = scmp.eq.s32.totalorder %s18, 1
    %p141 = por %p139, %p140
    %p142 = scmp.ne.s32.totalorder %s133, %s134
    %p143 = scmp.eq.s32.totalorder %s18, 0
    %p144 = por %p142, %p143
    %p145 = scmp.ne.s32.totalorder %s133, %s134
    %p146 = scmp.eq.s32.totalorder %s19, 1
    %p147 = por %p145, %p146
    %p149 = scmp.ne.s32.totalorder %s134, %s148
    %p150 = scmp.eq.s32.totalorder %s19, 0
    %p151 = por %p149, %p150
    %s153 = sadd.s32 %s152, 1
    %p156 = scmp.eq.s32.totalorder %s13, 1
    %p157 = scmp.ne.s32.totalorder %s152, %s154
    %p158 = scmp.eq.s32.totalorder %s13, 0
    %p159 = por %p157, %p158
    %p160 = scmp.ne.s32.totalorder %s152, %s154
    %p161 = scmp.eq.s32.totalorder %s18, 1
    %p162 = por %p160, %p161
    %p163 = scmp.ne.s32.totalorder %s154, %s155
    %p164 = scmp.eq.s32.totalorder %s18, 0
    %p165 = por %p163, %p164
    %p166 = scmp.ne.s32.totalorder %s154, %s155
    %p167 = scmp.eq.s32.totalorder %s19, 1
    %p168 = por %p166, %p167
    %p170 = scmp.ne.s32.totalorder %s155, %s169
    %p171 = scmp.eq.s32.totalorder %s19, 0
    %p172 = por %p170, %p171
    %s173 = ssub.s32 %s13, %s20
    %p174 = scmp.eq.s32.totalorder %s173, 0
    %s176 = sadd.s32 %s175, 1
    %s177 = scalar_select %p174, %s175, %s176
    %p180 = pneg %p174
    %p181 = scmp.eq.s32.totalorder %s13, 1
    %p182 = por %p180, %p181
    %p183 = scmp.ne.s32.totalorder %s175, %s178
    %p184 = scmp.eq.s32.totalorder %s13, 0
    %p185 = por %p183, %p184
    %p186 = scmp.ne.s32.totalorder %s175, %s178
    %p187 = scmp.eq.s32.totalorder %s18, 1
    %p188 = por %p186, %p187
    %p189 = scmp.ne.s32.totalorder %s178, %s179
    %p190 = scmp.eq.s32.totalorder %s18, 0
    %p191 = por %p189, %p190
    %p192 = scmp.ne.s32.totalorder %s178, %s179
    %p193 = scmp.eq.s32.totalorder %s19, 1
    %p194 = por %p192, %p193
    %p196 = scmp.ne.s32.totalorder %s179, %s195
    %p197 = scmp.eq.s32.totalorder %s19, 0
    %p198 = por %p196, %p197
    %p199 = scmp.le.s32.totalorder 1, %s13
    %p200 = scmp.lt.s32.totalorder %s13, 3
    %p201 = pnand %p199, %p200
    %p202 = pneg %p201
    // Predicated region
    $region9: #{inception_b_forward.7} parent=5 // pred_check
      _
    $region10: #{inception_b_forward.7} parent=5 // pred_check_branch
      %204 = sbr.rel (%p201) target = $region12
    $region11: #{inception_b_forward.7} parent=5 // pred_region
      %s205 = ssub.s32 %s13, 1
      // Predicated region
      $region13: #{inception_b_forward.7} parent=11 // pred_check
        %p206 = pneg %p60
      $region14: #{inception_b_forward.7} parent=11 // pred_check_branch
        %208 = sbr.rel (%p206) target = $region16
      $region15: #{inception_b_forward.7} parent=11 // pred_region
        _
      $region16: #{inception_b_forward.7} parent=11 // pred_fallthru
        _
      // Predicated region
      $region17: #{inception_b_forward.7} parent=11 // pred_check
        %p209 = pneg %p81
      $region18: #{inception_b_forward.7} parent=11 // pred_check_branch
        %211 = sbr.rel (%p209) target = $region20
      $region19: #{inception_b_forward.7} parent=11 // pred_region
        _
      $region20: #{inception_b_forward.7} parent=11 // pred_fallthru
        _
      // Predicated region
      $region21: #{inception_b_forward.7} parent=11 // pred_check
        %p212 = pneg %p102
      $region22: #{inception_b_forward.7} parent=11 // pred_check_branch
        %214 = sbr.rel (%p212) target = $region24
      $region23: #{inception_b_forward.7} parent=11 // pred_region
        _
      $region24: #{inception_b_forward.7} parent=11 // pred_fallthru
        _
      // Predicated region
      $region25: #{inception_b_forward.7} parent=11 // pred_check
        %p215 = pneg %p123
      $region26: #{inception_b_forward.7} parent=11 // pred_check_branch
        %217 = sbr.rel (%p215) target = $region28
      $region27: #{inception_b_forward.7} parent=11 // pred_region
        _
      $region28: #{inception_b_forward.7} parent=11 // pred_fallthru
        _
      // Predicated region
      $region29: #{inception_b_forward.7} parent=11 // pred_check
        %p218 = pneg %p144
      $region30: #{inception_b_forward.7} parent=11 // pred_check_branch
        %220 = sbr.rel (%p218) target = $region32
      $region31: #{inception_b_forward.7} parent=11 // pred_region
        _
      $region32: #{inception_b_forward.7} parent=11 // pred_fallthru
        _
      // Predicated region
      $region33: #{inception_b_forward.7} parent=11 // pred_check
        %p221 = pneg %p165
      $region34: #{inception_b_forward.7} parent=11 // pred_check_branch
        %223 = sbr.rel (%p221) target = $region36
      $region35: #{inception_b_forward.7} parent=11 // pred_region
        _
      $region36: #{inception_b_forward.7} parent=11 // pred_fallthru
        _
    $region12: #{inception_b_forward.7} parent=5 // pred_fallthru
      _
    %p224 = scmp.lt.s32.totalorder %s13, 2
    // Predicated region
    $region37: #{inception_b_forward.7} parent=5 // pred_check
      %p225 = pneg %p224
    $region38: #{inception_b_forward.7} parent=5 // pred_check_branch
      %227 = sbr.rel (%p225) target = $region40
    $region39: #{inception_b_forward.7} parent=5 // pred_region
      // Predicated region
      $region41: #{inception_b_forward.7} parent=39 // pred_check
        %p228 = pneg %p33
      $region42: #{inception_b_forward.7} parent=39 // pred_check_branch
        %230 = sbr.rel (%p228) target = $region44
      $region43: #{inception_b_forward.7} parent=39 // pred_region
        %p231 = scmp.lt.s32.totalorder %s13, 1
        %s232 = scalar_select %p231, %s13, 1
        %s233 = smul.addr %s232, 96
        %s234 = smul.addr %s233, 4
        %s235 = scalar_lea.vmem %s0, %s234
      $region44: #{inception_b_forward.7} parent=39 // pred_fallthru
        _
    $region40: #{inception_b_forward.7} parent=5 // pred_fallthru
      _
    %p236 = scmp.le.s32.totalorder 1, %s13
    %p237 = scmp.lt.s32.totalorder %s13, 3
    %p238 = pnand %p236, %p237
    %p239 = pneg %p238
    // Predicated region
    $region45: #{inception_b_forward.7} parent=5 // pred_check
      _
    $region46: #{inception_b_forward.7} parent=5 // pred_check_branch
      %241 = sbr.rel (%p238) target = $region48
    $region47: #{inception_b_forward.7} parent=5 // pred_region
      %s242 = ssub.s32 %s13, 1
      %p243 = scmp.lt.s32.totalorder %s18, 1
      %s244 = scalar_select %p243, %s18, 1
      %s245 = smul.addr %s244, 96
      %s246 = smul.addr %s245, 4
      %s247 = scalar_lea.vmem %s0, %s246
      %p248 = pneg %p39
      %p249 = pneg %p36
      %p250 = pneg %p60
      %p251 = pneg %p57
      %p252 = pneg %p81
      %p253 = pneg %p78
      %p254 = pneg %p102
      %p255 = pneg %p99
      %p256 = pneg %p123
      %p257 = pneg %p120
      %p258 = pneg %p144
      %p259 = pneg %p141
      %p260 = pneg %p165
      %p261 = pneg %p162
      %p262 = pneg %p191
      %p263 = pneg %p188
      %p264 = scmp.lt.s32.totalorder %s18, 1
      %s265 = scalar_select %p264, %s18, 1
      %s266 = smul.addr %s265, 32
      %s267 = smul.addr %s266, 8
      %s268 = scalar_lea.vmem %s7, %s267
      %p269 = scmp.lt.s32.totalorder %s18, 1
      %s270 = scalar_select %p269, %s18, 1
      %s271 = smul.addr %s270, 96
      %s272 = smul.addr %s271, 4
      %s273 = scalar_lea.vmem %s0, %s272
      %p274 = scmp.lt.s32.totalorder %s18, 1
      %s275 = scalar_select %p274, %s18, 1
      %s276 = smul.addr %s275, 32
      %s277 = smul.addr %s276, 8
      %s278 = scalar_lea.vmem %s7, %s277
      %v280 = vld [vmem:[%s273] sm:$0xff]
      %v281 = vld [vmem:[%s273 + $0x8] sm:$0xf]
      %v282 = vld [vmem:[%s273 + $0xc] sm:$0xff]
      %v283 = vld [vmem:[%s273 + $0x14] sm:$0xf]
      %v284 = vld [vmem:[%s273 + $0x18] sm:$0xff]
      %v285 = vld [vmem:[%s273 + $0x20] sm:$0xf]
      %v286 = vld [vmem:[%s273 + $0x24] sm:$0xff]
      %v287 = vld [vmem:[%s273 + $0x2c] sm:$0xf]
      %v288 = vld [vmem:[%s273 + $0x30] sm:$0xff]
      %v289 = vld [vmem:[%s273 + $0x38] sm:$0xf]
      %v290 = vld [vmem:[%s273 + $0x3c] sm:$0xff]
      %v291 = vld [vmem:[%s273 + $0x44] sm:$0xf]
      %v292 = vld [vmem:[%s273 + $0x48] sm:$0xff]
      %v293 = vld [vmem:[%s273 + $0x50] sm:$0xf]
      %v294 = vld [vmem:[%s273 + $0x54] sm:$0xff]
      %v295 = vld [vmem:[%s273 + $0x5c] sm:$0xf]
      %v296 = vld [vmem:[%s273 + $0x60] sm:$0xff]
      %v297 = vld [vmem:[%s273 + $0x68] sm:$0xf]
      %v298 = vld [vmem:[%s273 + $0x6c] sm:$0xff]
      %v299 = vld [vmem:[%s273 + $0x74] sm:$0xf]
      %v300 = vld [vmem:[%s273 + $0x78] sm:$0xff]
      %v301 = vld [vmem:[%s273 + $0x80] sm:$0xf]
      %v302 = vld [vmem:[%s273 + $0x84] sm:$0xff]
      %v303 = vld [vmem:[%s273 + $0x8c] sm:$0xf]
      %v304 = vld [vmem:[%s273 + $0x90] sm:$0xff]
      %v305 = vld [vmem:[%s273 + $0x98] sm:$0xf]
      %v306 = vld [vmem:[%s273 + $0x9c] sm:$0xff]
      %v307 = vld [vmem:[%s273 + $0xa4] sm:$0xf]
      %v308 = vld [vmem:[%s273 + $0xa8] sm:$0xff]
      %v309 = vld [vmem:[%s273 + $0xb0] sm:$0xf]
      %v310 = vld [vmem:[%s273 + $0xb4] sm:$0xff]
      %v311 = vld [vmem:[%s273 + $0xbc] sm:$0xf]
      %v312 = vld [vmem:[%s273 + $0xc0] sm:$0xff]
      %v313 = vld [vmem:[%s273 + $0xc8] sm:$0xf]
      %v314 = vld [vmem:[%s273 + $0xcc] sm:$0xff]
      %v315 = vld [vmem:[%s273 + $0xd4] sm:$0xf]
      %v316 = vld [vmem:[%s273 + $0xd8] sm:$0xff]
      %v317 = vld [vmem:[%s273 + $0xe0] sm:$0xf]
      %v318 = vld [vmem:[%s273 + $0xe4] sm:$0xff]
      %v319 = vld [vmem:[%s273 + $0xec] sm:$0xf]
      %v320 = vld [vmem:[%s273 + $0xf0] sm:$0xff]
      %v321 = vld [vmem:[%s273 + $0xf8] sm:$0xf]
      %v322 = vld [vmem:[%s273 + $0xfc] sm:$0xff]
      %v323 = vld [vmem:[%s273 + $0x104] sm:$0xf]
      %v324 = vld [vmem:[%s273 + $0x108] sm:$0xff]
      %v325 = vld [vmem:[%s273 + $0x110] sm:$0xf]
      %v326 = vld [vmem:[%s273 + $0x114] sm:$0xff]
      %v327 = vld [vmem:[%s273 + $0x11c] sm:$0xf]
      %v328 = vld [vmem:[%s273 + $0x120] sm:$0xff]
      %v329 = vld [vmem:[%s273 + $0x128] sm:$0xf]
      %v330 = vld [vmem:[%s273 + $0x12c] sm:$0xff]
      %v331 = vld [vmem:[%s273 + $0x134] sm:$0xf]
      %v332 = vld [vmem:[%s273 + $0x138] sm:$0xff]
      %v333 = vld [vmem:[%s273 + $0x140] sm:$0xf]
      %v334 = vld [vmem:[%s273 + $0x144] sm:$0xff]
      %v335 = vld [vmem:[%s273 + $0x14c] sm:$0xf]
      %v336 = vld [vmem:[%s273 + $0x150] sm:$0xff]
      %v337 = vld [vmem:[%s273 + $0x158] sm:$0xf]
      %v338 = vld [vmem:[%s273 + $0x15c] sm:$0xff]
      %v339 = vld [vmem:[%s273 + $0x164] sm:$0xf]
      %v340 = vld [vmem:[%s273 + $0x168] sm:$0xff]
      %v341 = vld [vmem:[%s273 + $0x170] sm:$0xf]
      %v342 = vld [vmem:[%s273 + $0x174] sm:$0xff]
      %v343 = vld [vmem:[%s273 + $0x17c] sm:$0xf]
      %v344 = vld [vmem:[%s1] sm:$0xf]
      %v345 = vld [vmem:[%s1 + $0x4] sm:$0xf]
      %v346 = vld [vmem:[%s1 + $0x8] sm:$0xf]
      %v347 = vld [vmem:[%s1 + $0xc] sm:$0xf]
      %v348 = vld [vmem:[%s1 + $0x10] sm:$0xf]
      %v349 = vld [vmem:[%s1 + $0x14] sm:$0xf]
      %v350 = vld [vmem:[%s1 + $0x18] sm:$0xf]
      %v351 = vld [vmem:[%s1 + $0x1c] sm:$0xf]
      %v352 = vld [vmem:[%s1 + $0x20] sm:$0xf]
      %v353 = vld [vmem:[%s1 + $0x24] sm:$0xf]
      %v354 = vld [vmem:[%s1 + $0x28] sm:$0xf]
      %v355 = vld [vmem:[%s1 + $0x2c] sm:$0xf]
      %v356 = vld [vmem:[%s1 + $0x30] sm:$0xf]
      %v357 = vld [vmem:[%s1 + $0x34] sm:$0xf]
      %v358 = vld [vmem:[%s1 + $0x38] sm:$0xf]
      %v359 = vld [vmem:[%s1 + $0x3c] sm:$0xf]
      %v360 = vld [vmem:[%s1 + $0x40] sm:$0xf]
      %v361 = vld [vmem:[%s1 + $0x44] sm:$0xf]
      %v362 = vld [vmem:[%s1 + $0x48] sm:$0xf]
      %v363 = vld [vmem:[%s1 + $0x4c] sm:$0xf]
      %v364 = vld [vmem:[%s1 + $0x50] sm:$0xf]
      %v365 = vld [vmem:[%s1 + $0x54] sm:$0xf]
      %v366 = vld [vmem:[%s1 + $0x58] sm:$0xf]
      %v367 = vld [vmem:[%s1 + $0x5c] sm:$0xf]
      %v368 = vld [vmem:[%s1 + $0x60] sm:$0xf]
      %v369 = vld [vmem:[%s1 + $0x64] sm:$0xf]
      %v370 = vld [vmem:[%s1 + $0x68] sm:$0xf]
      %v371 = vld [vmem:[%s1 + $0x6c] sm:$0xf]
      %v372 = vld [vmem:[%s1 + $0x70] sm:$0xf]
      %v373 = vld [vmem:[%s1 + $0x74] sm:$0xf]
      %v374 = vld [vmem:[%s1 + $0x78] sm:$0xf]
      %v375 = vld [vmem:[%s1 + $0x7c] sm:$0xf]
      %v376 = vld [vmem:[%s1 + $0x80] sm:$0xf]
      %v377 = vld [vmem:[%s1 + $0x84] sm:$0xf]
      %v378 = vld [vmem:[%s1 + $0x88] sm:$0xf]
      %v379 = vld [vmem:[%s1 + $0x8c] sm:$0xf]
      %v380 = vld [vmem:[%s2] sm:$0x1]
      %v382 = vlaneseq
      %v383 = vshrl.u32 %v382, 7
      %v384 = vsub.s32 0, %v383
      %v385 = vrot.slane %v380, %v384
      %v451 = vunpack.c.l.b16 %v280
      %v452 = vunpack.c.h.b16 %v280
      %v453 = vunpack.c.l.b16 %v281
      %v454 = vunpack.c.l.b16 %v282
      %v455 = vunpack.c.h.b16 %v282
      %v456 = vunpack.c.l.b16 %v283
      %v457 = vunpack.c.l.b16 %v284
      %v458 = vunpack.c.h.b16 %v284
      %v459 = vunpack.c.l.b16 %v285
      %v460 = vunpack.c.l.b16 %v286
      %v461 = vunpack.c.h.b16 %v286
      %v462 = vunpack.c.l.b16 %v287
      %v463 = vunpack.c.l.b16 %v288
      %v464 = vunpack.c.h.b16 %v288
      %v465 = vunpack.c.l.b16 %v289
      %v466 = vunpack.c.l.b16 %v290
      %v467 = vunpack.c.h.b16 %v290
      %v468 = vunpack.c.l.b16 %v291
      %v469 = vunpack.c.l.b16 %v292
      %v470 = vunpack.c.h.b16 %v292
      %v471 = vunpack.c.l.b16 %v293
      %v472 = vunpack.c.l.b16 %v294
      %v473 = vunpack.c.h.b16 %v294
      %v474 = vunpack.c.l.b16 %v295
      %v475 = vunpack.c.l.b16 %v296
      %v476 = vunpack.c.h.b16 %v296
      %v477 = vunpack.c.l.b16 %v297
      %v478 = vunpack.c.l.b16 %v298
      %v479 = vunpack.c.h.b16 %v298
      %v480 = vunpack.c.l.b16 %v299
      %v481 = vunpack.c.l.b16 %v300
      %v482 = vunpack.c.h.b16 %v300
      %v483 = vunpack.c.l.b16 %v301
      %v484 = vunpack.c.l.b16 %v302
      %v485 = vunpack.c.h.b16 %v302
      %v486 = vunpack.c.l.b16 %v303
      %v487 = vunpack.c.l.b16 %v304
      %v488 = vunpack.c.h.b16 %v304
      %v489 = vunpack.c.l.b16 %v305
      %v490 = vunpack.c.l.b16 %v306
      %v491 = vunpack.c.h.b16 %v306
      %v492 = vunpack.c.l.b16 %v307
      %v493 = vunpack.c.l.b16 %v308
      %v494 = vunpack.c.h.b16 %v308
      %v495 = vunpack.c.l.b16 %v309
      %v496 = vunpack.c.l.b16 %v310
      %v497 = vunpack.c.h.b16 %v310
      %v498 = vunpack.c.l.b16 %v311
      %v499 = vunpack.c.l.b16 %v312
      %v500 = vunpack.c.h.b16 %v312
      %v501 = vunpack.c.l.b16 %v313
      %v502 = vunpack.c.l.b16 %v314
      %v503 = vunpack.c.h.b16 %v314
      %v504 = vunpack.c.l.b16 %v315
      %v505 = vunpack.c.l.b16 %v316
      %v506 = vunpack.c.h.b16 %v316
      %v507 = vunpack.c.l.b16 %v317
      %v508 = vunpack.c.l.b16 %v318
      %v509 = vunpack.c.h.b16 %v318
      %v510 = vunpack.c.l.b16 %v319
      %v511 = vunpack.c.l.b16 %v320
      %v512 = vunpack.c.h.b16 %v320
      %v513 = vunpack.c.l.b16 %v321
      %v514 = vunpack.c.l.b16 %v322
      %v515 = vunpack.c.h.b16 %v322
      %v516 = vunpack.c.l.b16 %v323
      %v517 = vunpack.c.l.b16 %v324
      %v518 = vunpack.c.h.b16 %v324
      %v519 = vunpack.c.l.b16 %v325
      %v520 = vunpack.c.l.b16 %v326
      %v521 = vunpack.c.h.b16 %v326
      %v522 = vunpack.c.l.b16 %v327
      %v523 = vunpack.c.l.b16 %v328
      %v524 = vunpack.c.h.b16 %v328
      %v525 = vunpack.c.l.b16 %v329
      %v526 = vunpack.c.l.b16 %v330
      %v527 = vunpack.c.h.b16 %v330
      %v528 = vunpack.c.l.b16 %v331
      %v529 = vunpack.c.l.b16 %v332
      %v530 = vunpack.c.h.b16 %v332
      %v531 = vunpack.c.l.b16 %v333
      %v532 = vunpack.c.l.b16 %v334
      %v533 = vunpack.c.h.b16 %v334
      %v534 = vunpack.c.l.b16 %v335
      %v535 = vunpack.c.l.b16 %v336
      %v536 = vunpack.c.h.b16 %v336
      %v537 = vunpack.c.l.b16 %v337
      %v538 = vunpack.c.l.b16 %v338
      %v539 = vunpack.c.h.b16 %v338
      %v540 = vunpack.c.l.b16 %v339
      %v541 = vunpack.c.l.b16 %v340
      %v542 = vunpack.c.h.b16 %v340
      %v543 = vunpack.c.l.b16 %v341
      %v544 = vunpack.c.l.b16 %v342
      %v545 = vunpack.c.h.b16 %v342
      %v546 = vunpack.c.l.b16 %v343
      %v547 = vpack.c.b16 %v454, %v451
      %v548 = vpack.c.b16 %v455, %v452
      %v549 = vpack.c.b16 %v456, %v453
      %v550 = vpack.c.b16 %v460, %v457
      %v551 = vpack.c.b16 %v461, %v458
      %v552 = vpack.c.b16 %v462, %v459
      %v553 = vpack.c.b16 %v466, %v463
      %v554 = vpack.c.b16 %v467, %v464
      %v555 = vpack.c.b16 %v468, %v465
      %v556 = vpack.c.b16 %v472, %v469
      %v557 = vpack.c.b16 %v473, %v470
      %v558 = vpack.c.b16 %v474, %v471
      %v559 = vpack.c.b16 %v478, %v475
      %v560 = vpack.c.b16 %v479, %v476
      %v561 = vpack.c.b16 %v480, %v477
      %v562 = vpack.c.b16 %v484, %v481
      %v563 = vpack.c.b16 %v485, %v482
      %v564 = vpack.c.b16 %v486, %v483
      %v565 = vpack.c.b16 %v490, %v487
      %v566 = vpack.c.b16 %v491, %v488
      %v567 = vpack.c.b16 %v492, %v489
      %v568 = vpack.c.b16 %v496, %v493
      %v569 = vpack.c.b16 %v497, %v494
      %v570 = vpack.c.b16 %v498, %v495
      %v571 = vpack.c.b16 %v502, %v499
      %v572 = vpack.c.b16 %v503, %v500
      %v573 = vpack.c.b16 %v504, %v501
      %v574 = vpack.c.b16 %v508, %v505
      %v575 = vpack.c.b16 %v509, %v506
      %v576 = vpack.c.b16 %v510, %v507
      %v577 = vpack.c.b16 %v514, %v511
      %v578 = vpack.c.b16 %v515, %v512
      %v579 = vpack.c.b16 %v516, %v513
      %v580 = vpack.c.b16 %v520, %v517
      %v581 = vpack.c.b16 %v521, %v518
      %v582 = vpack.c.b16 %v522, %v519
      %v583 = vpack.c.b16 %v526, %v523
      %v584 = vpack.c.b16 %v527, %v524
      %v585 = vpack.c.b16 %v528, %v525
      %v586 = vpack.c.b16 %v532, %v529
      %v587 = vpack.c.b16 %v533, %v530
      %v588 = vpack.c.b16 %v534, %v531
      %v589 = vpack.c.b16 %v538, %v535
      %v590 = vpack.c.b16 %v539, %v536
      %v591 = vpack.c.b16 %v540, %v537
      %v592 = vpack.c.b16 %v544, %v541
      %v593 = vpack.c.b16 %v545, %v542
      %v594 = vpack.c.b16 %v546, %v543
      %v663 = vunpack.c.l.b16 %v344
      %v664 = vunpack.c.l.b16 %v345
      %v665 = vunpack.c.l.b16 %v346
      %v666 = vunpack.c.l.b16 %v347
      %v667 = vunpack.c.l.b16 %v348
      %v668 = vunpack.c.l.b16 %v349
      %v669 = vunpack.c.l.b16 %v350
      %v670 = vunpack.c.l.b16 %v351
      %v671 = vunpack.c.l.b16 %v352
      %v672 = vunpack.c.l.b16 %v353
      %v673 = vunpack.c.l.b16 %v354
      %v674 = vunpack.c.l.b16 %v355
      %v675 = vunpack.c.l.b16 %v356
      %v676 = vunpack.c.l.b16 %v357
      %v677 = vunpack.c.l.b16 %v358
      %v678 = vunpack.c.l.b16 %v359
      %v679 = vunpack.c.l.b16 %v360
      %v680 = vunpack.c.l.b16 %v361
      %v681 = vunpack.c.l.b16 %v362
      %v682 = vunpack.c.l.b16 %v363
      %v683 = vunpack.c.l.b16 %v364
      %v684 = vunpack.c.l.b16 %v365
      %v685 = vunpack.c.l.b16 %v366
      %v686 = vunpack.c.l.b16 %v367
      %v687 = vunpack.c.l.b16 %v368
      %v688 = vunpack.c.l.b16 %v369
      %v689 = vunpack.c.l.b16 %v370
      %v690 = vunpack.c.l.b16 %v371
      %v691 = vunpack.c.l.b16 %v372
      %v692 = vunpack.c.l.b16 %v373
      %v693 = vunpack.c.l.b16 %v374
      %v694 = vunpack.c.l.b16 %v375
      %v695 = vunpack.c.l.b16 %v376
      %v696 = vunpack.c.l.b16 %v377
      %v697 = vunpack.c.l.b16 %v378
      %v698 = vunpack.c.l.b16 %v379
      %v699 = vpack.c.b16 %v664, %v663
      %v700 = vpack.c.b16 %v666, %v665
      %v701 = vpack.c.b16 %v668, %v667
      %v702 = vpack.c.b16 %v670, %v669
      %v703 = vpack.c.b16 %v672, %v671
      %v704 = vpack.c.b16 %v674, %v673
      %v705 = vpack.c.b16 %v676, %v675
      %v706 = vpack.c.b16 %v678, %v677
      %v707 = vpack.c.b16 %v680, %v679
      %v708 = vpack.c.b16 %v682, %v681
      %v709 = vpack.c.b16 %v684, %v683
      %v710 = vpack.c.b16 %v686, %v685
      %v711 = vpack.c.b16 %v688, %v687
      %v712 = vpack.c.b16 %v690, %v689
      %v713 = vpack.c.b16 %v692, %v691
      %v714 = vpack.c.b16 %v694, %v693
      %v715 = vpack.c.b16 %v696, %v695
      %v716 = vpack.c.b16 %v698, %v697
      %vm735 = vcmask 261120
      %v737 = vsel %vm735, %v549, 0
      %v740 = vsel %vm735, %v552, 0
      %v743 = vsel %vm735, %v555, 0
      %v746 = vsel %vm735, %v558, 0
      %v749 = vsel %vm735, %v561, 0
      %v752 = vsel %vm735, %v564, 0
      %v755 = vsel %vm735, %v567, 0
      %v758 = vsel %vm735, %v570, 0
      %v761 = vsel %vm735, %v573, 0
      %v764 = vsel %vm735, %v576, 0
      %v767 = vsel %vm735, %v579, 0
      %v770 = vsel %vm735, %v582, 0
      %v773 = vsel %vm735, %v585, 0
      %v776 = vsel %vm735, %v588, 0
      %v779 = vsel %vm735, %v591, 0
      %v782 = vsel %vm735, %v594, 0
      %784 = vmatprep.subr.bf16.mxu0 0
      %785 = vmatpush1.bf16.msra.mxu0 %v699
      %786 = vmatprep.subr.bf16.mxu0 0
      %787 = vmatpush1.bf16.msra.mxu0 %v700
      %788 = vmatprep.subr.bf16.mxu0 0
      %789 = vmatpush1.bf16.msra.mxu0 %v701
      %790 = vmatprep.subr.bf16.mxu0 0
      %791 = vmatpush1.bf16.msra.mxu0 %v702
      %792 = vmatprep.subr.bf16.mxu0 0
      %793 = vmatpush1.bf16.msra.mxu0 %v703
      %794 = vmatprep.subr.bf16.mxu0 0
      %795 = vmatpush1.bf16.msra.mxu0 %v704
      %796 = vmatprep.subr.bf16.mxu0 0
      %797 = vmatpush1.bf16.msra.mxu0 %v705
      %798 = vmatprep.subr.bf16.mxu0 0
      %799 = vmatpush1.bf16.msra.mxu0 %v706
      %800 = vmatprep.subr.bf16.mxu0 0
      %801 = vmatpush1.bf16.msra.mxu0 %v707
      %802 = vmatprep.subr.bf16.mxu0 0
      %803 = vmatpush1.bf16.msra.mxu0 %v708
      %804 = vmatprep.subr.bf16.mxu0 0
      %805 = vmatpush1.bf16.msra.mxu0 %v709
      %806 = vmatprep.subr.bf16.mxu0 0
      %807 = vmatpush1.bf16.msra.mxu0 %v710
      %808 = vmatprep.subr.bf16.mxu0 0
      %809 = vmatpush1.bf16.msra.mxu0 %v711
      %810 = vmatprep.subr.bf16.mxu0 0
      %811 = vmatpush1.bf16.msra.mxu0 %v712
      %812 = vmatprep.subr.bf16.mxu0 0
      %813 = vmatpush1.bf16.msra.mxu0 %v713
      %814 = vmatprep.subr.bf16.mxu0 0
      %815 = vmatpush1.bf16.msra.mxu0 %v714
      %816 = vmatprep.mubr.bf16.mxu0 %v548
      %817 = vmatmul.mubr.bf16.gmra.mrb[0].mxu0 %v547
      %v818 = vpop.f32.mrb[0].mxu0
      %v819 = vadd.f32 %v385, %v818
      %v820 = vpop.f32.mrb[0].mxu0
      %v821 = vpop.f32.mrb[0].mxu0
      %v822 = vadd.f32 %v385, %v821
      %v823 = vpop.f32.mrb[0].mxu0
      %824 = vmatprep.mubr.bf16.mxu0 %v551
      %825 = vmatmul.mubr.bf16.gmra.mrb[0].mxu0 %v550
      %v826 = vpop.f32.mrb[0].mxu0
      %v827 = vadd.f32 %v385, %v826
      %v828 = vpop.f32.mrb[0].mxu0
      %v829 = vpop.f32.mrb[0].mxu0
      %v830 = vadd.f32 %v385, %v829
      %v831 = vpop.f32.mrb[0].mxu0
      %832 = vmatprep.mubr.bf16.mxu0 %v554
      %833 = vmatmul.mubr.bf16.gmra.mrb[0].mxu0 %v553
      %v834 = vpop.f32.mrb[0].mxu0
      %v835 = vadd.f32 %v385, %v834
      %v836 = vpop.f32.mrb[0].mxu0
      %v837 = vpop.f32.mrb[0].mxu0
      %v838 = vadd.f32 %v385, %v837
      %v839 = vpop.f32.mrb[0].mxu0
      %840 = vmatprep.mubr.bf16.mxu0 %v557
      %841 = vmatmul.mubr.bf16.gmra.mrb[0].mxu0 %v556
      %v842 = vpop.f32.mrb[0].mxu0
      %v843 = vadd.f32 %v385, %v842
      %v844 = vpop.f32.mrb[0].mxu0
      %v845 = vpop.f32.mrb[0].mxu0
      %v846 = vadd.f32 %v385, %v845
      %v847 = vpop.f32.mrb[0].mxu0
      %848 = vmatprep.mubr.bf16.mxu0 %v560
      %849 = vmatmul.mubr.bf16.gmra.mrb[0].mxu0 %v559
      %v850 = vpop.f32.mrb[0].mxu0
      %v851 = vadd.f32 %v385, %v850
      %v852 = vpop.f32.mrb[0].mxu0
      %v853 = vpop.f32.mrb[0].mxu0
      %v854 = vadd.f32 %v385, %v853
      %v855 = vpop.f32.mrb[0].mxu0
      %856 = vmatprep.mubr.bf16.mxu0 %v563
      %857 = vmatmul.mubr.bf16.gmra.mrb[0].mxu0 %v562
      %v858 = vpop.f32.mrb[0].mxu0
      %v859 = vadd.f32 %v385, %v858
      %v860 = vpop.f32.mrb[0].mxu0
      %v861 = vpop.f32.mrb[0].mxu0
      %v862 = vadd.f32 %v385, %v861
      %v863 = vpop.f32.mrb[0].mxu0
      %864 = vmatprep.mubr.bf16.mxu0 %v566
      %865 = vmatmul.mubr.bf16.gmra.mrb[0].mxu0 %v565
      %v866 = vpop.f32.mrb[0].mxu0
      %v867 = vadd.f32 %v385, %v866
      %v868 = vpop.f32.mrb[0].mxu0
      %v869 = vpop.f32.mrb[0].mxu0
      %v870 = vadd.f32 %v385, %v869
      %v871 = vpop.f32.mrb[0].mxu0
      %872 = vmatprep.mubr.bf16.mxu0 %v569
      %873 = vmatmul.mubr.bf16.gmra.mrb[0].mxu0 %v568
      %v874 = vpop.f32.mrb[0].mxu0
      %v875 = vadd.f32 %v385, %v874
      %v876 = vpop.f32.mrb[0].mxu0
      %v877 = vpop.f32.mrb[0].mxu0
      %v878 = vadd.f32 %v385, %v877
      %v879 = vpop.f32.mrb[0].mxu0
      %880 = vmatprep.mubr.bf16.mxu0 %v572
      %881 = vmatmul.mubr.bf16.gmra.mrb[0].mxu0 %v571
      %v882 = vpop.f32.mrb[0].mxu0
      %v883 = vadd.f32 %v385, %v882
      %v884 = vpop.f32.mrb[0].mxu0
      %v885 = vpop.f32.mrb[0].mxu0
      %v886 = vadd.f32 %v385, %v885
      %v887 = vpop.f32.mrb[0].mxu0
      %888 = vmatprep.mubr.bf16.mxu0 %v575
      %889 = vmatmul.mubr.bf16.gmra.mrb[0].mxu0 %v574
      %v890 = vpop.f32.mrb[0].mxu0
      %v891 = vadd.f32 %v385, %v890
      %v892 = vpop.f32.mrb[0].mxu0
      %v893 = vpop.f32.mrb[0].mxu0
      %v894 = vadd.f32 %v385, %v893
      %v895 = vpop.f32.mrb[0].mxu0
      %896 = vmatprep.mubr.bf16.mxu0 %v578
      %897 = vmatmul.mubr.bf16.gmra.mrb[0].mxu0 %v577
      %v898 = vpop.f32.mrb[0].mxu0
      %v899 = vadd.f32 %v385, %v898
      %v900 = vpop.f32.mrb[0].mxu0
      %v901 = vpop.f32.mrb[0].mxu0
      %v902 = vadd.f32 %v385, %v901
      %v903 = vpop.f32.mrb[0].mxu0
      %904 = vmatprep.mubr.bf16.mxu0 %v581
      %905 = vmatmul.mubr.bf16.gmra.mrb[0].mxu0 %v580
      %v906 = vpop.f32.mrb[0].mxu0
      %v907 = vadd.f32 %v385, %v906
      %v908 = vpop.f32.mrb[0].mxu0
      %v909 = vpop.f32.mrb[0].mxu0
      %v910 = vadd.f32 %v385, %v909
      %v911 = vpop.f32.mrb[0].mxu0
      %912 = vmatprep.mubr.bf16.mxu0 %v584
      %913 = vmatmul.mubr.bf16.gmra.mrb[0].mxu0 %v583
      %v914 = vpop.f32.mrb[0].mxu0
      %v915 = vadd.f32 %v385, %v914
      %v916 = vpop.f32.mrb[0].mxu0
      %v917 = vpop.f32.mrb[0].mxu0
      %v918 = vadd.f32 %v385, %v917
      %v919 = vpop.f32.mrb[0].mxu0
      %920 = vmatprep.mubr.bf16.mxu0 %v587
      %921 = vmatmul.mubr.bf16.gmra.mrb[0].mxu0 %v586
      %v922 = vpop.f32.mrb[0].mxu0
      %v923 = vadd.f32 %v385, %v922
      %v924 = vpop.f32.mrb[0].mxu0
      %v925 = vpop.f32.mrb[0].mxu0
      %v926 = vadd.f32 %v385, %v925
      %v927 = vpop.f32.mrb[0].mxu0
      %928 = vmatprep.mubr.bf16.mxu0 %v590
      %929 = vmatmul.mubr.bf16.gmra.mrb[0].mxu0 %v589
      %v930 = vpop.f32.mrb[0].mxu0
      %v931 = vadd.f32 %v385, %v930
      %v932 = vpop.f32.mrb[0].mxu0
      %v933 = vpop.f32.mrb[0].mxu0
      %v934 = vadd.f32 %v385, %v933
      %v935 = vpop.f32.mrb[0].mxu0
      %936 = vmatprep.mubr.bf16.mxu0 %v593
      %937 = vmatmul.mubr.bf16.gmra.mrb[0].mxu0 %v592
      %v938 = vpop.f32.mrb[0].mxu0
      %v939 = vadd.f32 %v385, %v938
      %v940 = vpop.f32.mrb[0].mxu0
      %v941 = vpop.f32.mrb[0].mxu0
      %v942 = vadd.f32 %v385, %v941
      %v943 = vpop.f32.mrb[0].mxu0
      %944 = vdwg.mxu0
      %945 = vmatprep.subr.bf16.mxu0 0
      %946 = vmatpush1.bf16.msra.mxu0 %v715
      %947 = vmatprep.subr.bf16.mxu0 0
      %948 = vmatpush1.bf16.msra.mxu0 %v716
      %949 = vmatprep.subr.bf16.mxu0 0
      %950 = vmatpush1.bf16.msra.mxu0 0
      %951 = vmatprep.subr.bf16.mxu0 0
      %952 = vmatpush1.bf16.msra.mxu0 0
      %953 = vmatprep.subr.bf16.mxu0 0
      %954 = vmatpush1.bf16.msra.mxu0 0
      %955 = vmatprep.subr.bf16.mxu0 0
      %956 = vmatpush1.bf16.msra.mxu0 0
      %957 = vmatprep.subr.bf16.mxu0 0
      %958 = vmatpush1.bf16.msra.mxu0 0
      %959 = vmatprep.subr.bf16.mxu0 0
      %960 = vmatpush1.bf16.msra.mxu0 0
      %961 = vmatprep.subr.bf16.mxu0 0
      %962 = vmatpush1.bf16.msra.mxu0 0
      %963 = vmatprep.subr.bf16.mxu0 0
      %964 = vmatpush1.bf16.msra.mxu0 0
      %965 = vmatprep.subr.bf16.mxu0 0
      %966 = vmatpush1.bf16.msra.mxu0 0
      %967 = vmatprep.subr.bf16.mxu0 0
      %968 = vmatpush1.bf16.msra.mxu0 0
      %969 = vmatprep.subr.bf16.mxu0 0
      %970 = vmatpush1.bf16.msra.mxu0 0
      %971 = vmatprep.subr.bf16.mxu0 0
      %972 = vmatpush1.bf16.msra.mxu0 0
      %973 = vmatprep.subr.bf16.mxu0 0
      %974 = vmatpush1.bf16.msra.mxu0 0
      %975 = vmatprep.subr.bf16.mxu0 0
      %976 = vmatpush1.bf16.msra.mxu0 0
      %977 = vmatprep.mubr.bf16.mxu0 0
      %978 = vmatmul.mubr.bf16.gmra.mrb[0].mxu0 %v737
      %v979 = vpop.f32.mrb[0].mxu0
      %v980 = vadd.f32 %v819, %v979
      %v981 = vpop.f32.mrb[0].mxu0
      %v982 = vpop.f32.mrb[0].mxu0
      %v983 = vadd.f32 %v822, %v982
      %v984 = vpop.f32.mrb[0].mxu0
      %985 = vmatprep.mubr.bf16.mxu0 0
      %986 = vmatmul.mubr.bf16.gmra.mrb[0].mxu0 %v740
      %v987 = vpop.f32.mrb[0].mxu0
      %v988 = vadd.f32 %v827, %v987
      %v989 = vpop.f32.mrb[0].mxu0
      %v990 = vpop.f32.mrb[0].mxu0
      %v991 = vadd.f32 %v830, %v990
      %v992 = vpop.f32.mrb[0].mxu0
      %993 = vmatprep.mubr.bf16.mxu0 0
      %994 = vmatmul.mubr.bf16.gmra.mrb[0].mxu0 %v743
      %v995 = vpop.f32.mrb[0].mxu0
      %v996 = vadd.f32 %v835, %v995
      %v997 = vpop.f32.mrb[0].mxu0
      %v998 = vpop.f32.mrb[0].mxu0
      %v999 = vadd.f32 %v838, %v998
      %v1000 = vpop.f32.mrb[0].mxu0
      %1001 = vmatprep.mubr.bf16.mxu0 0
      %1002 = vmatmul.mubr.bf16.gmra.mrb[0].mxu0 %v746
      %v1003 = vpop.f32.mrb[0].mxu0
      %v1004 = vadd.f32 %v843, %v1003
      %v1005 = vpop.f32.mrb[0].mxu0
      %v1006 = vpop.f32.mrb[0].mxu0
      %v1007 = vadd.f32 %v846, %v1006
      %v1008 = vpop.f32.mrb[0].mxu0
      %1009 = vmatprep.mubr.bf16.mxu0 0
      %1010 = vmatmul.mubr.bf16.gmra.mrb[0].mxu0 %v749
      %v1011 = vpop.f32.mrb[0].mxu0
      %v1012 = vadd.f32 %v851, %v1011
      %v1013 = vpop.f32.mrb[0].mxu0
      %v1014 = vpop.f32.mrb[0].mxu0
      %v1015 = vadd.f32 %v854, %v1014
      %v1016 = vpop.f32.mrb[0].mxu0
      %1017 = vmatprep.mubr.bf16.mxu0 0
      %1018 = vmatmul.mubr.bf16.gmra.mrb[0].mxu0 %v752
      %v1019 = vpop.f32.mrb[0].mxu0
      %v1020 = vadd.f32 %v859, %v1019
      %v1021 = vpop.f32.mrb[0].mxu0
      %v1022 = vpop.f32.mrb[0].mxu0
      %v1023 = vadd.f32 %v862, %v1022
      %v1024 = vpop.f32.mrb[0].mxu0
      %1025 = vmatprep.mubr.bf16.mxu0 0
      %1026 = vmatmul.mubr.bf16.gmra.mrb[0].mxu0 %v755
      %v1027 = vpop.f32.mrb[0].mxu0
      %v1028 = vadd.f32 %v867, %v1027
      %v1029 = vpop.f32.mrb[0].mxu0
      %v1030 = vpop.f32.mrb[0].mxu0
      %v1031 = vadd.f32 %v870, %v1030
      %v1032 = vpop.f32.mrb[0].mxu0
      %1033 = vmatprep.mubr.bf16.mxu0 0
      %1034 = vmatmul.mubr.bf16.gmra.mrb[0].mxu0 %v758
      %v1035 = vpop.f32.mrb[0].mxu0
      %v1036 = vadd.f32 %v875, %v1035
      %v1037 = vpop.f32.mrb[0].mxu0
      %v1038 = vpop.f32.mrb[0].mxu0
      %v1039 = vadd.f32 %v878, %v1038
      %v1040 = vpop.f32.mrb[0].mxu0
      %1041 = vmatprep.mubr.bf16.mxu0 0
      %1042 = vmatmul.mubr.bf16.gmra.mrb[0].mxu0 %v761
      %v1043 = vpop.f32.mrb[0].mxu0
      %v1044 = vadd.f32 %v883, %v1043
      %v1045 = vpop.f32.mrb[0].mxu0
      %v1046 = vpop.f32.mrb[0].mxu0
      %v1047 = vadd.f32 %v886, %v1046
      %v1048 = vpop.f32.mrb[0].mxu0
      %1049 = vmatprep.mubr.bf16.mxu0 0
      %1050 = vmatmul.mubr.bf16.gmra.mrb[0].mxu0 %v764
      %v1051 = vpop.f32.mrb[0].mxu0
      %v1052 = vadd.f32 %v891, %v1051
      %v1053 = vpop.f32.mrb[0].mxu0
      %v1054 = vpop.f32.mrb[0].mxu0
      %v1055 = vadd.f32 %v894, %v1054
      %v1056 = vpop.f32.mrb[0].mxu0
      %1057 = vmatprep.mubr.bf16.mxu0 0
      %1058 = vmatmul.mubr.bf16.gmra.mrb[0].mxu0 %v767
      %v1059 = vpop.f32.mrb[0].mxu0
      %v1060 = vadd.f32 %v899, %v1059
      %v1061 = vpop.f32.mrb[0].mxu0
      %v1062 = vpop.f32.mrb[0].mxu0
      %v1063 = vadd.f32 %v902, %v1062
      %v1064 = vpop.f32.mrb[0].mxu0
      %1065 = vmatprep.mubr.bf16.mxu0 0
      %1066 = vmatmul.mubr.bf16.gmra.mrb[0].mxu0 %v770
      %v1067 = vpop.f32.mrb[0].mxu0
      %v1068 = vadd.f32 %v907, %v1067
      %v1069 = vpop.f32.mrb[0].mxu0
      %v1070 = vpop.f32.mrb[0].mxu0
      %v1071 = vadd.f32 %v910, %v1070
      %v1072 = vpop.f32.mrb[0].mxu0
      %1073 = vmatprep.mubr.bf16.mxu0 0
      %1074 = vmatmul.mubr.bf16.gmra.mrb[0].mxu0 %v773
      %v1075 = vpop.f32.mrb[0].mxu0
      %v1076 = vadd.f32 %v915, %v1075
      %v1077 = vpop.f32.mrb[0].mxu0
      %v1078 = vpop.f32.mrb[0].mxu0
      %v1079 = vadd.f32 %v918, %v1078
      %v1080 = vpop.f32.mrb[0].mxu0
      %1081 = vmatprep.mubr.bf16.mxu0 0
      %1082 = vmatmul.mubr.bf16.gmra.mrb[0].mxu0 %v776
      %v1083 = vpop.f32.mrb[0].mxu0
      %v1084 = vadd.f32 %v923, %v1083
      %v1085 = vpop.f32.mrb[0].mxu0
      %v1086 = vpop.f32.mrb[0].mxu0
      %v1087 = vadd.f32 %v926, %v1086
      %v1088 = vpop.f32.mrb[0].mxu0
      %1089 = vmatprep.mubr.bf16.mxu0 0
      %1090 = vmatmul.mubr.bf16.gmra.mrb[0].mxu0 %v779
      %v1091 = vpop.f32.mrb[0].mxu0
      %v1092 = vadd.f32 %v931, %v1091
      %v1093 = vpop.f32.mrb[0].mxu0
      %v1094 = vpop.f32.mrb[0].mxu0
      %v1095 = vadd.f32 %v934, %v1094
      %v1096 = vpop.f32.mrb[0].mxu0
      %1097 = vmatprep.mubr.bf16.mxu0 0
      %1098 = vmatmul.mubr.bf16.gmra.mrb[0].mxu0 %v782
      %v1099 = vpop.f32.mrb[0].mxu0
      %v1100 = vadd.f32 %v939, %v1099
      %v1101 = vpop.f32.mrb[0].mxu0
      %v1102 = vpop.f32.mrb[0].mxu0
      %v1103 = vadd.f32 %v942, %v1102
      %v1104 = vpop.f32.mrb[0].mxu0
      %1105 = vdwg.mxu0
      %v1106 = vadd.f32 %v980, %v983
      %v1107 = vadd.f32 %v1106, %v988
      %v1108 = vadd.f32 %v1107, %v991
      %v1109 = vadd.f32 %v1108, %v996
      %v1110 = vadd.f32 %v1109, %v999
      %v1111 = vadd.f32 %v1110, %v1004
      %v1112 = vadd.f32 %v1111, %v1007
      %v1113 = vadd.f32 %v1112, %v1012
      %v1114 = vadd.f32 %v1113, %v1015
      %v1115 = vadd.f32 %v1114, %v1020
      %v1116 = vadd.f32 %v1115, %v1023
      %v1117 = vadd.f32 %v1116, %v1028
      %v1118 = vadd.f32 %v1117, %v1031
      %v1119 = vadd.f32 %v1118, %v1036
      %v1120 = vadd.f32 %v1119, %v1039
      %v1121 = vadd.f32 %v1120, %v1044
      %v1122 = vadd.f32 %v1121, %v1047
      %v1123 = vadd.f32 %v1122, %v1052
      %v1124 = vadd.f32 %v1123, %v1055
      %v1125 = vadd.f32 %v1124, %v1060
      %v1126 = vadd.f32 %v1125, %v1063
      %v1127 = vadd.f32 %v1126, %v1068
      %v1128 = vadd.f32 %v1127, %v1071
      %v1129 = vadd.f32 %v1128, %v1076
      %v1130 = vadd.f32 %v1129, %v1079
      %v1131 = vadd.f32 %v1130, %v1084
      %v1132 = vadd.f32 %v1131, %v1087
      %v1133 = vadd.f32 %v1132, %v1092
      %v1134 = vadd.f32 %v1133, %v1095
      %v1135 = vadd.f32 %v1134, %v1100
      %v1136 = vadd.f32 %v1135, %v1103
      %v1137 = vrot.slane %v1136, 4
      %v1138 = vadd.f32 %v1136, %v1137
      %v1139 = vrot.slane %v1138, 2
      %v1140 = vadd.f32 %v1138, %v1139
      %v1141 = vrot.slane %v1140, 1
      %v1142 = vadd.f32 %v1140, %v1141
      %v1143 = vld [vmem:[%s5] sm:$0xff]
      %v1144 = vld [vmem:[%s5 + $0x8] sm:$0xff]
      %v1145 = vld [vmem:[%s5 + $0x10] sm:$0xff]
      %v1146 = vld [vmem:[%s5 + $0x18] sm:$0xff]
      %v1147 = vld [vmem:[%s5 + $0x20] sm:$0xff]
      %v1148 = vld [vmem:[%s5 + $0x28] sm:$0xff]
      %v1149 = vld [vmem:[%s5 + $0x30] sm:$0xff]
      %v1150 = vld [vmem:[%s5 + $0x38] sm:$0xff]
      %v1151 = vld [vmem:[%s5 + $0x40] sm:$0xff]
      %v1152 = vld [vmem:[%s5 + $0x48] sm:$0xff]
      %v1153 = vld [vmem:[%s5 + $0x50] sm:$0xff]
      %v1154 = vld [vmem:[%s5 + $0x58] sm:$0xff]
      %v1155 = vld [vmem:[%s5 + $0x60] sm:$0xff]
      %v1156 = vld [vmem:[%s5 + $0x68] sm:$0xff]
      %v1157 = vld [vmem:[%s5 + $0x70] sm:$0xff]
      %v1158 = vld [vmem:[%s5 + $0x78] sm:$0xff]
      %1159 = vmatprep.subr.mxu0 0.0
      %1160 = vmatpush1.msra.mxu0 %v1143
      %1161 = vmatprep.subr.mxu0 0.0
      %1162 = vmatpush1.msra.mxu0 %v1144
      %1163 = vmatprep.subr.mxu0 0.0
      %1164 = vmatpush1.msra.mxu0 %v1145
      %1165 = vmatprep.subr.mxu0 0.0
      %1166 = vmatpush1.msra.mxu0 %v1146
      %1167 = vmatprep.subr.mxu0 0.0
      %1168 = vmatpush1.msra.mxu0 %v1147
      %1169 = vmatprep.subr.mxu0 0.0
      %1170 = vmatpush1.msra.mxu0 %v1148
      %1171 = vmatprep.subr.mxu0 0.0
      %1172 = vmatpush1.msra.mxu0 %v1149
      %1173 = vmatprep.subr.mxu0 0.0
      %1174 = vmatpush1.msra.mxu0 %v1150
      %1175 = vmatprep.subr.mxu0 0.0
      %1176 = vmatpush1.msra.mxu0 %v1151
      %1177 = vmatprep.subr.mxu0 0.0
      %1178 = vmatpush1.msra.mxu0 %v1152
      %1179 = vmatprep.subr.mxu0 0.0
      %1180 = vmatpush1.msra.mxu0 %v1153
      %1181 = vmatprep.subr.mxu0 0.0
      %1182 = vmatpush1.msra.mxu0 %v1154
      %1183 = vmatprep.subr.mxu0 0.0
      %1184 = vmatpush1.msra.mxu0 %v1155
      %1185 = vmatprep.subr.mxu0 0.0
      %1186 = vmatpush1.msra.mxu0 %v1156
      %1187 = vmatprep.subr.mxu0 0.0
      %1188 = vmatpush1.msra.mxu0 %v1157
      %1189 = vmatprep.subr.mxu0 0.0
      %1190 = vmatpush1.msra.mxu0 %v1158
      %1191 = vmatprep.subr.mxu0 0.0
      %1192 = vmatpush1.msra.mxu0 0.0
      %1193 = vmatprep.subr.mxu0 0.0
      %1194 = vmatpush1.msra.mxu0 0.0
      %1195 = vmatprep.subr.mxu0 0.0
      %1196 = vmatpush1.msra.mxu0 0.0
      %1197 = vmatprep.subr.mxu0 0.0
      %1198 = vmatpush1.msra.mxu0 0.0
      %1199 = vmatprep.subr.mxu0 0.0
      %1200 = vmatpush1.msra.mxu0 0.0
      %1201 = vmatprep.subr.mxu0 0.0
      %1202 = vmatpush1.msra.mxu0 0.0
      %1203 = vmatprep.subr.mxu0 0.0
      %1204 = vmatpush1.msra.mxu0 0.0
      %1205 = vmatprep.subr.mxu0 0.0
      %1206 = vmatpush1.msra.mxu0 0.0
      %1207 = vmatprep.subr.mxu0 0.0
      %1208 = vmatpush1.msra.mxu0 0.0
      %1209 = vmatprep.subr.mxu0 0.0
      %1210 = vmatpush1.msra.mxu0 0.0
      %1211 = vmatprep.subr.mxu0 0.0
      %1212 = vmatpush1.msra.mxu0 0.0
      %1213 = vmatprep.subr.mxu0 0.0
      %1214 = vmatpush1.msra.mxu0 0.0
      %1215 = vmatprep.subr.mxu0 0.0
      %1216 = vmatpush1.msra.mxu0 0.0
      %1217 = vmatprep.subr.mxu0 0.0
      %1218 = vmatpush1.msra.mxu0 0.0
      %1219 = vmatprep.subr.mxu0 0.0
      %1220 = vmatpush1.msra.mxu0 0.0
      %1221 = vmatprep.subr.mxu0 0.0
      %1222 = vmatpush1.msra.mxu0 0.0
      %1223 = vmatprep.mubr.f32.mxu0 0.0
      %1224 = vmatmul.mubr.f32.gmra.mrb[0].mxu0 %v1142
      %v1225 = vpop.f32.mrb[0].mxu0
      %v1226 = vadd.f32 0.0, %v1225
      %v1227 = vpop.f32.mrb[0].mxu0
      %1228 = vdwg.mxu0
      %v1229 = vmul.f32 %v1226, 0.00032552084
      %v1230 = vld [vmem:[%s6] sm:$0xf]
      %vm1231 = vcmask 31744
      %v1233 = vsel %vm1231, %v1229, 0
      %vm1235 = vcmask 1043456
      %v1237 = vsel %vm1235, %v1230, 0
      %1239 = vmatprep.subr.mxu0 0.0
      %1240 = vmatpush1.msra.mxu0 %v1237
      %1241 = vmatprep.subr.mxu0 0.0
      %1242 = vmatpush1.msra.mxu0 0.0
      %1243 = vmatprep.subr.mxu0 0.0
      %1244 = vmatpush1.msra.mxu0 0.0
      %1245 = vmatprep.subr.mxu0 0.0
      %1246 = vmatpush1.msra.mxu0 0.0
      %1247 = vmatprep.subr.mxu0 0.0
      %1248 = vmatpush1.msra.mxu0 0.0
      %1249 = vmatprep.subr.mxu0 0.0
      %1250 = vmatpush1.msra.mxu0 0.0
      %1251 = vmatprep.subr.mxu0 0.0
      %1252 = vmatpush1.msra.mxu0 0.0
      %1253 = vmatprep.subr.mxu0 0.0
      %1254 = vmatpush1.msra.mxu0 0.0
      %1255 = vmatprep.subr.mxu0 0.0
      %1256 = vmatpush1.msra.mxu0 0.0
      %1257 = vmatprep.subr.mxu0 0.0
      %1258 = vmatpush1.msra.mxu0 0.0
      %1259 = vmatprep.subr.mxu0 0.0
      %1260 = vmatpush1.msra.mxu0 0.0
      %1261 = vmatprep.subr.mxu0 0.0
      %1262 = vmatpush1.msra.mxu0 0.0
      %1263 = vmatprep.subr.mxu0 0.0
      %1264 = vmatpush1.msra.mxu0 0.0
      %1265 = vmatprep.subr.mxu0 0.0
      %1266 = vmatpush1.msra.mxu0 0.0
      %1267 = vmatprep.subr.mxu0 0.0
      %1268 = vmatpush1.msra.mxu0 0.0
      %1269 = vmatprep.subr.mxu0 0.0
      %1270 = vmatpush1.msra.mxu0 0.0
      %1271 = vmatprep.subr.mxu0 0.0
      %1272 = vmatpush1.msra.mxu0 0.0
      %1273 = vmatprep.subr.mxu0 0.0
      %1274 = vmatpush1.msra.mxu0 0.0
      %1275 = vmatprep.subr.mxu0 0.0
      %1276 = vmatpush1.msra.mxu0 0.0
      %1277 = vmatprep.subr.mxu0 0.0
      %1278 = vmatpush1.msra.mxu0 0.0
      %1279 = vmatprep.subr.mxu0 0.0
      %1280 = vmatpush1.msra.mxu0 0.0
      %1281 = vmatprep.subr.mxu0 0.0
      %1282 = vmatpush1.msra.mxu0 0.0
      %1283 = vmatprep.subr.mxu0 0.0
      %1284 = vmatpush1.msra.mxu0 0.0
      %1285 = vmatprep.subr.mxu0 0.0
      %1286 = vmatpush1.msra.mxu0 0.0
      %1287 = vmatprep.subr.mxu0 0.0
      %1288 = vmatpush1.msra.mxu0 0.0
      %1289 = vmatprep.subr.mxu0 0.0
      %1290 = vmatpush1.msra.mxu0 0.0
      %1291 = vmatprep.subr.mxu0 0.0
      %1292 = vmatpush1.msra.mxu0 0.0
      %1293 = vmatprep.subr.mxu0 0.0
      %1294 = vmatpush1.msra.mxu0 0.0
      %1295 = vmatprep.subr.mxu0 0.0
      %1296 = vmatpush1.msra.mxu0 0.0
      %1297 = vmatprep.subr.mxu0 0.0
      %1298 = vmatpush1.msra.mxu0 0.0
      %1299 = vmatprep.subr.mxu0 0.0
      %1300 = vmatpush1.msra.mxu0 0.0
      %1301 = vmatprep.subr.mxu0 0.0
      %1302 = vmatpush1.msra.mxu0 0.0
      %1303 = vmatprep.mubr.f32.mxu0 0.0
      %1304 = vmatmul.mubr.f32.gmra.mrb[0].mxu0 %v1233
      %v1305 = vpop.f32.mrb[0].mxu0
      %v1306 = vadd.f32 0.0, %v1305
      %v1307 = vpop.f32.mrb[0].mxu0
      %1308 = vdwg.mxu0
      %v1309 = vlaneseq
      %v1310 = vshrl.u32 %v1309, 7
      %v1311 = vsub.s32 0, %v1310
      %v1312 = vrot.slane %v1306, %v1311
      %v1313 = vsub.f32 %v980, %v1312
      %v1314 = vsub.f32 %v983, %v1312
      %v1315 = vsub.f32 %v988, %v1312
      %v1316 = vsub.f32 %v991, %v1312
      %v1317 = vsub.f32 %v996, %v1312
      %v1318 = vsub.f32 %v999, %v1312
      %v1319 = vsub.f32 %v1004, %v1312
      %v1320 = vsub.f32 %v1007, %v1312
      %v1321 = vsub.f32 %v1012, %v1312
      %v1322 = vsub.f32 %v1015, %v1312
      %v1323 = vsub.f32 %v1020, %v1312
      %v1324 = vsub.f32 %v1023, %v1312
      %v1325 = vsub.f32 %v1028, %v1312
      %v1326 = vsub.f32 %v1031, %v1312
      %v1327 = vsub.f32 %v1036, %v1312
      %v1328 = vsub.f32 %v1039, %v1312
      %v1329 = vsub.f32 %v1044, %v1312
      %v1330 = vsub.f32 %v1047, %v1312
      %v1331 = vsub.f32 %v1052, %v1312
      %v1332 = vsub.f32 %v1055, %v1312
      %v1333 = vsub.f32 %v1060, %v1312
      %v1334 = vsub.f32 %v1063, %v1312
      %v1335 = vsub.f32 %v1068, %v1312
      %v1336 = vsub.f32 %v1071, %v1312
      %v1337 = vsub.f32 %v1076, %v1312
      %v1338 = vsub.f32 %v1079, %v1312
      %v1339 = vsub.f32 %v1084, %v1312
      %v1340 = vsub.f32 %v1087, %v1312
      %v1341 = vsub.f32 %v1092, %v1312
      %v1342 = vsub.f32 %v1095, %v1312
      %v1343 = vsub.f32 %v1100, %v1312
      %v1344 = vsub.f32 %v1103, %v1312
      %v1345 = vmul.f32 %v1313, %v1313
      %v1346 = vmul.f32 %v1314, %v1314
      %v1347 = vmul.f32 %v1315, %v1315
      %v1348 = vmul.f32 %v1316, %v1316
      %v1349 = vmul.f32 %v1317, %v1317
      %v1350 = vmul.f32 %v1318, %v1318
      %v1351 = vmul.f32 %v1319, %v1319
      %v1352 = vmul.f32 %v1320, %v1320
      %v1353 = vmul.f32 %v1321, %v1321
      %v1354 = vmul.f32 %v1322, %v1322
      %v1355 = vmul.f32 %v1323, %v1323
      %v1356 = vmul.f32 %v1324, %v1324
      %v1357 = vmul.f32 %v1325, %v1325
      %v1358 = vmul.f32 %v1326, %v1326
      %v1359 = vmul.f32 %v1327, %v1327
      %v1360 = vmul.f32 %v1328, %v1328
      %v1361 = vmul.f32 %v1329, %v1329
      %v1362 = vmul.f32 %v1330, %v1330
      %v1363 = vmul.f32 %v1331, %v1331
      %v1364 = vmul.f32 %v1332, %v1332
      %v1365 = vmul.f32 %v1333, %v1333
      %v1366 = vmul.f32 %v1334, %v1334
      %v1367 = vmul.f32 %v1335, %v1335
      %v1368 = vmul.f32 %v1336, %v1336
      %v1369 = vmul.f32 %v1337, %v1337
      %v1370 = vmul.f32 %v1338, %v1338
      %v1371 = vmul.f32 %v1339, %v1339
      %v1372 = vmul.f32 %v1340, %v1340
      %v1373 = vmul.f32 %v1341, %v1341
      %v1374 = vmul.f32 %v1342, %v1342
      %v1375 = vmul.f32 %v1343, %v1343
      %v1376 = vmul.f32 %v1344, %v1344
      %v1377 = vadd.f32 %v1345, %v1346
      %v1378 = vadd.f32 %v1377, %v1347
      %v1379 = vadd.f32 %v1378, %v1348
      %v1380 = vadd.f32 %v1379, %v1349
      %v1381 = vadd.f32 %v1380, %v1350
      %v1382 = vadd.f32 %v1381, %v1351
      %v1383 = vadd.f32 %v1382, %v1352
      %v1384 = vadd.f32 %v1383, %v1353
      %v1385 = vadd.f32 %v1384, %v1354
      %v1386 = vadd.f32 %v1385, %v1355
      %v1387 = vadd.f32 %v1386, %v1356
      %v1388 = vadd.f32 %v1387, %v1357
      %v1389 = vadd.f32 %v1388, %v1358
      %v1390 = vadd.f32 %v1389, %v1359
      %v1391 = vadd.f32 %v1390, %v1360
      %v1392 = vadd.f32 %v1391, %v1361
      %v1393 = vadd.f32 %v1392, %v1362
      %v1394 = vadd.f32 %v1393, %v1363
      %v1395 = vadd.f32 %v1394, %v1364
      %v1396 = vadd.f32 %v1395, %v1365
      %v1397 = vadd.f32 %v1396, %v1366
      %v1398 = vadd.f32 %v1397, %v1367
      %v1399 = vadd.f32 %v1398, %v1368
      %v1400 = vadd.f32 %v1399, %v1369
      %v1401 = vadd.f32 %v1400, %v1370
      %v1402 = vadd.f32 %v1401, %v1371
      %v1403 = vadd.f32 %v1402, %v1372
      %v1404 = vadd.f32 %v1403, %v1373
      %v1405 = vadd.f32 %v1404, %v1374
      %v1406 = vadd.f32 %v1405, %v1375
      %v1407 = vadd.f32 %v1406, %v1376
      %v1408 = vrot.slane %v1407, 4
      %v1409 = vadd.f32 %v1407, %v1408
      %v1410 = vrot.slane %v1409, 2
      %v1411 = vadd.f32 %v1409, %v1410
      %v1412 = vrot.slane %v1411, 1
      %v1413 = vadd.f32 %v1411, %v1412
      %1414 = vmatprep.subr.mxu0 0.0
      %1415 = vmatpush1.msra.mxu0 %v1143
      %1416 = vmatprep.subr.mxu0 0.0
      %1417 = vmatpush1.msra.mxu0 %v1144
      %1418 = vmatprep.subr.mxu0 0.0
      %1419 = vmatpush1.msra.mxu0 %v1145
      %1420 = vmatprep.subr.mxu0 0.0
      %1421 = vmatpush1.msra.mxu0 %v1146
      %1422 = vmatprep.subr.mxu0 0.0
      %1423 = vmatpush1.msra.mxu0 %v1147
      %1424 = vmatprep.subr.mxu0 0.0
      %1425 = vmatpush1.msra.mxu0 %v1148
      %1426 = vmatprep.subr.mxu0 0.0
      %1427 = vmatpush1.msra.mxu0 %v1149
      %1428 = vmatprep.subr.mxu0 0.0
      %1429 = vmatpush1.msra.mxu0 %v1150
      %1430 = vmatprep.subr.mxu0 0.0
      %1431 = vmatpush1.msra.mxu0 %v1151
      %1432 = vmatprep.subr.mxu0 0.0
      %1433 = vmatpush1.msra.mxu0 %v1152
      %1434 = vmatprep.subr.mxu0 0.0
      %1435 = vmatpush1.msra.mxu0 %v1153
      %1436 = vmatprep.subr.mxu0 0.0
      %1437 = vmatpush1.msra.mxu0 %v1154
      %1438 = vmatprep.subr.mxu0 0.0
      %1439 = vmatpush1.msra.mxu0 %v1155
      %1440 = vmatprep.subr.mxu0 0.0
      %1441 = vmatpush1.msra.mxu0 %v1156
      %1442 = vmatprep.subr.mxu0 0.0
      %1443 = vmatpush1.msra.mxu0 %v1157
      %1444 = vmatprep.subr.mxu0 0.0
      %1445 = vmatpush1.msra.mxu0 %v1158
      %1446 = vmatprep.subr.mxu0 0.0
      %1447 = vmatpush1.msra.mxu0 0.0
      %1448 = vmatprep.subr.mxu0 0.0
      %1449 = vmatpush1.msra.mxu0 0.0
      %1450 = vmatprep.subr.mxu0 0.0
      %1451 = vmatpush1.msra.mxu0 0.0
      %1452 = vmatprep.subr.mxu0 0.0
      %1453 = vmatpush1.msra.mxu0 0.0
      %1454 = vmatprep.subr.mxu0 0.0
      %1455 = vmatpush1.msra.mxu0 0.0
      %1456 = vmatprep.subr.mxu0 0.0
      %1457 = vmatpush1.msra.mxu0 0.0
      %1458 = vmatprep.subr.mxu0 0.0
      %1459 = vmatpush1.msra.mxu0 0.0
      %1460 = vmatprep.subr.mxu0 0.0
      %1461 = vmatpush1.msra.mxu0 0.0
      %1462 = vmatprep.subr.mxu0 0.0
      %1463 = vmatpush1.msra.mxu0 0.0
      %1464 = vmatprep.subr.mxu0 0.0
      %1465 = vmatpush1.msra.mxu0 0.0
      %1466 = vmatprep.subr.mxu0 0.0
      %1467 = vmatpush1.msra.mxu0 0.0
      %1468 = vmatprep.subr.mxu0 0.0
      %1469 = vmatpush1.msra.mxu0 0.0
      %1470 = vmatprep.subr.mxu0 0.0
      %1471 = vmatpush1.msra.mxu0 0.0
      %1472 = vmatprep.subr.mxu0 0.0
      %1473 = vmatpush1.msra.mxu0 0.0
      %1474 = vmatprep.subr.mxu0 0.0
      %1475 = vmatpush1.msra.mxu0 0.0
      %1476 = vmatprep.subr.mxu0 0.0
      %1477 = vmatpush1.msra.mxu0 0.0
      %1478 = vmatprep.mubr.f32.mxu0 0.0
      %1479 = vmatmul.mubr.f32.gmra.mrb[0].mxu0 %v1413
      %v1480 = vpop.f32.mrb[0].mxu0
      %v1481 = vadd.f32 0.0, %v1480
      %v1482 = vpop.f32.mrb[0].mxu0
      %1483 = vdwg.mxu0
      %v1484 = vmul.f32 %v1481, 0.00032552084
      %v1485 = vadd.f32 %v1484, 0.001
      %v1486 = vrsqrt.pop %v1485
      %v1488 = vsel %vm1231, %v1486, 0
      %1490 = vmatprep.subr.mxu0 0.0
      %1491 = vmatpush1.msra.mxu0 %v1237
      %1492 = vmatprep.subr.mxu0 0.0
      %1493 = vmatpush1.msra.mxu0 0.0
      %1494 = vmatprep.subr.mxu0 0.0
      %1495 = vmatpush1.msra.mxu0 0.0
      %1496 = vmatprep.subr.mxu0 0.0
      %1497 = vmatpush1.msra.mxu0 0.0
      %1498 = vmatprep.subr.mxu0 0.0
      %1499 = vmatpush1.msra.mxu0 0.0
      %1500 = vmatprep.subr.mxu0 0.0
      %1501 = vmatpush1.msra.mxu0 0.0
      %1502 = vmatprep.subr.mxu0 0.0
      %1503 = vmatpush1.msra.mxu0 0.0
      %1504 = vmatprep.subr.mxu0 0.0
      %1505 = vmatpush1.msra.mxu0 0.0
      %1506 = vmatprep.subr.mxu0 0.0
      %1507 = vmatpush1.msra.mxu0 0.0
      %1508 = vmatprep.subr.mxu0 0.0
      %1509 = vmatpush1.msra.mxu0 0.0
      %1510 = vmatprep.subr.mxu0 0.0
      %1511 = vmatpush1.msra.mxu0 0.0
      %1512 = vmatprep.subr.mxu0 0.0
      %1513 = vmatpush1.msra.mxu0 0.0
      %1514 = vmatprep.subr.mxu0 0.0
      %1515 = vmatpush1.msra.mxu0 0.0
      %1516 = vmatprep.subr.mxu0 0.0
      %1517 = vmatpush1.msra.mxu0 0.0
      %1518 = vmatprep.subr.mxu0 0.0
      %1519 = vmatpush1.msra.mxu0 0.0
      %1520 = vmatprep.subr.mxu0 0.0
      %1521 = vmatpush1.msra.mxu0 0.0
      %1522 = vmatprep.subr.mxu0 0.0
      %1523 = vmatpush1.msra.mxu0 0.0
      %1524 = vmatprep.subr.mxu0 0.0
      %1525 = vmatpush1.msra.mxu0 0.0
      %1526 = vmatprep.subr.mxu0 0.0
      %1527 = vmatpush1.msra.mxu0 0.0
      %1528 = vmatprep.subr.mxu0 0.0
      %1529 = vmatpush1.msra.mxu0 0.0
      %1530 = vmatprep.subr.mxu0 0.0
      %1531 = vmatpush1.msra.mxu0 0.0
      %1532 = vmatprep.subr.mxu0 0.0
      %1533 = vmatpush1.msra.mxu0 0.0
      %1534 = vmatprep.subr.mxu0 0.0
      %1535 = vmatpush1.msra.mxu0 0.0
      %1536 = vmatprep.subr.mxu0 0.0
      %1537 = vmatpush1.msra.mxu0 0.0
      %1538 = vmatprep.subr.mxu0 0.0
      %1539 = vmatpush1.msra.mxu0 0.0
      %1540 = vmatprep.subr.mxu0 0.0
      %1541 = vmatpush1.msra.mxu0 0.0
      %1542 = vmatprep.subr.mxu0 0.0
      %1543 = vmatpush1.msra.mxu0 0.0
      %1544 = vmatprep.subr.mxu0 0.0
      %1545 = vmatpush1.msra.mxu0 0.0
      %1546 = vmatprep.subr.mxu0 0.0
      %1547 = vmatpush1.msra.mxu0 0.0
      %1548 = vmatprep.subr.mxu0 0.0
      %1549 = vmatpush1.msra.mxu0 0.0
      %1550 = vmatprep.subr.mxu0 0.0
      %1551 = vmatpush1.msra.mxu0 0.0
      %1552 = vmatprep.subr.mxu0 0.0
      %1553 = vmatpush1.msra.mxu0 0.0
      %1554 = vmatprep.mubr.f32.mxu0 0.0
      %1555 = vmatmul.mubr.f32.gmra.mrb[0].mxu0 %v1488
      %v1556 = vpop.f32.mrb[0].mxu0
      %v1557 = vadd.f32 0.0, %v1556
      %v1558 = vpop.f32.mrb[0].mxu0
      %1559 = vdwg.mxu0
      %v1560 = vld [vmem:[%s3] sm:$0x1]
      %v1561 = vmul.f32 %v1557, %v1560
      %v1562 = vld [vmem:[%s4] sm:$0x1]
      %v1563 = vmul.f32 %v1306, %v1561
      %v1564 = vsub.f32 %v1562, %v1563
      %v1565 = vlaneseq
      %v1566 = vshrl.u32 %v1565, 7
      %v1567 = vsub.s32 0, %v1566
      %v1568 = vrot.slane %v1561, %v1567
      %v1569 = vmul.f32 %v980, %v1568
      %v1570 = vmul.f32 %v983, %v1568
      %v1571 = vmul.f32 %v988, %v1568
      %v1572 = vmul.f32 %v991, %v1568
      %v1573 = vmul.f32 %v996, %v1568
      %v1574 = vmul.f32 %v999, %v1568
      %v1575 = vmul.f32 %v1004, %v1568
      %v1576 = vmul.f32 %v1007, %v1568
      %v1577 = vmul.f32 %v1012, %v1568
      %v1578 = vmul.f32 %v1015, %v1568
      %v1579 = vmul.f32 %v1020, %v1568
      %v1580 = vmul.f32 %v1023, %v1568
      %v1581 = vmul.f32 %v1028, %v1568
      %v1582 = vmul.f32 %v1031, %v1568
      %v1583 = vmul.f32 %v1036, %v1568
      %v1584 = vmul.f32 %v1039, %v1568
      %v1585 = vmul.f32 %v1044, %v1568
      %v1586 = vmul.f32 %v1047, %v1568
      %v1587 = vmul.f32 %v1052, %v1568
      %v1588 = vmul.f32 %v1055, %v1568
      %v1589 = vmul.f32 %v1060, %v1568
      %v1590 = vmul.f32 %v1063, %v1568
      %v1591 = vmul.f32 %v1068, %v1568
      %v1592 = vmul.f32 %v1071, %v1568
      %v1593 = vmul.f32 %v1076, %v1568
      %v1594 = vmul.f32 %v1079, %v1568
      %v1595 = vmul.f32 %v1084, %v1568
      %v1596 = vmul.f32 %v1087, %v1568
      %v1597 = vmul.f32 %v1092, %v1568
      %v1598 = vmul.f32 %v1095, %v1568
      %v1599 = vmul.f32 %v1100, %v1568
      %v1600 = vmul.f32 %v1103, %v1568
      %v1602 = vlaneseq
      %v1603 = vshrl.u32 %v1602, 7
      %v1604 = vsub.s32 0, %v1603
      %v1605 = vrot.slane %v1564, %v1604
      %v1607 = vadd.f32 %v1569, %v1605
      %v1608 = vadd.f32 %v1570, %v1605
      %v1609 = vadd.f32 %v1571, %v1605
      %v1610 = vadd.f32 %v1572, %v1605
      %v1611 = vadd.f32 %v1573, %v1605
      %v1612 = vadd.f32 %v1574, %v1605
      %v1613 = vadd.f32 %v1575, %v1605
      %v1614 = vadd.f32 %v1576, %v1605
      %v1615 = vadd.f32 %v1577, %v1605
      %v1616 = vadd.f32 %v1578, %v1605
      %v1617 = vadd.f32 %v1579, %v1605
      %v1618 = vadd.f32 %v1580, %v1605
      %v1619 = vadd.f32 %v1581, %v1605
      %v1620 = vadd.f32 %v1582, %v1605
      %v1621 = vadd.f32 %v1583, %v1605
      %v1622 = vadd.f32 %v1584, %v1605
      %v1623 = vadd.f32 %v1585, %v1605
      %v1624 = vadd.f32 %v1586, %v1605
      %v1625 = vadd.f32 %v1587, %v1605
      %v1626 = vadd.f32 %v1588, %v1605
      %v1627 = vadd.f32 %v1589, %v1605
      %v1628 = vadd.f32 %v1590, %v1605
      %v1629 = vadd.f32 %v1591, %v1605
      %v1630 = vadd.f32 %v1592, %v1605
      %v1631 = vadd.f32 %v1593, %v1605
      %v1632 = vadd.f32 %v1594, %v1605
      %v1633 = vadd.f32 %v1595, %v1605
      %v1634 = vadd.f32 %v1596, %v1605
      %v1635 = vadd.f32 %v1597, %v1605
      %v1636 = vadd.f32 %v1598, %v1605
      %v1637 = vadd.f32 %v1599, %v1605
      %v1638 = vadd.f32 %v1600, %v1605
      %v1639 = vmax.f32 %v1607, 0.0
      %v1640 = vmax.f32 %v1608, 0.0
      %v1641 = vmax.f32 %v1609, 0.0
      %v1642 = vmax.f32 %v1610, 0.0
      %v1643 = vmax.f32 %v1611, 0.0
      %v1644 = vmax.f32 %v1612, 0.0
      %v1645 = vmax.f32 %v1613, 0.0
      %v1646 = vmax.f32 %v1614, 0.0
      %v1647 = vmax.f32 %v1615, 0.0
      %v1648 = vmax.f32 %v1616, 0.0
      %v1649 = vmax.f32 %v1617, 0.0
      %v1650 = vmax.f32 %v1618, 0.0
      %v1651 = vmax.f32 %v1619, 0.0
      %v1652 = vmax.f32 %v1620, 0.0
      %v1653 = vmax.f32 %v1621, 0.0
      %v1654 = vmax.f32 %v1622, 0.0
      %v1655 = vmax.f32 %v1623, 0.0
      %v1656 = vmax.f32 %v1624, 0.0
      %v1657 = vmax.f32 %v1625, 0.0
      %v1658 = vmax.f32 %v1626, 0.0
      %v1659 = vmax.f32 %v1627, 0.0
      %v1660 = vmax.f32 %v1628, 0.0
      %v1661 = vmax.f32 %v1629, 0.0
      %v1662 = vmax.f32 %v1630, 0.0
      %v1663 = vmax.f32 %v1631, 0.0
      %v1664 = vmax.f32 %v1632, 0.0
      %v1665 = vmax.f32 %v1633, 0.0
      %v1666 = vmax.f32 %v1634, 0.0
      %v1667 = vmax.f32 %v1635, 0.0
      %v1668 = vmax.f32 %v1636, 0.0
      %v1669 = vmax.f32 %v1637, 0.0
      %v1670 = vmax.f32 %v1638, 0.0
      %1671 = vst [vmem:[%s278] sm:$0xff] %v1639
      %1672 = vst [vmem:[%s278 + $0x8] sm:$0xff] %v1640
      %1673 = vst [vmem:[%s278 + $0x10] sm:$0xff] %v1641
      %1674 = vst [vmem:[%s278 + $0x18] sm:$0xff] %v1642
      %1675 = vst [vmem:[%s278 + $0x20] sm:$0xff] %v1643
      %1676 = vst [vmem:[%s278 + $0x28] sm:$0xff] %v1644
      %1677 = vst [vmem:[%s278 + $0x30] sm:$0xff] %v1645
      %1678 = vst [vmem:[%s278 + $0x38] sm:$0xff] %v1646
      %1679 = vst [vmem:[%s278 + $0x40] sm:$0xff] %v1647
      %1680 = vst [vmem:[%s278 + $0x48] sm:$0xff] %v1648
      %1681 = vst [vmem:[%s278 + $0x50] sm:$0xff] %v1649
      %1682 = vst [vmem:[%s278 + $0x58] sm:$0xff] %v1650
      %1683 = vst [vmem:[%s278 + $0x60] sm:$0xff] %v1651
      %1684 = vst [vmem:[%s278 + $0x68] sm:$0xff] %v1652
      %1685 = vst [vmem:[%s278 + $0x70] sm:$0xff] %v1653
      %1686 = vst [vmem:[%s278 + $0x78] sm:$0xff] %v1654
      %1687 = vst [vmem:[%s278 + $0x80] sm:$0xff] %v1655
      %1688 = vst [vmem:[%s278 + $0x88] sm:$0xff] %v1656
      %1689 = vst [vmem:[%s278 + $0x90] sm:$0xff] %v1657
      %1690 = vst [vmem:[%s278 + $0x98] sm:$0xff] %v1658
      %1691 = vst [vmem:[%s278 + $0xa0] sm:$0xff] %v1659
      %1692 = vst [vmem:[%s278 + $0xa8] sm:$0xff] %v1660
      %1693 = vst [vmem:[%s278 + $0xb0] sm:$0xff] %v1661
      %1694 = vst [vmem:[%s278 + $0xb8] sm:$0xff] %v1662
      %1695 = vst [vmem:[%s278 + $0xc0] sm:$0xff] %v1663
      %1696 = vst [vmem:[%s278 + $0xc8] sm:$0xff] %v1664
      %1697 = vst [vmem:[%s278 + $0xd0] sm:$0xff] %v1665
      %1698 = vst [vmem:[%s278 + $0xd8] sm:$0xff] %v1666
      %1699 = vst [vmem:[%s278 + $0xe0] sm:$0xff] %v1667
      %1700 = vst [vmem:[%s278 + $0xe8] sm:$0xff] %v1668
      %1701 = vst [vmem:[%s278 + $0xf0] sm:$0xff] %v1669
      %1702 = vst [vmem:[%s278 + $0xf8] sm:$0xff] %v1670
      %p1703 = scmp.lt.s32.totalorder %s18, 1
      %s1704 = scalar_select %p1703, %s18, 1
      %s1705 = smul.addr %s1704, 32
      %s1706 = smul.addr %s1705, 8
      %s1707 = scalar_lea.vmem %s7, %s1706
      // Predicated region
      $region49: #{inception_b_forward.7} parent=47 // pred_check
        %p1708 = pneg %p188
      $region50: #{inception_b_forward.7} parent=47 // pred_check_branch
        %1710 = sbr.rel (%p1708) target = $region52
      $region51: #{inception_b_forward.7} parent=47 // pred_region
        _
      $region52: #{inception_b_forward.7} parent=47 // pred_fallthru
        _
    $region48: #{inception_b_forward.7} parent=5 // pred_fallthru
      _
    %p1711 = scmp.le.s32.totalorder 2, %s13
    // Predicated region
    $region53: #{inception_b_forward.7} parent=5 // pred_check
      %p1712 = pneg %p1711
    $region54: #{inception_b_forward.7} parent=5 // pred_check_branch
      %1714 = sbr.rel (%p1712) target = $region56
    $region55: #{inception_b_forward.7} parent=5 // pred_region
      %s1715 = ssub.s32 %s13, 2
      // Predicated region
      $region57: #{inception_b_forward.7} parent=55 // pred_check
        %p1716 = pneg %p194
      $region58: #{inception_b_forward.7} parent=55 // pred_check_branch
        %1718 = sbr.rel (%p1716) target = $region60
      $region59: #{inception_b_forward.7} parent=55 // pred_region
        %p1719 = scmp.lt.s32.totalorder %s19, 1
        %s1720 = scalar_select %p1719, %s19, 1
        %s1721 = smul.addr %s1720, 32
        %s1722 = smul.addr %s1721, 8
        %s1723 = scalar_lea.vmem %s7, %s1722
      $region60: #{inception_b_forward.7} parent=55 // pred_fallthru
        _
    $region56: #{inception_b_forward.7} parent=5 // pred_fallthru
      _
  $region6: #{inception_b_forward.7} parent=0 // loop_footer
    %s17 = sadd.s32 1, %s13
  $region7: #{inception_b_forward.7} parent=0 // loop_footer_branch
    %12 = sbr.rel target = $region3
  $region8: #{inception_b_forward.7} parent=0 // loop_exit
    _

// kernel: inception_b_forward.8
$region0: #{inception_b_forward.8}
  #allocation0 [shape = 'u32[]', space=smem, size = 0x4, offset = 0x4, fixed_abs, tag = 'smem constant byte address 0x4 - core index']
  #allocation1 [shape = 'u32[144,128]{1,0:T(1,128)}', space=vmem, size = 0x12000, scoped, tag = 'internal scratch']
  %s0 = inlined_call_operand.vmem [shape: bf16[2,49,432], index: 0, kind: input, shape index: {}]
  %s1 = inlined_call_operand.vmem [shape: bf16[432,128], index: 1, kind: input, shape index: {}]
  %s2 = inlined_call_operand.vmem [shape: f32[1,128], index: 2, kind: input, shape index: {}]
  %s3 = inlined_call_operand.vmem [shape: f32[1,128], index: 3, kind: input, shape index: {}]
  %s4 = inlined_call_operand.vmem [shape: f32[1,128], index: 4, kind: input, shape index: {}]
  %s5 = inlined_call_operand.vmem [shape: f32[128,4], index: 5, kind: input, shape index: {}]
  %s6 = inlined_call_operand.vmem [shape: f32[4,128], index: 6, kind: input, shape index: {}]
  %s7 = inlined_call_operand.vmem [shape: f32[2,49,128], index: 7, kind: output, shape index: {}]
  %s8 = sld [smem:[#allocation0]]
  $region61: #{inception_b_forward.8} parent=0
    _
  %s10 = ssub.s32 1, %s8
  %s11 = scalar_select 0, %s10, %s8
  loop: start=0, step=1, limit=4
  $region2: #{inception_b_forward.8} parent=0 // loop_pre_header
    _
  $region3: #{inception_b_forward.8} parent=0 // loop_header
    %s13 = sphi 0, %s17
    %p14 = scmp.ge.s32.totalorder %s13, 4
    %s23 = sphi 0, %s25
    %s26 = sphi 0, %s23
    %s27 = sphi 0, %s26
    %s43 = sphi 0, %s27
    %s47 = sphi 0, %s47
    %s49 = sphi 0, %s47
    %s50 = sphi 0, %s49
    %s64 = sphi 0, %s50
    %s68 = sphi 0, %s68
    %s70 = sphi 0, %s68
    %s71 = sphi 0, %s70
    %s85 = sphi 0, %s71
    %s89 = sphi 0, %s89
    %s91 = sphi 0, %s89
    %s92 = sphi 0, %s91
    %s106 = sphi 0, %s92
    %s110 = sphi 0, %s110
    %s112 = sphi 0, %s110
    %s113 = sphi 0, %s112
    %s127 = sphi 0, %s113
    %s131 = sphi 0, %s131
    %s133 = sphi 0, %s131
    %s134 = sphi 0, %s133
    %s148 = sphi 0, %s134
    %s152 = sphi 0, %s152
    %s154 = sphi 0, %s152
    %s155 = sphi 0, %s154
    %s169 = sphi 0, %s155
    %s175 = sphi 0, %s177
    %s178 = sphi 0, %s175
    %s179 = sphi 0, %s178
    %s195 = sphi 0, %s179
  $region4: #{inception_b_forward.8} parent=0 // loop_header_branch
    %16 = sbr.rel (%p14) target = $region8
  $region5: #{inception_b_forward.8} parent=0 // loop_body
    %s18 = ssub.s32 %s13, 1
    %s19 = ssub.s32 %s13, 2
    %s20 = sadd.s32 %s13, 1
    %s21 = ssub.s32 %s13, %s20
    %p22 = scmp.eq.s32.totalorder %s21, 0
    %s24 = sadd.s32 %s23, 1
    %s25 = scalar_select %p22, %s23, %s24
    %p28 = pneg %p22
    %p29 = scmp.eq.s32.totalorder %s13, 1
    %p30 = por %p28, %p29
    %p31 = scmp.ne.s32.totalorder %s23, %s26
    %p32 = scmp.eq.s32.totalorder %s13, 0
    %p33 = por %p31, %p32
    %p34 = scmp.ne.s32.totalorder %s23, %s26
    %p35 = scmp.eq.s32.totalorder %s18, 1
    %p36 = por %p34, %p35
    %p37 = scmp.ne.s32.totalorder %s26, %s27
    %p38 = scmp.eq.s32.totalorder %s18, 0
    %p39 = por %p37, %p38
    %p40 = scmp.ne.s32.totalorder %s26, %s27
    %p41 = scmp.eq.s32.totalorder %s19, 1
    %p42 = por %p40, %p41
    %p44 = scmp.ne.s32.totalorder %s27, %s43
    %p45 = scmp.eq.s32.totalorder %s19, 0
    %p46 = por %p44, %p45
    %s48 = sadd.s32 %s47, 1
    %p51 = scmp.eq.s32.totalorder %s13, 1
    %p52 = scmp.ne.s32.totalorder %s47, %s49
    %p53 = scmp.eq.s32.totalorder %s13, 0
    %p54 = por %p52, %p53
    %p55 = scmp.ne.s32.totalorder %s47, %s49
    %p56 = scmp.eq.s32.totalorder %s18, 1
    %p57 = por %p55, %p56
    %p58 = scmp.ne.s32.totalorder %s49, %s50
    %p59 = scmp.eq.s32.totalorder %s18, 0
    %p60 = por %p58, %p59
    %p61 = scmp.ne.s32.totalorder %s49, %s50
    %p62 = scmp.eq.s32.totalorder %s19, 1
    %p63 = por %p61, %p62
    %p65 = scmp.ne.s32.totalorder %s50, %s64
    %p66 = scmp.eq.s32.totalorder %s19, 0
    %p67 = por %p65, %p66
    %s69 = sadd.s32 %s68, 1
    %p72 = scmp.eq.s32.totalorder %s13, 1
    %p73 = scmp.ne.s32.totalorder %s68, %s70
    %p74 = scmp.eq.s32.totalorder %s13, 0
    %p75 = por %p73, %p74
    %p76 = scmp.ne.s32.totalorder %s68, %s70
    %p77 = scmp.eq.s32.totalorder %s18, 1
    %p78 = por %p76, %p77
    %p79 = scmp.ne.s32.totalorder %s70, %s71
    %p80 = scmp.eq.s32.totalorder %s18, 0
    %p81 = por %p79, %p80
    %p82 = scmp.ne.s32.totalorder %s70, %s71
    %p83 = scmp.eq.s32.totalorder %s19, 1
    %p84 = por %p82, %p83
    %p86 = scmp.ne.s32.totalorder %s71, %s85
    %p87 = scmp.eq.s32.totalorder %s19, 0
    %p88 = por %p86, %p87
    %s90 = sadd.s32 %s89, 1
    %p93 = scmp.eq.s32.totalorder %s13, 1
    %p94 = scmp.ne.s32.totalorder %s89, %s91
    %p95 = scmp.eq.s32.totalorder %s13, 0
    %p96 = por %p94, %p95
    %p97 = scmp.ne.s32.totalorder %s89, %s91
    %p98 = scmp.eq.s32.totalorder %s18, 1
    %p99 = por %p97, %p98
    %p100 = scmp.ne.s32.totalorder %s91, %s92
    %p101 = scmp.eq.s32.totalorder %s18, 0
    %p102 = por %p100, %p101
    %p103 = scmp.ne.s32.totalorder %s91, %s92
    %p104 = scmp.eq.s32.totalorder %s19, 1
    %p105 = por %p103, %p104
    %p107 = scmp.ne.s32.totalorder %s92, %s106
    %p108 = scmp.eq.s32.totalorder %s19, 0
    %p109 = por %p107, %p108
    %s111 = sadd.s32 %s110, 1
    %p114 = scmp.eq.s32.totalorder %s13, 1
    %p115 = scmp.ne.s32.totalorder %s110, %s112
    %p116 = scmp.eq.s32.totalorder %s13, 0
    %p117 = por %p115, %p116
    %p118 = scmp.ne.s32.totalorder %s110, %s112
    %p119 = scmp.eq.s32.totalorder %s18, 1
    %p120 = por %p118, %p119
    %p121 = scmp.ne.s32.totalorder %s112, %s113
    %p122 = scmp.eq.s32.totalorder %s18, 0
    %p123 = por %p121, %p122
    %p124 = scmp.ne.s32.totalorder %s112, %s113
    %p125 = scmp.eq.s32.totalorder %s19, 1
    %p126 = por %p124, %p125
    %p128 = scmp.ne.s32.totalorder %s113, %s127
    %p129 = scmp.eq.s32.totalorder %s19, 0
    %p130 = por %p128, %p129
    %s132 = sadd.s32 %s131, 1
    %p135 = scmp.eq.s32.totalorder %s13, 1
    %p136 = scmp.ne.s32.totalorder %s131, %s133
    %p137 = scmp.eq.s32.totalorder %s13, 0
    %p138 = por %p136, %p137
    %p139 = scmp.ne.s32.totalorder %s131, %s133
    %p140 = scmp.eq.s32.totalorder %s18, 1
    %p141 = por %p139, %p140
    %p142 = scmp.ne.s32.totalorder %s133, %s134
    %p143 = scmp.eq.s32.totalorder %s18, 0
    %p144 = por %p142, %p143
    %p145 = scmp.ne.s32.totalorder %s133, %s134
    %p146 = scmp.eq.s32.totalorder %s19, 1
    %p147 = por %p145, %p146
    %p149 = scmp.ne.s32.totalorder %s134, %s148
    %p150 = scmp.eq.s32.totalorder %s19, 0
    %p151 = por %p149, %p150
    %s153 = sadd.s32 %s152, 1
    %p156 = scmp.eq.s32.totalorder %s13, 1
    %p157 = scmp.ne.s32.totalorder %s152, %s154
    %p158 = scmp.eq.s32.totalorder %s13, 0
    %p159 = por %p157, %p158
    %p160 = scmp.ne.s32.totalorder %s152, %s154
    %p161 = scmp.eq.s32.totalorder %s18, 1
    %p162 = por %p160, %p161
    %p163 = scmp.ne.s32.totalorder %s154, %s155
    %p164 = scmp.eq.s32.totalorder %s18, 0
    %p165 = por %p163, %p164
    %p166 = scmp.ne.s32.totalorder %s154, %s155
    %p167 = scmp.eq.s32.totalorder %s19, 1
    %p168 = por %p166, %p167
    %p170 = scmp.ne.s32.totalorder %s155, %s169
    %p171 = scmp.eq.s32.totalorder %s19, 0
    %p172 = por %p170, %p171
    %s173 = ssub.s32 %s13, %s20
    %p174 = scmp.eq.s32.totalorder %s173, 0
    %s176 = sadd.s32 %s175, 1
    %s177 = scalar_select %p174, %s175, %s176
    %p180 = pneg %p174
    %p181 = scmp.eq.s32.totalorder %s13, 1
    %p182 = por %p180, %p181
    %p183 = scmp.ne.s32.totalorder %s175, %s178
    %p184 = scmp.eq.s32.totalorder %s13, 0
    %p185 = por %p183, %p184
    %p186 = scmp.ne.s32.totalorder %s175, %s178
    %p187 = scmp.eq.s32.totalorder %s18, 1
    %p188 = por %p186, %p187
    %p189 = scmp.ne.s32.totalorder %s178, %s179
    %p190 = scmp.eq.s32.totalorder %s18, 0
    %p191 = por %p189, %p190
    %p192 = scmp.ne.s32.totalorder %s178, %s179
    %p193 = scmp.eq.s32.totalorder %s19, 1
    %p194 = por %p192, %p193
    %p196 = scmp.ne.s32.totalorder %s179, %s195
    %p197 = scmp.eq.s32.totalorder %s19, 0
    %p198 = por %p196, %p197
    %p199 = scmp.le.s32.totalorder 1, %s13
    %p200 = scmp.lt.s32.totalorder %s13, 3
    %p201 = pnand %p199, %p200
    %p202 = pneg %p201
    // Predicated region
    $region9: #{inception_b_forward.8} parent=5 // pred_check
      _
    $region10: #{inception_b_forward.8} parent=5 // pred_check_branch
      %204 = sbr.rel (%p201) target = $region12
    $region11: #{inception_b_forward.8} parent=5 // pred_region
      %s205 = ssub.s32 %s13, 1
      // Predicated region
      $region13: #{inception_b_forward.8} parent=11 // pred_check
        %p206 = pneg %p60
      $region14: #{inception_b_forward.8} parent=11 // pred_check_branch
        %208 = sbr.rel (%p206) target = $region16
      $region15: #{inception_b_forward.8} parent=11 // pred_region
        _
      $region16: #{inception_b_forward.8} parent=11 // pred_fallthru
        _
      // Predicated region
      $region17: #{inception_b_forward.8} parent=11 // pred_check
        %p209 = pneg %p81
      $region18: #{inception_b_forward.8} parent=11 // pred_check_branch
        %211 = sbr.rel (%p209) target = $region20
      $region19: #{inception_b_forward.8} parent=11 // pred_region
        _
      $region20: #{inception_b_forward.8} parent=11 // pred_fallthru
        _
      // Predicated region
      $region21: #{inception_b_forward.8} parent=11 // pred_check
        %p212 = pneg %p102
      $region22: #{inception_b_forward.8} parent=11 // pred_check_branch
        %214 = sbr.rel (%p212) target = $region24
      $region23: #{inception_b_forward.8} parent=11 // pred_region
        _
      $region24: #{inception_b_forward.8} parent=11 // pred_fallthru
        _
      // Predicated region
      $region25: #{inception_b_forward.8} parent=11 // pred_check
        %p215 = pneg %p123
      $region26: #{inception_b_forward.8} parent=11 // pred_check_branch
        %217 = sbr.rel (%p215) target = $region28
      $region27: #{inception_b_forward.8} parent=11 // pred_region
        _
      $region28: #{inception_b_forward.8} parent=11 // pred_fallthru
        _
      // Predicated region
      $region29: #{inception_b_forward.8} parent=11 // pred_check
        %p218 = pneg %p144
      $region30: #{inception_b_forward.8} parent=11 // pred_check_branch
        %220 = sbr.rel (%p218) target = $region32
      $region31: #{inception_b_forward.8} parent=11 // pred_region
        _
      $region32: #{inception_b_forward.8} parent=11 // pred_fallthru
        _
      // Predicated region
      $region33: #{inception_b_forward.8} parent=11 // pred_check
        %p221 = pneg %p165
      $region34: #{inception_b_forward.8} parent=11 // pred_check_branch
        %223 = sbr.rel (%p221) target = $region36
      $region35: #{inception_b_forward.8} parent=11 // pred_region
        _
      $region36: #{inception_b_forward.8} parent=11 // pred_fallthru
        _
    $region12: #{inception_b_forward.8} parent=5 // pred_fallthru
      _
    %p224 = scmp.lt.s32.totalorder %s13, 2
    // Predicated region
    $region37: #{inception_b_forward.8} parent=5 // pred_check
      %p225 = pneg %p224
    $region38: #{inception_b_forward.8} parent=5 // pred_check_branch
      %227 = sbr.rel (%p225) target = $region40
    $region39: #{inception_b_forward.8} parent=5 // pred_region
      // Predicated region
      $region41: #{inception_b_forward.8} parent=39 // pred_check
        %p228 = pneg %p33
      $region42: #{inception_b_forward.8} parent=39 // pred_check_branch
        %230 = sbr.rel (%p228) target = $region44
      $region43: #{inception_b_forward.8} parent=39 // pred_region
        %p231 = scmp.lt.s32.totalorder %s13, 1
        %s232 = scalar_select %p231, %s13, 1
        %s233 = smul.addr %s232, 28
        %s234 = smul.addr %s233, 4
        %s235 = scalar_lea.vmem %s0, %s234
      $region44: #{inception_b_forward.8} parent=39 // pred_fallthru
        _
    $region40: #{inception_b_forward.8} parent=5 // pred_fallthru
      _
    %p236 = scmp.le.s32.totalorder 1, %s13
    %p237 = scmp.lt.s32.totalorder %s13, 3
    %p238 = pnand %p236, %p237
    %p239 = pneg %p238
    // Predicated region
    $region45: #{inception_b_forward.8} parent=5 // pred_check
      _
    $region46: #{inception_b_forward.8} parent=5 // pred_check_branch
      %241 = sbr.rel (%p238) target = $region48
    $region47: #{inception_b_forward.8} parent=5 // pred_region
      %s242 = ssub.s32 %s13, 1
      %p243 = scmp.lt.s32.totalorder %s18, 1
      %s244 = scalar_select %p243, %s18, 1
      %s245 = smul.addr %s244, 28
      %s246 = smul.addr %s245, 4
      %s247 = scalar_lea.vmem %s0, %s246
      %p248 = pneg %p39
      %p249 = pneg %p36
      %p250 = pneg %p60
      %p251 = pneg %p57
      %p252 = pneg %p81
      %p253 = pneg %p78
      %p254 = pneg %p102
      %p255 = pneg %p99
      %p256 = pneg %p123
      %p257 = pneg %p120
      %p258 = pneg %p144
      %p259 = pneg %p141
      %p260 = pneg %p165
      %p261 = pneg %p162
      %p262 = pneg %p191
      %p263 = pneg %p188
      %p264 = scmp.lt.s32.totalorder %s18, 1
      %s265 = scalar_select %p264, %s18, 1
      %s266 = smul.addr %s265, 7
      %s267 = smul.addr %s266, 8
      %s268 = scalar_lea.vmem %s7, %s267
      %p269 = scmp.lt.s32.totalorder %s18, 1
      %s270 = scalar_select %p269, %s18, 1
      %s271 = smul.addr %s270, 28
      %s272 = smul.addr %s271, 4
      %s273 = scalar_lea.vmem %s0, %s272
      %p274 = scmp.lt.s32.totalorder %s18, 1
      %s275 = scalar_select %p274, %s18, 1
      %s276 = smul.addr %s275, 7
      %s277 = smul.addr %s276, 8
      %s278 = scalar_lea.vmem %s7, %s277
      %v280 = vld [vmem:[%s273] sm:$0xff]
      %v281 = vld [vmem:[%s273 + $0x8] sm:$0xff]
      %v282 = vld [vmem:[%s273 + $0x10] sm:$0xff]
      %v283 = vld [vmem:[%s273 + $0x18] sm:$0xff]
      %v284 = vld [vmem:[%s273 + $0x20] sm:$0xff]
      %v285 = vld [vmem:[%s273 + $0x28] sm:$0xff]
      %v286 = vld [vmem:[%s273 + $0x30] sm:$0xff]
      %v287 = vld [vmem:[%s273 + $0x38] sm:$0xff]
      %v288 = vld [vmem:[%s273 + $0x40] sm:$0xff]
      %v289 = vld [vmem:[%s273 + $0x48] sm:$0xff]
      %v290 = vld [vmem:[%s273 + $0x50] sm:$0xff]
      %v291 = vld [vmem:[%s273 + $0x58] sm:$0xff]
      %v292 = vld [vmem:[%s273 + $0x60] sm:$0x11]
      %v293 = vld [vmem:[%s273 + $0x68] sm:$0x11]
      %v294 = vld [vmem:[%s1] sm:$0xf]
      %v295 = vld [vmem:[%s1 + $0x4] sm:$0xf]
      %v296 = vld [vmem:[%s1 + $0x8] sm:$0xf]
      %v297 = vld [vmem:[%s1 + $0xc] sm:$0xf]
      %v298 = vld [vmem:[%s1 + $0x10] sm:$0xf]
      %v299 = vld [vmem:[%s1 + $0x14] sm:$0xf]
      %v300 = vld [vmem:[%s1 + $0x18] sm:$0xf]
      %v301 = vld [vmem:[%s1 + $0x1c] sm:$0xf]
      %v302 = vld [vmem:[%s1 + $0x20] sm:$0xf]
      %v303 = vld [vmem:[%s1 + $0x24] sm:$0xf]
      %v304 = vld [vmem:[%s1 + $0x28] sm:$0xf]
      %v305 = vld [vmem:[%s1 + $0x2c] sm:$0xf]
      %v306 = vld [vmem:[%s1 + $0x30] sm:$0xf]
      %v307 = vld [vmem:[%s1 + $0x34] sm:$0xf]
      %v308 = vld [vmem:[%s1 + $0x38] sm:$0xf]
      %v309 = vld [vmem:[%s1 + $0x3c] sm:$0xf]
      %v310 = vld [vmem:[%s1 + $0x40] sm:$0xf]
      %v311 = vld [vmem:[%s1 + $0x44] sm:$0xf]
      %v312 = vld [vmem:[%s1 + $0x48] sm:$0xf]
      %v313 = vld [vmem:[%s1 + $0x4c] sm:$0xf]
      %v314 = vld [vmem:[%s1 + $0x50] sm:$0xf]
      %v315 = vld [vmem:[%s1 + $0x54] sm:$0xf]
      %v316 = vld [vmem:[%s1 + $0x58] sm:$0xf]
      %v317 = vld [vmem:[%s1 + $0x5c] sm:$0xf]
      %v318 = vld [vmem:[%s1 + $0x60] sm:$0xf]
      %v319 = vld [vmem:[%s1 + $0x64] sm:$0xf]
      %v320 = vld [vmem:[%s1 + $0x68] sm:$0xf]
      %v321 = vld [vmem:[%s1 + $0x6c] sm:$0xf]
      %v322 = vld [vmem:[%s1 + $0x70] sm:$0xf]
      %v323 = vld [vmem:[%s1 + $0x74] sm:$0xf]
      %v324 = vld [vmem:[%s1 + $0x78] sm:$0xf]
      %v325 = vld [vmem:[%s1 + $0x7c] sm:$0xf]
      %v326 = vld [vmem:[%s1 + $0x80] sm:$0xf]
      %v327 = vld [vmem:[%s1 + $0x84] sm:$0xf]
      %v328 = vld [vmem:[%s1 + $0x88] sm:$0xf]
      %v329 = vld [vmem:[%s1 + $0x8c] sm:$0xf]
      %v330 = vld [vmem:[%s1 + $0x90] sm:$0xf]
      %v331 = vld [vmem:[%s1 + $0x94] sm:$0xf]
      %v332 = vld [vmem:[%s1 + $0x98] sm:$0xf]
      %v333 = vld [vmem:[%s1 + $0x9c] sm:$0xf]
      %v334 = vld [vmem:[%s1 + $0xa0] sm:$0xf]
      %v335 = vld [vmem:[%s1 + $0xa4] sm:$0xf]
      %v336 = vld [vmem:[%s1 + $0xa8] sm:$0xf]
      %v337 = vld [vmem:[%s1 + $0xac] sm:$0xf]
      %v338 = vld [vmem:[%s1 + $0xb0] sm:$0xf]
      %v339 = vld [vmem:[%s1 + $0xb4] sm:$0xf]
      %v340 = vld [vmem:[%s1 + $0xb8] sm:$0xf]
      %v341 = vld [vmem:[%s1 + $0xbc] sm:$0xf]
      %v342 = vld [vmem:[%s1 + $0xc0] sm:$0xf]
      %v343 = vld [vmem:[%s1 + $0xc4] sm:$0xf]
      %v344 = vld [vmem:[%s1 + $0xc8] sm:$0xf]
      %v345 = vld [vmem:[%s1 + $0xcc] sm:$0xf]
      %v346 = vld [vmem:[%s1 + $0xd0] sm:$0xf]
      %v347 = vld [vmem:[%s1 + $0xd4] sm:$0xf]
      %v348 = vld [vmem:[%s2] sm:$0x1]
      %v350 = vlaneseq
      %v351 = vshrl.u32 %v350, 7
      %v352 = vsub.s32 0, %v351
      %v353 = vrot.slane %v348, %v352
      %v369 = vunpack.c.l.b16 %v280
      %v370 = vunpack.c.h.b16 %v280
      %v371 = vunpack.c.l.b16 %v281
      %v372 = vunpack.c.h.b16 %v281
      %v373 = vunpack.c.l.b16 %v282
      %v374 = vunpack.c.h.b16 %v282
      %v375 = vunpack.c.l.b16 %v283
      %v376 = vunpack.c.h.b16 %v283
      %v377 = vunpack.c.l.b16 %v284
      %v378 = vunpack.c.h.b16 %v284
      %v379 = vunpack.c.l.b16 %v285
      %v380 = vunpack.c.h.b16 %v285
      %v381 = vunpack.c.l.b16 %v286
      %v382 = vunpack.c.h.b16 %v286
      %v383 = vunpack.c.l.b16 %v287
      %v384 = vunpack.c.h.b16 %v287
      %v385 = vunpack.c.l.b16 %v288
      %v386 = vunpack.c.h.b16 %v288
      %v387 = vunpack.c.l.b16 %v289
      %v388 = vunpack.c.h.b16 %v289
      %v389 = vunpack.c.l.b16 %v290
      %v390 = vunpack.c.h.b16 %v290
      %v391 = vunpack.c.l.b16 %v291
      %v392 = vunpack.c.h.b16 %v291
      %v393 = vunpack.c.l.b16 %v292
      %v394 = vunpack.c.h.b16 %v292
      %v395 = vunpack.c.l.b16 %v293
      %v396 = vunpack.c.h.b16 %v293
      %v397 = vpack.c.b16 %v373, %v369
      %v398 = vpack.c.b16 %v374, %v370
      %v399 = vpack.c.b16 %v375, %v371
      %v400 = vpack.c.b16 %v376, %v372
      %v401 = vpack.c.b16 %v381, %v377
      %v402 = vpack.c.b16 %v382, %v378
      %v403 = vpack.c.b16 %v383, %v379
      %v404 = vpack.c.b16 %v384, %v380
      %v405 = vpack.c.b16 %v389, %v385
      %v406 = vpack.c.b16 %v390, %v386
      %v407 = vpack.c.b16 %v391, %v387
      %v408 = vpack.c.b16 %v392, %v388
      %v409 = vpack.c.b16 %v393, %v393
      %v410 = vpack.c.b16 %v394, %v394
      %v411 = vpack.c.b16 %v395, %v395
      %v412 = vpack.c.b16 %v396, %v396
      %v479 = vunpack.c.l.b16 %v294
      %v480 = vunpack.c.l.b16 %v295
      %v481 = vunpack.c.l.b16 %v296
      %v482 = vunpack.c.l.b16 %v297
      %v483 = vunpack.c.l.b16 %v298
      %v484 = vunpack.c.l.b16 %v299
      %v485 = vunpack.c.l.b16 %v300
      %v486 = vunpack.c.l.b16 %v301
      %v487 = vunpack.c.l.b16 %v302
      %v488 = vunpack.c.l.b16 %v303
      %v489 = vunpack.c.l.b16 %v304
      %v490 = vunpack.c.l.b16 %v305
      %v491 = vunpack.c.l.b16 %v306
      %v492 = vunpack.c.l.b16 %v307
      %v493 = vunpack.c.l.b16 %v308
      %v494 = vunpack.c.l.b16 %v309
      %v495 = vunpack.c.l.b16 %v310
      %v496 = vunpack.c.l.b16 %v311
      %v497 = vunpack.c.l.b16 %v312
      %v498 = vunpack.c.l.b16 %v313
      %v499 = vunpack.c.l.b16 %v314
      %v500 = vunpack.c.l.b16 %v315
      %v501 = vunpack.c.l.b16 %v316
      %v502 = vunpack.c.l.b16 %v317
      %v503 = vunpack.c.l.b16 %v318
      %v504 = vunpack.c.l.b16 %v319
      %v505 = vunpack.c.l.b16 %v320
      %v506 = vunpack.c.l.b16 %v321
      %v507 = vunpack.c.l.b16 %v322
      %v508 = vunpack.c.l.b16 %v323
      %v509 = vunpack.c.l.b16 %v324
      %v510 = vunpack.c.l.b16 %v325
      %v511 = vunpack.c.l.b16 %v326
      %v512 = vunpack.c.l.b16 %v327
      %v513 = vunpack.c.l.b16 %v328
      %v514 = vunpack.c.l.b16 %v329
      %v515 = vunpack.c.l.b16 %v330
      %v516 = vunpack.c.l.b16 %v331
      %v517 = vunpack.c.l.b16 %v332
      %v518 = vunpack.c.l.b16 %v333
      %v519 = vunpack.c.l.b16 %v334
      %v520 = vunpack.c.l.b16 %v335
      %v521 = vunpack.c.l.b16 %v336
      %v522 = vunpack.c.l.b16 %v337
      %v523 = vunpack.c.l.b16 %v338
      %v524 = vunpack.c.l.b16 %v339
      %v525 = vunpack.c.l.b16 %v340
      %v526 = vunpack.c.l.b16 %v341
      %v527 = vunpack.c.l.b16 %v342
      %v528 = vunpack.c.l.b16 %v343
      %v529 = vunpack.c.l.b16 %v344
      %v530 = vunpack.c.l.b16 %v345
      %v531 = vunpack.c.l.b16 %v346
      %v532 = vunpack.c.l.b16 %v347
      %v533 = vpack.c.b16 %v480, %v479
      %v534 = vpack.c.b16 %v482, %v481
      %v535 = vpack.c.b16 %v484, %v483
      %v536 = vpack.c.b16 %v486, %v485
      %v537 = vpack.c.b16 %v488, %v487
      %v538 = vpack.c.b16 %v490, %v489
      %v539 = vpack.c.b16 %v492, %v491
      %v540 = vpack.c.b16 %v494, %v493
      %v541 = vpack.c.b16 %v496, %v495
      %v542 = vpack.c.b16 %v498, %v497
      %v543 = vpack.c.b16 %v500, %v499
      %v544 = vpack.c.b16 %v502, %v501
      %v545 = vpack.c.b16 %v504, %v503
      %v546 = vpack.c.b16 %v506, %v505
      %v547 = vpack.c.b16 %v508, %v507
      %v548 = vpack.c.b16 %v510, %v509
      %v549 = vpack.c.b16 %v512, %v511
      %v550 = vpack.c.b16 %v514, %v513
      %v551 = vpack.c.b16 %v516, %v515
      %v552 = vpack.c.b16 %v518, %v517
      %v553 = vpack.c.b16 %v520, %v519
      %v554 = vpack.c.b16 %v522, %v521
      %v555 = vpack.c.b16 %v524, %v523
      %v556 = vpack.c.b16 %v526, %v525
      %v557 = vpack.c.b16 %v528, %v527
      %v558 = vpack.c.b16 %v530, %v529
      %v559 = vpack.c.b16 %v532, %v531
      %vm587 = vcmask 392192
      %v589 = vsel %vm587, %v400, 0
      %v592 = vsel %vm587, %v404, 0
      %v595 = vsel %vm587, %v408, 0
      %v598 = vsel %vm587, %v412, 0
      %600 = vmatprep.subr.bf16.mxu0 0
      %601 = vmatpush1.bf16.msra.mxu0 %v533
      %602 = vmatprep.subr.bf16.mxu0 0
      %603 = vmatpush1.bf16.msra.mxu0 %v534
      %604 = vmatprep.subr.bf16.mxu0 0
      %605 = vmatpush1.bf16.msra.mxu0 %v535
      %606 = vmatprep.subr.bf16.mxu0 0
      %607 = vmatpush1.bf16.msra.mxu0 %v536
      %608 = vmatprep.subr.bf16.mxu0 0
      %609 = vmatpush1.bf16.msra.mxu0 %v537
      %610 = vmatprep.subr.bf16.mxu0 0
      %611 = vmatpush1.bf16.msra.mxu0 %v538
      %612 = vmatprep.subr.bf16.mxu0 0
      %613 = vmatpush1.bf16.msra.mxu0 %v539
      %614 = vmatprep.subr.bf16.mxu0 0
      %615 = vmatpush1.bf16.msra.mxu0 %v540
      %616 = vmatprep.subr.bf16.mxu0 0
      %617 = vmatpush1.bf16.msra.mxu0 %v541
      %618 = vmatprep.subr.bf16.mxu0 0
      %619 = vmatpush1.bf16.msra.mxu0 %v542
      %620 = vmatprep.subr.bf16.mxu0 0
      %621 = vmatpush1.bf16.msra.mxu0 %v543
      %622 = vmatprep.subr.bf16.mxu0 0
      %623 = vmatpush1.bf16.msra.mxu0 %v544
      %624 = vmatprep.subr.bf16.mxu0 0
      %625 = vmatpush1.bf16.msra.mxu0 %v545
      %626 = vmatprep.subr.bf16.mxu0 0
      %627 = vmatpush1.bf16.msra.mxu0 %v546
      %628 = vmatprep.subr.bf16.mxu0 0
      %629 = vmatpush1.bf16.msra.mxu0 %v547
      %630 = vmatprep.subr.bf16.mxu0 0
      %631 = vmatpush1.bf16.msra.mxu0 %v548
      %632 = vmatprep.mubr.bf16.mxu0 %v398
      %633 = vmatmul.mubr.bf16.gmra.mrb[0].mxu0 %v397
      %v634 = vpop.f32.mrb[0].mxu0
      %v635 = vadd.f32 %v353, %v634
      %v636 = vpop.f32.mrb[0].mxu0
      %v637 = vpop.f32.mrb[0].mxu0
      %v638 = vadd.f32 %v353, %v637
      %v639 = vpop.f32.mrb[0].mxu0
      %640 = vmatprep.mubr.bf16.mxu0 %v402
      %641 = vmatmul.mubr.bf16.gmra.mrb[0].mxu0 %v401
      %v642 = vpop.f32.mrb[0].mxu0
      %v643 = vadd.f32 %v353, %v642
      %v644 = vpop.f32.mrb[0].mxu0
      %v645 = vpop.f32.mrb[0].mxu0
      %v646 = vadd.f32 %v353, %v645
      %v647 = vpop.f32.mrb[0].mxu0
      %648 = vmatprep.mubr.bf16.mxu0 %v406
      %649 = vmatmul.mubr.bf16.gmra.mrb[0].mxu0 %v405
      %v650 = vpop.f32.mrb[0].mxu0
      %v651 = vadd.f32 %v353, %v650
      %v652 = vpop.f32.mrb[0].mxu0
      %v653 = vpop.f32.mrb[0].mxu0
      %v654 = vadd.f32 %v353, %v653
      %v655 = vpop.f32.mrb[0].mxu0
      %656 = vmatprep.mubr.bf16.mxu0 %v410
      %657 = vmatmul.mubr.bf16.gmra.mrb[0].mxu0 %v409
      %v658 = vpop.f32.mrb[0].mxu0
      %v659 = vadd.f32 %v353, %v658
      %v660 = vpop.f32.mrb[0].mxu0
      %v661 = vpop.f32.mrb[0].mxu0
      %v662 = vpop.f32.mrb[0].mxu0
      %663 = vdwg.mxu0
      %664 = vmatprep.subr.bf16.mxu0 0
      %665 = vmatpush1.bf16.msra.mxu0 %v549
      %666 = vmatprep.subr.bf16.mxu0 0
      %667 = vmatpush1.bf16.msra.mxu0 %v550
      %668 = vmatprep.subr.bf16.mxu0 0
      %669 = vmatpush1.bf16.msra.mxu0 %v551
      %670 = vmatprep.subr.bf16.mxu0 0
      %671 = vmatpush1.bf16.msra.mxu0 %v552
      %672 = vmatprep.subr.bf16.mxu0 0
      %673 = vmatpush1.bf16.msra.mxu0 %v553
      %674 = vmatprep.subr.bf16.mxu0 0
      %675 = vmatpush1.bf16.msra.mxu0 %v554
      %676 = vmatprep.subr.bf16.mxu0 0
      %677 = vmatpush1.bf16.msra.mxu0 %v555
      %678 = vmatprep.subr.bf16.mxu0 0
      %679 = vmatpush1.bf16.msra.mxu0 %v556
      %680 = vmatprep.subr.bf16.mxu0 0
      %681 = vmatpush1.bf16.msra.mxu0 %v557
      %682 = vmatprep.subr.bf16.mxu0 0
      %683 = vmatpush1.bf16.msra.mxu0 %v558
      %684 = vmatprep.subr.bf16.mxu0 0
      %685 = vmatpush1.bf16.msra.mxu0 %v559
      %686 = vmatprep.subr.bf16.mxu0 0
      %687 = vmatpush1.bf16.msra.mxu0 0
      %688 = vmatprep.subr.bf16.mxu0 0
      %689 = vmatpush1.bf16.msra.mxu0 0
      %690 = vmatprep.subr.bf16.mxu0 0
      %691 = vmatpush1.bf16.msra.mxu0 0
      %692 = vmatprep.subr.bf16.mxu0 0
      %693 = vmatpush1.bf16.msra.mxu0 0
      %694 = vmatprep.subr.bf16.mxu0 0
      %695 = vmatpush1.bf16.msra.mxu0 0
      %696 = vmatprep.mubr.bf16.mxu0 %v589
      %697 = vmatmul.mubr.bf16.gmra.mrb[0].mxu0 %v399
      %v698 = vpop.f32.mrb[0].mxu0
      %v699 = vadd.f32 %v635, %v698
      %v700 = vpop.f32.mrb[0].mxu0
      %v701 = vpop.f32.mrb[0].mxu0
      %v702 = vadd.f32 %v638, %v701
      %v703 = vpop.f32.mrb[0].mxu0
      %704 = vmatprep.mubr.bf16.mxu0 %v592
      %705 = vmatmul.mubr.bf16.gmra.mrb[0].mxu0 %v403
      %v706 = vpop.f32.mrb[0].mxu0
      %v707 = vadd.f32 %v643, %v706
      %v708 = vpop.f32.mrb[0].mxu0
      %v709 = vpop.f32.mrb[0].mxu0
      %v710 = vadd.f32 %v646, %v709
      %v711 = vpop.f32.mrb[0].mxu0
      %712 = vmatprep.mubr.bf16.mxu0 %v595
      %713 = vmatmul.mubr.bf16.gmra.mrb[0].mxu0 %v407
      %v714 = vpop.f32.mrb[0].mxu0
      %v715 = vadd.f32 %v651, %v714
      %v716 = vpop.f32.mrb[0].mxu0
      %v717 = vpop.f32.mrb[0].mxu0
      %v718 = vadd.f32 %v654, %v717
      %v719 = vpop.f32.mrb[0].mxu0
      %720 = vmatprep.mubr.bf16.mxu0 %v598
      %721 = vmatmul.mubr.bf16.gmra.mrb[0].mxu0 %v411
      %v722 = vpop.f32.mrb[0].mxu0
      %v723 = vadd.f32 %v659, %v722
      %v724 = vpop.f32.mrb[0].mxu0
      %v725 = vpop.f32.mrb[0].mxu0
      %v726 = vpop.f32.mrb[0].mxu0
      %727 = vdwg.mxu0
      %v728 = vadd.f32 %v699, %v702
      %v729 = vadd.f32 %v728, %v707
      %v730 = vadd.f32 %v729, %v710
      %v731 = vadd.f32 %v730, %v715
      %v732 = vadd.f32 %v731, %v718
      %vm733 = vcmask 1040384
      %v734 = vsel %vm733, %v723, 0.0
      %v735 = vadd.f32 %v732, %v734
      %v736 = vrot.slane %v735, 4
      %v737 = vadd.f32 %v735, %v736
      %v738 = vrot.slane %v737, 2
      %v739 = vadd.f32 %v737, %v738
      %v740 = vrot.slane %v739, 1
      %v741 = vadd.f32 %v739, %v740
      %v742 = vld [vmem:[%s5] sm:$0xff]
      %v743 = vld [vmem:[%s5 + $0x8] sm:$0xff]
      %v744 = vld [vmem:[%s5 + $0x10] sm:$0xff]
      %v745 = vld [vmem:[%s5 + $0x18] sm:$0xff]
      %v746 = vld [vmem:[%s5 + $0x20] sm:$0xff]
      %v747 = vld [vmem:[%s5 + $0x28] sm:$0xff]
      %v748 = vld [vmem:[%s5 + $0x30] sm:$0xff]
      %v749 = vld [vmem:[%s5 + $0x38] sm:$0xff]
      %v750 = vld [vmem:[%s5 + $0x40] sm:$0xff]
      %v751 = vld [vmem:[%s5 + $0x48] sm:$0xff]
      %v752 = vld [vmem:[%s5 + $0x50] sm:$0xff]
      %v753 = vld [vmem:[%s5 + $0x58] sm:$0xff]
      %v754 = vld [vmem:[%s5 + $0x60] sm:$0xff]
      %v755 = vld [vmem:[%s5 + $0x68] sm:$0xff]
      %v756 = vld [vmem:[%s5 + $0x70] sm:$0xff]
      %v757 = vld [vmem:[%s5 + $0x78] sm:$0xff]
      %758 = vmatprep.subr.mxu0 0.0
      %759 = vmatpush1.msra.mxu0 %v742
      %760 = vmatprep.subr.mxu0 0.0
      %761 = vmatpush1.msra.mxu0 %v743
      %762 = vmatprep.subr.mxu0 0.0
      %763 = vmatpush1.msra.mxu0 %v744
      %764 = vmatprep.subr.mxu0 0.0
      %765 = vmatpush1.msra.mxu0 %v745
      %766 = vmatprep.subr.mxu0 0.0
      %767 = vmatpush1.msra.mxu0 %v746
      %768 = vmatprep.subr.mxu0 0.0
      %769 = vmatpush1.msra.mxu0 %v747
      %770 = vmatprep.subr.mxu0 0.0
      %771 = vmatpush1.msra.mxu0 %v748
      %772 = vmatprep.subr.mxu0 0.0
      %773 = vmatpush1.msra.mxu0 %v749
      %774 = vmatprep.subr.mxu0 0.0
      %775 = vmatpush1.msra.mxu0 %v750
      %776 = vmatprep.subr.mxu0 0.0
      %777 = vmatpush1.msra.mxu0 %v751
      %778 = vmatprep.subr.mxu0 0.0
      %779 = vmatpush1.msra.mxu0 %v752
      %780 = vmatprep.subr.mxu0 0.0
      %781 = vmatpush1.msra.mxu0 %v753
      %782 = vmatprep.subr.mxu0 0.0
      %783 = vmatpush1.msra.mxu0 %v754
      %784 = vmatprep.subr.mxu0 0.0
      %785 = vmatpush1.msra.mxu0 %v755
      %786 = vmatprep.subr.mxu0 0.0
      %787 = vmatpush1.msra.mxu0 %v756
      %788 = vmatprep.subr.mxu0 0.0
      %789 = vmatpush1.msra.mxu0 %v757
      %790 = vmatprep.subr.mxu0 0.0
      %791 = vmatpush1.msra.mxu0 0.0
      %792 = vmatprep.subr.mxu0 0.0
      %793 = vmatpush1.msra.mxu0 0.0
      %794 = vmatprep.subr.mxu0 0.0
      %795 = vmatpush1.msra.mxu0 0.0
      %796 = vmatprep.subr.mxu0 0.0
      %797 = vmatpush1.msra.mxu0 0.0
      %798 = vmatprep.subr.mxu0 0.0
      %799 = vmatpush1.msra.mxu0 0.0
      %800 = vmatprep.subr.mxu0 0.0
      %801 = vmatpush1.msra.mxu0 0.0
      %802 = vmatprep.subr.mxu0 0.0
      %803 = vmatpush1.msra.mxu0 0.0
      %804 = vmatprep.subr.mxu0 0.0
      %805 = vmatpush1.msra.mxu0 0.0
      %806 = vmatprep.subr.mxu0 0.0
      %807 = vmatpush1.msra.mxu0 0.0
      %808 = vmatprep.subr.mxu0 0.0
      %809 = vmatpush1.msra.mxu0 0.0
      %810 = vmatprep.subr.mxu0 0.0
      %811 = vmatpush1.msra.mxu0 0.0
      %812 = vmatprep.subr.mxu0 0.0
      %813 = vmatpush1.msra.mxu0 0.0
      %814 = vmatprep.subr.mxu0 0.0
      %815 = vmatpush1.msra.mxu0 0.0
      %816 = vmatprep.subr.mxu0 0.0
      %817 = vmatpush1.msra.mxu0 0.0
      %818 = vmatprep.subr.mxu0 0.0
      %819 = vmatpush1.msra.mxu0 0.0
      %820 = vmatprep.subr.mxu0 0.0
      %821 = vmatpush1.msra.mxu0 0.0
      %822 = vmatprep.mubr.f32.mxu0 0.0
      %823 = vmatmul.mubr.f32.gmra.mrb[0].mxu0 %v741
      %v824 = vpop.f32.mrb[0].mxu0
      %v825 = vadd.f32 0.0, %v824
      %v826 = vpop.f32.mrb[0].mxu0
      %827 = vdwg.mxu0
      %v828 = vmul.f32 %v825, 0.0017006802
      %v829 = vld [vmem:[%s6] sm:$0xf]
      %vm830 = vcmask 31744
      %v832 = vsel %vm830, %v828, 0
      %vm834 = vcmask 1043456
      %v836 = vsel %vm834, %v829, 0
      %838 = vmatprep.subr.mxu0 0.0
      %839 = vmatpush1.msra.mxu0 %v836
      %840 = vmatprep.subr.mxu0 0.0
      %841 = vmatpush1.msra.mxu0 0.0
      %842 = vmatprep.subr.mxu0 0.0
      %843 = vmatpush1.msra.mxu0 0.0
      %844 = vmatprep.subr.mxu0 0.0
      %845 = vmatpush1.msra.mxu0 0.0
      %846 = vmatprep.subr.mxu0 0.0
      %847 = vmatpush1.msra.mxu0 0.0
      %848 = vmatprep.subr.mxu0 0.0
      %849 = vmatpush1.msra.mxu0 0.0
      %850 = vmatprep.subr.mxu0 0.0
      %851 = vmatpush1.msra.mxu0 0.0
      %852 = vmatprep.subr.mxu0 0.0
      %853 = vmatpush1.msra.mxu0 0.0
      %854 = vmatprep.subr.mxu0 0.0
      %855 = vmatpush1.msra.mxu0 0.0
      %856 = vmatprep.subr.mxu0 0.0
      %857 = vmatpush1.msra.mxu0 0.0
      %858 = vmatprep.subr.mxu0 0.0
      %859 = vmatpush1.msra.mxu0 0.0
      %860 = vmatprep.subr.mxu0 0.0
      %861 = vmatpush1.msra.mxu0 0.0
      %862 = vmatprep.subr.mxu0 0.0
      %863 = vmatpush1.msra.mxu0 0.0
      %864 = vmatprep.subr.mxu0 0.0
      %865 = vmatpush1.msra.mxu0 0.0
      %866 = vmatprep.subr.mxu0 0.0
      %867 = vmatpush1.msra.mxu0 0.0
      %868 = vmatprep.subr.mxu0 0.0
      %869 = vmatpush1.msra.mxu0 0.0
      %870 = vmatprep.subr.mxu0 0.0
      %871 = vmatpush1.msra.mxu0 0.0
      %872 = vmatprep.subr.mxu0 0.0
      %873 = vmatpush1.msra.mxu0 0.0
      %874 = vmatprep.subr.mxu0 0.0
      %875 = vmatpush1.msra.mxu0 0.0
      %876 = vmatprep.subr.mxu0 0.0
      %877 = vmatpush1.msra.mxu0 0.0
      %878 = vmatprep.subr.mxu0 0.0
      %879 = vmatpush1.msra.mxu0 0.0
      %880 = vmatprep.subr.mxu0 0.0
      %881 = vmatpush1.msra.mxu0 0.0
      %882 = vmatprep.subr.mxu0 0.0
      %883 = vmatpush1.msra.mxu0 0.0
      %884 = vmatprep.subr.mxu0 0.0
      %885 = vmatpush1.msra.mxu0 0.0
      %886 = vmatprep.subr.mxu0 0.0
      %887 = vmatpush1.msra.mxu0 0.0
      %888 = vmatprep.subr.mxu0 0.0
      %889 = vmatpush1.msra.mxu0 0.0
      %890 = vmatprep.subr.mxu0 0.0
      %891 = vmatpush1.msra.mxu0 0.0
      %892 = vmatprep.subr.mxu0 0.0
      %893 = vmatpush1.msra.mxu0 0.0
      %894 = vmatprep.subr.mxu0 0.0
      %895 = vmatpush1.msra.mxu0 0.0
      %896 = vmatprep.subr.mxu0 0.0
      %897 = vmatpush1.msra.mxu0 0.0
      %898 = vmatprep.subr.mxu0 0.0
      %899 = vmatpush1.msra.mxu0 0.0
      %900 = vmatprep.subr.mxu0 0.0
      %901 = vmatpush1.msra.mxu0 0.0
      %902 = vmatprep.mubr.f32.mxu0 0.0
      %903 = vmatmul.mubr.f32.gmra.mrb[0].mxu0 %v832
      %v904 = vpop.f32.mrb[0].mxu0
      %v905 = vadd.f32 0.0, %v904
      %v906 = vpop.f32.mrb[0].mxu0
      %907 = vdwg.mxu0
      %v908 = vlaneseq
      %v909 = vshrl.u32 %v908, 7
      %v910 = vsub.s32 0, %v909
      %v911 = vrot.slane %v905, %v910
      %v912 = vsub.f32 %v699, %v911
      %v913 = vsub.f32 %v702, %v911
      %v914 = vsub.f32 %v707, %v911
      %v915 = vsub.f32 %v710, %v911
      %v916 = vsub.f32 %v715, %v911
      %v917 = vsub.f32 %v718, %v911
      %v918 = vsub.f32 %v723, %v911
      %v919 = vmul.f32 %v912, %v912
      %v920 = vmul.f32 %v913, %v913
      %v921 = vmul.f32 %v914, %v914
      %v922 = vmul.f32 %v915, %v915
      %v923 = vmul.f32 %v916, %v916
      %v924 = vmul.f32 %v917, %v917
      %v925 = vmul.f32 %v918, %v918
      %v926 = vadd.f32 %v919, %v920
      %v927 = vadd.f32 %v926, %v921
      %v928 = vadd.f32 %v927, %v922
      %v929 = vadd.f32 %v928, %v923
      %v930 = vadd.f32 %v929, %v924
      %v931 = vsel %vm733, %v925, 0.0
      %v932 = vadd.f32 %v930, %v931
      %v933 = vrot.slane %v932, 4
      %v934 = vadd.f32 %v932, %v933
      %v935 = vrot.slane %v934, 2
      %v936 = vadd.f32 %v934, %v935
      %v937 = vrot.slane %v936, 1
      %v938 = vadd.f32 %v936, %v937
      %939 = vmatprep.subr.mxu0 0.0
      %940 = vmatpush1.msra.mxu0 %v742
      %941 = vmatprep.subr.mxu0 0.0
      %942 = vmatpush1.msra.mxu0 %v743
      %943 = vmatprep.subr.mxu0 0.0
      %944 = vmatpush1.msra.mxu0 %v744
      %945 = vmatprep.subr.mxu0 0.0
      %946 = vmatpush1.msra.mxu0 %v745
      %947 = vmatprep.subr.mxu0 0.0
      %948 = vmatpush1.msra.mxu0 %v746
      %949 = vmatprep.subr.mxu0 0.0
      %950 = vmatpush1.msra.mxu0 %v747
      %951 = vmatprep.subr.mxu0 0.0
      %952 = vmatpush1.msra.mxu0 %v748
      %953 = vmatprep.subr.mxu0 0.0
      %954 = vmatpush1.msra.mxu0 %v749
      %955 = vmatprep.subr.mxu0 0.0
      %956 = vmatpush1.msra.mxu0 %v750
      %957 = vmatprep.subr.mxu0 0.0
      %958 = vmatpush1.msra.mxu0 %v751
      %959 = vmatprep.subr.mxu0 0.0
      %960 = vmatpush1.msra.mxu0 %v752
      %961 = vmatprep.subr.mxu0 0.0
      %962 = vmatpush1.msra.mxu0 %v753
      %963 = vmatprep.subr.mxu0 0.0
      %964 = vmatpush1.msra.mxu0 %v754
      %965 = vmatprep.subr.mxu0 0.0
      %966 = vmatpush1.msra.mxu0 %v755
      %967 = vmatprep.subr.mxu0 0.0
      %968 = vmatpush1.msra.mxu0 %v756
      %969 = vmatprep.subr.mxu0 0.0
      %970 = vmatpush1.msra.mxu0 %v757
      %971 = vmatprep.subr.mxu0 0.0
      %972 = vmatpush1.msra.mxu0 0.0
      %973 = vmatprep.subr.mxu0 0.0
      %974 = vmatpush1.msra.mxu0 0.0
      %975 = vmatprep.subr.mxu0 0.0
      %976 = vmatpush1.msra.mxu0 0.0
      %977 = vmatprep.subr.mxu0 0.0
      %978 = vmatpush1.msra.mxu0 0.0
      %979 = vmatprep.subr.mxu0 0.0
      %980 = vmatpush1.msra.mxu0 0.0
      %981 = vmatprep.subr.mxu0 0.0
      %982 = vmatpush1.msra.mxu0 0.0
      %983 = vmatprep.subr.mxu0 0.0
      %984 = vmatpush1.msra.mxu0 0.0
      %985 = vmatprep.subr.mxu0 0.0
      %986 = vmatpush1.msra.mxu0 0.0
      %987 = vmatprep.subr.mxu0 0.0
      %988 = vmatpush1.msra.mxu0 0.0
      %989 = vmatprep.subr.mxu0 0.0
      %990 = vmatpush1.msra.mxu0 0.0
      %991 = vmatprep.subr.mxu0 0.0
      %992 = vmatpush1.msra.mxu0 0.0
      %993 = vmatprep.subr.mxu0 0.0
      %994 = vmatpush1.msra.mxu0 0.0
      %995 = vmatprep.subr.mxu0 0.0
      %996 = vmatpush1.msra.mxu0 0.0
      %997 = vmatprep.subr.mxu0 0.0
      %998 = vmatpush1.msra.mxu0 0.0
      %999 = vmatprep.subr.mxu0 0.0
      %1000 = vmatpush1.msra.mxu0 0.0
      %1001 = vmatprep.subr.mxu0 0.0
      %1002 = vmatpush1.msra.mxu0 0.0
      %1003 = vmatprep.mubr.f32.mxu0 0.0
      %1004 = vmatmul.mubr.f32.gmra.mrb[0].mxu0 %v938
      %v1005 = vpop.f32.mrb[0].mxu0
      %v1006 = vadd.f32 0.0, %v1005
      %v1007 = vpop.f32.mrb[0].mxu0
      %1008 = vdwg.mxu0
      %v1009 = vmul.f32 %v1006, 0.0017006802
      %v1010 = vadd.f32 %v1009, 0.001
      %v1011 = vrsqrt.pop %v1010
      %v1013 = vsel %vm830, %v1011, 0
      %1015 = vmatprep.subr.mxu0 0.0
      %1016 = vmatpush1.msra.mxu0 %v836
      %1017 = vmatprep.subr.mxu0 0.0
      %1018 = vmatpush1.msra.mxu0 0.0
      %1019 = vmatprep.subr.mxu0 0.0
      %1020 = vmatpush1.msra.mxu0 0.0
      %1021 = vmatprep.subr.mxu0 0.0
      %1022 = vmatpush1.msra.mxu0 0.0
      %1023 = vmatprep.subr.mxu0 0.0
      %1024 = vmatpush1.msra.mxu0 0.0
      %1025 = vmatprep.subr.mxu0 0.0
      %1026 = vmatpush1.msra.mxu0 0.0
      %1027 = vmatprep.subr.mxu0 0.0
      %1028 = vmatpush1.msra.mxu0 0.0
      %1029 = vmatprep.subr.mxu0 0.0
      %1030 = vmatpush1.msra.mxu0 0.0
      %1031 = vmatprep.subr.mxu0 0.0
      %1032 = vmatpush1.msra.mxu0 0.0
      %1033 = vmatprep.subr.mxu0 0.0
      %1034 = vmatpush1.msra.mxu0 0.0
      %1035 = vmatprep.subr.mxu0 0.0
      %1036 = vmatpush1.msra.mxu0 0.0
      %1037 = vmatprep.subr.mxu0 0.0
      %1038 = vmatpush1.msra.mxu0 0.0
      %1039 = vmatprep.subr.mxu0 0.0
      %1040 = vmatpush1.msra.mxu0 0.0
      %1041 = vmatprep.subr.mxu0 0.0
      %1042 = vmatpush1.msra.mxu0 0.0
      %1043 = vmatprep.subr.mxu0 0.0
      %1044 = vmatpush1.msra.mxu0 0.0
      %1045 = vmatprep.subr.mxu0 0.0
      %1046 = vmatpush1.msra.mxu0 0.0
      %1047 = vmatprep.subr.mxu0 0.0
      %1048 = vmatpush1.msra.mxu0 0.0
      %1049 = vmatprep.subr.mxu0 0.0
      %1050 = vmatpush1.msra.mxu0 0.0
      %1051 = vmatprep.subr.mxu0 0.0
      %1052 = vmatpush1.msra.mxu0 0.0
      %1053 = vmatprep.subr.mxu0 0.0
      %1054 = vmatpush1.msra.mxu0 0.0
      %1055 = vmatprep.subr.mxu0 0.0
      %1056 = vmatpush1.msra.mxu0 0.0
      %1057 = vmatprep.subr.mxu0 0.0
      %1058 = vmatpush1.msra.mxu0 0.0
      %1059 = vmatprep.subr.mxu0 0.0
      %1060 = vmatpush1.msra.mxu0 0.0
      %1061 = vmatprep.subr.mxu0 0.0
      %1062 = vmatpush1.msra.mxu0 0.0
      %1063 = vmatprep.subr.mxu0 0.0
      %1064 = vmatpush1.msra.mxu0 0.0
      %1065 = vmatprep.subr.mxu0 0.0
      %1066 = vmatpush1.msra.mxu0 0.0
      %1067 = vmatprep.subr.mxu0 0.0
      %1068 = vmatpush1.msra.mxu0 0.0
      %1069 = vmatprep.subr.mxu0 0.0
      %1070 = vmatpush1.msra.mxu0 0.0
      %1071 = vmatprep.subr.mxu0 0.0
      %1072 = vmatpush1.msra.mxu0 0.0
      %1073 = vmatprep.subr.mxu0 0.0
      %1074 = vmatpush1.msra.mxu0 0.0
      %1075 = vmatprep.subr.mxu0 0.0
      %1076 = vmatpush1.msra.mxu0 0.0
      %1077 = vmatprep.subr.mxu0 0.0
      %1078 = vmatpush1.msra.mxu0 0.0
      %1079 = vmatprep.mubr.f32.mxu0 0.0
      %1080 = vmatmul.mubr.f32.gmra.mrb[0].mxu0 %v1013
      %v1081 = vpop.f32.mrb[0].mxu0
      %v1082 = vadd.f32 0.0, %v1081
      %v1083 = vpop.f32.mrb[0].mxu0
      %1084 = vdwg.mxu0
      %v1085 = vld [vmem:[%s3] sm:$0x1]
      %v1086 = vmul.f32 %v1082, %v1085
      %v1087 = vld [vmem:[%s4] sm:$0x1]
      %v1088 = vmul.f32 %v905, %v1086
      %v1089 = vsub.f32 %v1087, %v1088
      %v1090 = vlaneseq
      %v1091 = vshrl.u32 %v1090, 7
      %v1092 = vsub.s32 0, %v1091
      %v1093 = vrot.slane %v1086, %v1092
      %v1094 = vmul.f32 %v699, %v1093
      %v1095 = vmul.f32 %v702, %v1093
      %v1096 = vmul.f32 %v707, %v1093
      %v1097 = vmul.f32 %v710, %v1093
      %v1098 = vmul.f32 %v715, %v1093
      %v1099 = vmul.f32 %v718, %v1093
      %v1100 = vmul.f32 %v723, %v1093
      %v1102 = vlaneseq
      %v1103 = vshrl.u32 %v1102, 7
      %v1104 = vsub.s32 0, %v1103
      %v1105 = vrot.slane %v1089, %v1104
      %v1107 = vadd.f32 %v1094, %v1105
      %v1108 = vadd.f32 %v1095, %v1105
      %v1109 = vadd.f32 %v1096, %v1105
      %v1110 = vadd.f32 %v1097, %v1105
      %v1111 = vadd.f32 %v1098, %v1105
      %v1112 = vadd.f32 %v1099, %v1105
      %v1113 = vadd.f32 %v1100, %v1105
      %v1114 = vmax.f32 %v1107, 0.0
      %v1115 = vmax.f32 %v1108, 0.0
      %v1116 = vmax.f32 %v1109, 0.0
      %v1117 = vmax.f32 %v1110, 0.0
      %v1118 = vmax.f32 %v1111, 0.0
      %v1119 = vmax.f32 %v1112, 0.0
      %v1120 = vmax.f32 %v1113, 0.0
      %1121 = vst [vmem:[%s278] sm:$0xff] %v1114
      %1122 = vst [vmem:[%s278 + $0x8] sm:$0xff] %v1115
      %1123 = vst [vmem:[%s278 + $0x10] sm:$0xff] %v1116
      %1124 = vst [vmem:[%s278 + $0x18] sm:$0xff] %v1117
      %1125 = vst [vmem:[%s278 + $0x20] sm:$0xff] %v1118
      %1126 = vst [vmem:[%s278 + $0x28] sm:$0xff] %v1119
      %1127 = vst [vmem:[%s278 + $0x30] sm:$0x1] %v1120
      %p1128 = scmp.lt.s32.totalorder %s18, 1
      %s1129 = scalar_select %p1128, %s18, 1
      %s1130 = smul.addr %s1129, 7
      %s1131 = smul.addr %s1130, 8
      %s1132 = scalar_lea.vmem %s7, %s1131
      // Predicated region
      $region49: #{inception_b_forward.8} parent=47 // pred_check
        %p1133 = pneg %p188
      $region50: #{inception_b_forward.8} parent=47 // pred_check_branch
        %1135 = sbr.rel (%p1133) target = $region52
      $region51: #{inception_b_forward.8} parent=47 // pred_region
        _
      $region52: #{inception_b_forward.8} parent=47 // pred_fallthru
        _
    $region48: #{inception_b_forward.8} parent=5 // pred_fallthru
      _
    %p1136 = scmp.le.s32.totalorder 2, %s13
    // Predicated region
    $region53: #{inception_b_forward.8} parent=5 // pred_check
      %p1137 = pneg %p1136
    $region54: #{inception_b_forward.8} parent=5 // pred_check_branch
      %1139 = sbr.rel (%p1137) target = $region56
    $region55: #{inception_b_forward.8} parent=5 // pred_region
      %s1140 = ssub.s32 %s13, 2
      // Predicated region
      $region57: #{inception_b_forward.8} parent=55 // pred_check
        %p1141 = pneg %p194
      $region58: #{inception_b_forward.8} parent=55 // pred_check_branch
        %1143 = sbr.rel (%p1141) target = $region60
      $region59: #{inception_b_forward.8} parent=55 // pred_region
        %p1144 = scmp.lt.s32.totalorder %s19, 1
        %s1145 = scalar_select %p1144, %s19, 1
        %s1146 = smul.addr %s1145, 7
        %s1147 = smul.addr %s1146, 8
        %s1148 = scalar_lea.vmem %s7, %s1147
      $region60: #{inception_b_forward.8} parent=55 // pred_fallthru
        _
    $region56: #{inception_b_forward.8} parent=5 // pred_fallthru
      _
  $region6: #{inception_b_forward.8} parent=0 // loop_footer
    %s17 = sadd.s32 1, %s13
  $region7: #{inception_b_forward.8} parent=0 // loop_footer_branch
    %12 = sbr.rel target = $region3
  $region8: #{inception_b_forward.8} parent=0 // loop_exit
    _

// kernel: inception_b_forward.5
$region0: #{inception_b_forward.5}
  #allocation0 [shape = 'u32[]', space=smem, size = 0x4, offset = 0x4, fixed_abs, tag = 'smem constant byte address 0x4 - core index']
  #allocation1 [shape = 'u32[144,128]{1,0:T(1,128)}', space=vmem, size = 0x12000, scoped, tag = 'internal scratch']
  %s0 = inlined_call_operand.vmem [shape: bf16[2,49,48], index: 0, kind: input, shape index: {}]
  %s1 = inlined_call_operand.vmem [shape: bf16[48,128], index: 1, kind: input, shape index: {}]
  %s2 = inlined_call_operand.vmem [shape: f32[1,128], index: 2, kind: input, shape index: {}]
  %s3 = inlined_call_operand.vmem [shape: f32[1,128], index: 3, kind: input, shape index: {}]
  %s4 = inlined_call_operand.vmem [shape: f32[1,128], index: 4, kind: input, shape index: {}]
  %s5 = inlined_call_operand.vmem [shape: f32[128,4], index: 5, kind: input, shape index: {}]
  %s6 = inlined_call_operand.vmem [shape: f32[4,128], index: 6, kind: input, shape index: {}]
  %s7 = inlined_call_operand.vmem [shape: f32[2,49,128], index: 7, kind: output, shape index: {}]
  %s8 = sld [smem:[#allocation0]]
  $region61: #{inception_b_forward.5} parent=0
    _
  %s10 = ssub.s32 1, %s8
  %s11 = scalar_select 0, %s10, %s8
  loop: start=0, step=1, limit=4
  $region2: #{inception_b_forward.5} parent=0 // loop_pre_header
    _
  $region3: #{inception_b_forward.5} parent=0 // loop_header
    %s13 = sphi 0, %s17
    %p14 = scmp.ge.s32.totalorder %s13, 4
    %s23 = sphi 0, %s25
    %s26 = sphi 0, %s23
    %s27 = sphi 0, %s26
    %s43 = sphi 0, %s27
    %s47 = sphi 0, %s47
    %s49 = sphi 0, %s47
    %s50 = sphi 0, %s49
    %s64 = sphi 0, %s50
    %s68 = sphi 0, %s68
    %s70 = sphi 0, %s68
    %s71 = sphi 0, %s70
    %s85 = sphi 0, %s71
    %s89 = sphi 0, %s89
    %s91 = sphi 0, %s89
    %s92 = sphi 0, %s91
    %s106 = sphi 0, %s92
    %s110 = sphi 0, %s110
    %s112 = sphi 0, %s110
    %s113 = sphi 0, %s112
    %s127 = sphi 0, %s113
    %s131 = sphi 0, %s131
    %s133 = sphi 0, %s131
    %s134 = sphi 0, %s133
    %s148 = sphi 0, %s134
    %s152 = sphi 0, %s152
    %s154 = sphi 0, %s152
    %s155 = sphi 0, %s154
    %s169 = sphi 0, %s155
    %s175 = sphi 0, %s177
    %s178 = sphi 0, %s175
    %s179 = sphi 0, %s178
    %s195 = sphi 0, %s179
  $region4: #{inception_b_forward.5} parent=0 // loop_header_branch
    %16 = sbr.rel (%p14) target = $region8
  $region5: #{inception_b_forward.5} parent=0 // loop_body
    %s18 = ssub.s32 %s13, 1
    %s19 = ssub.s32 %s13, 2
    %s20 = sadd.s32 %s13, 1
    %s21 = ssub.s32 %s13, %s20
    %p22 = scmp.eq.s32.totalorder %s21, 0
    %s24 = sadd.s32 %s23, 1
    %s25 = scalar_select %p22, %s23, %s24
    %p28 = pneg %p22
    %p29 = scmp.eq.s32.totalorder %s13, 1
    %p30 = por %p28, %p29
    %p31 = scmp.ne.s32.totalorder %s23, %s26
    %p32 = scmp.eq.s32.totalorder %s13, 0
    %p33 = por %p31, %p32
    %p34 = scmp.ne.s32.totalorder %s23, %s26
    %p35 = scmp.eq.s32.totalorder %s18, 1
    %p36 = por %p34, %p35
    %p37 = scmp.ne.s32.totalorder %s26, %s27
    %p38 = scmp.eq.s32.totalorder %s18, 0
    %p39 = por %p37, %p38
    %p40 = scmp.ne.s32.totalorder %s26, %s27
    %p41 = scmp.eq.s32.totalorder %s19, 1
    %p42 = por %p40, %p41
    %p44 = scmp.ne.s32.totalorder %s27, %s43
    %p45 = scmp.eq.s32.totalorder %s19, 0
    %p46 = por %p44, %p45
    %s48 = sadd.s32 %s47, 1
    %p51 = scmp.eq.s32.totalorder %s13, 1
    %p52 = scmp.ne.s32.totalorder %s47, %s49
    %p53 = scmp.eq.s32.totalorder %s13, 0
    %p54 = por %p52, %p53
    %p55 = scmp.ne.s32.totalorder %s47, %s49
    %p56 = scmp.eq.s32.totalorder %s18, 1
    %p57 = por %p55, %p56
    %p58 = scmp.ne.s32.totalorder %s49, %s50
    %p59 = scmp.eq.s32.totalorder %s18, 0
    %p60 = por %p58, %p59
    %p61 = scmp.ne.s32.totalorder %s49, %s50
    %p62 = scmp.eq.s32.totalorder %s19, 1
    %p63 = por %p61, %p62
    %p65 = scmp.ne.s32.totalorder %s50, %s64
    %p66 = scmp.eq.s32.totalorder %s19, 0
    %p67 = por %p65, %p66
    %s69 = sadd.s32 %s68, 1
    %p72 = scmp.eq.s32.totalorder %s13, 1
    %p73 = scmp.ne.s32.totalorder %s68, %s70
    %p74 = scmp.eq.s32.totalorder %s13, 0
    %p75 = por %p73, %p74
    %p76 = scmp.ne.s32.totalorder %s68, %s70
    %p77 = scmp.eq.s32.totalorder %s18, 1
    %p78 = por %p76, %p77
    %p79 = scmp.ne.s32.totalorder %s70, %s71
    %p80 = scmp.eq.s32.totalorder %s18, 0
    %p81 = por %p79, %p80
    %p82 = scmp.ne.s32.totalorder %s70, %s71
    %p83 = scmp.eq.s32.totalorder %s19, 1
    %p84 = por %p82, %p83
    %p86 = scmp.ne.s32.totalorder %s71, %s85
    %p87 = scmp.eq.s32.totalorder %s19, 0
    %p88 = por %p86, %p87
    %s90 = sadd.s32 %s89, 1
    %p93 = scmp.eq.s32.totalorder %s13, 1
    %p94 = scmp.ne.s32.totalorder %s89, %s91
    %p95 = scmp.eq.s32.totalorder %s13, 0
    %p96 = por %p94, %p95
    %p97 = scmp.ne.s32.totalorder %s89, %s91
    %p98 = scmp.eq.s32.totalorder %s18, 1
    %p99 = por %p97, %p98
    %p100 = scmp.ne.s32.totalorder %s91, %s92
    %p101 = scmp.eq.s32.totalorder %s18, 0
    %p102 = por %p100, %p101
    %p103 = scmp.ne.s32.totalorder %s91, %s92
    %p104 = scmp.eq.s32.totalorder %s19, 1
    %p105 = por %p103, %p104
    %p107 = scmp.ne.s32.totalorder %s92, %s106
    %p108 = scmp.eq.s32.totalorder %s19, 0
    %p109 = por %p107, %p108
    %s111 = sadd.s32 %s110, 1
    %p114 = scmp.eq.s32.totalorder %s13, 1
    %p115 = scmp.ne.s32.totalorder %s110, %s112
    %p116 = scmp.eq.s32.totalorder %s13, 0
    %p117 = por %p115, %p116
    %p118 = scmp.ne.s32.totalorder %s110, %s112
    %p119 = scmp.eq.s32.totalorder %s18, 1
    %p120 = por %p118, %p119
    %p121 = scmp.ne.s32.totalorder %s112, %s113
    %p122 = scmp.eq.s32.totalorder %s18, 0
    %p123 = por %p121, %p122
    %p124 = scmp.ne.s32.totalorder %s112, %s113
    %p125 = scmp.eq.s32.totalorder %s19, 1
    %p126 = por %p124, %p125
    %p128 = scmp.ne.s32.totalorder %s113, %s127
    %p129 = scmp.eq.s32.totalorder %s19, 0
    %p130 = por %p128, %p129
    %s132 = sadd.s32 %s131, 1
    %p135 = scmp.eq.s32.totalorder %s13, 1
    %p136 = scmp.ne.s32.totalorder %s131, %s133
    %p137 = scmp.eq.s32.totalorder %s13, 0
    %p138 = por %p136, %p137
    %p139 = scmp.ne.s32.totalorder %s131, %s133
    %p140 = scmp.eq.s32.totalorder %s18, 1
    %p141 = por %p139, %p140
    %p142 = scmp.ne.s32.totalorder %s133, %s134
    %p143 = scmp.eq.s32.totalorder %s18, 0
    %p144 = por %p142, %p143
    %p145 = scmp.ne.s32.totalorder %s133, %s134
    %p146 = scmp.eq.s32.totalorder %s19, 1
    %p147 = por %p145, %p146
    %p149 = scmp.ne.s32.totalorder %s134, %s148
    %p150 = scmp.eq.s32.totalorder %s19, 0
    %p151 = por %p149, %p150
    %s153 = sadd.s32 %s152, 1
    %p156 = scmp.eq.s32.totalorder %s13, 1
    %p157 = scmp.ne.s32.totalorder %s152, %s154
    %p158 = scmp.eq.s32.totalorder %s13, 0
    %p159 = por %p157, %p158
    %p160 = scmp.ne.s32.totalorder %s152, %s154
    %p161 = scmp.eq.s32.totalorder %s18, 1
    %p162 = por %p160, %p161
    %p163 = scmp.ne.s32.totalorder %s154, %s155
    %p164 = scmp.eq.s32.totalorder %s18, 0
    %p165 = por %p163, %p164
    %p166 = scmp.ne.s32.totalorder %s154, %s155
    %p167 = scmp.eq.s32.totalorder %s19, 1
    %p168 = por %p166, %p167
    %p170 = scmp.ne.s32.totalorder %s155, %s169
    %p171 = scmp.eq.s32.totalorder %s19, 0
    %p172 = por %p170, %p171
    %s173 = ssub.s32 %s13, %s20
    %p174 = scmp.eq.s32.totalorder %s173, 0
    %s176 = sadd.s32 %s175, 1
    %s177 = scalar_select %p174, %s175, %s176
    %p180 = pneg %p174
    %p181 = scmp.eq.s32.totalorder %s13, 1
    %p182 = por %p180, %p181
    %p183 = scmp.ne.s32.totalorder %s175, %s178
    %p184 = scmp.eq.s32.totalorder %s13, 0
    %p185 = por %p183, %p184
    %p186 = scmp.ne.s32.totalorder %s175, %s178
    %p187 = scmp.eq.s32.totalorder %s18, 1
    %p188 = por %p186, %p187
    %p189 = scmp.ne.s32.totalorder %s178, %s179
    %p190 = scmp.eq.s32.totalorder %s18, 0
    %p191 = por %p189, %p190
    %p192 = scmp.ne.s32.totalorder %s178, %s179
    %p193 = scmp.eq.s32.totalorder %s19, 1
    %p194 = por %p192, %p193
    %p196 = scmp.ne.s32.totalorder %s179, %s195
    %p197 = scmp.eq.s32.totalorder %s19, 0
    %p198 = por %p196, %p197
    %p199 = scmp.le.s32.totalorder 1, %s13
    %p200 = scmp.lt.s32.totalorder %s13, 3
    %p201 = pnand %p199, %p200
    %p202 = pneg %p201
    // Predicated region
    $region9: #{inception_b_forward.5} parent=5 // pred_check
      _
    $region10: #{inception_b_forward.5} parent=5 // pred_check_branch
      %204 = sbr.rel (%p201) target = $region12
    $region11: #{inception_b_forward.5} parent=5 // pred_region
      %s205 = ssub.s32 %s13, 1
      // Predicated region
      $region13: #{inception_b_forward.5} parent=11 // pred_check
        %p206 = pneg %p60
      $region14: #{inception_b_forward.5} parent=11 // pred_check_branch
        %208 = sbr.rel (%p206) target = $region16
      $region15: #{inception_b_forward.5} parent=11 // pred_region
        _
      $region16: #{inception_b_forward.5} parent=11 // pred_fallthru
        _
      // Predicated region
      $region17: #{inception_b_forward.5} parent=11 // pred_check
        %p209 = pneg %p81
      $region18: #{inception_b_forward.5} parent=11 // pred_check_branch
        %211 = sbr.rel (%p209) target = $region20
      $region19: #{inception_b_forward.5} parent=11 // pred_region
        _
      $region20: #{inception_b_forward.5} parent=11 // pred_fallthru
        _
      // Predicated region
      $region21: #{inception_b_forward.5} parent=11 // pred_check
        %p212 = pneg %p102
      $region22: #{inception_b_forward.5} parent=11 // pred_check_branch
        %214 = sbr.rel (%p212) target = $region24
      $region23: #{inception_b_forward.5} parent=11 // pred_region
        _
      $region24: #{inception_b_forward.5} parent=11 // pred_fallthru
        _
      // Predicated region
      $region25: #{inception_b_forward.5} parent=11 // pred_check
        %p215 = pneg %p123
      $region26: #{inception_b_forward.5} parent=11 // pred_check_branch
        %217 = sbr.rel (%p215) target = $region28
      $region27: #{inception_b_forward.5} parent=11 // pred_region
        _
      $region28: #{inception_b_forward.5} parent=11 // pred_fallthru
        _
      // Predicated region
      $region29: #{inception_b_forward.5} parent=11 // pred_check
        %p218 = pneg %p144
      $region30: #{inception_b_forward.5} parent=11 // pred_check_branch
        %220 = sbr.rel (%p218) target = $region32
      $region31: #{inception_b_forward.5} parent=11 // pred_region
        _
      $region32: #{inception_b_forward.5} parent=11 // pred_fallthru
        _
      // Predicated region
      $region33: #{inception_b_forward.5} parent=11 // pred_check
        %p221 = pneg %p165
      $region34: #{inception_b_forward.5} parent=11 // pred_check_branch
        %223 = sbr.rel (%p221) target = $region36
      $region35: #{inception_b_forward.5} parent=11 // pred_region
        _
      $region36: #{inception_b_forward.5} parent=11 // pred_fallthru
        _
    $region12: #{inception_b_forward.5} parent=5 // pred_fallthru
      _
    %p224 = scmp.lt.s32.totalorder %s13, 2
    // Predicated region
    $region37: #{inception_b_forward.5} parent=5 // pred_check
      %p225 = pneg %p224
    $region38: #{inception_b_forward.5} parent=5 // pred_check_branch
      %227 = sbr.rel (%p225) target = $region40
    $region39: #{inception_b_forward.5} parent=5 // pred_region
      // Predicated region
      $region41: #{inception_b_forward.5} parent=39 // pred_check
        %p228 = pneg %p33
      $region42: #{inception_b_forward.5} parent=39 // pred_check_branch
        %230 = sbr.rel (%p228) target = $region44
      $region43: #{inception_b_forward.5} parent=39 // pred_region
        %p231 = scmp.lt.s32.totalorder %s13, 1
        %s232 = scalar_select %p231, %s13, 1
        %s233 = smul.addr %s232, 7
        %s234 = smul.addr %s233, 4
        %s235 = scalar_lea.vmem %s0, %s234
      $region44: #{inception_b_forward.5} parent=39 // pred_fallthru
        _
    $region40: #{inception_b_forward.5} parent=5 // pred_fallthru
      _
    %p236 = scmp.le.s32.totalorder 1, %s13
    %p237 = scmp.lt.s32.totalorder %s13, 3
    %p238 = pnand %p236, %p237
    %p239 = pneg %p238
    // Predicated region
    $region45: #{inception_b_forward.5} parent=5 // pred_check
      _
    $region46: #{inception_b_forward.5} parent=5 // pred_check_branch
      %241 = sbr.rel (%p238) target = $region48
    $region47: #{inception_b_forward.5} parent=5 // pred_region
      %s242 = ssub.s32 %s13, 1
      %p243 = scmp.lt.s32.totalorder %s18, 1
      %s244 = scalar_select %p243, %s18, 1
      %s245 = smul.addr %s244, 7
      %s246 = smul.addr %s245, 4
      %s247 = scalar_lea.vmem %s0, %s246
      %p248 = pneg %p39
      %p249 = pneg %p36
      %p250 = pneg %p60
      %p251 = pneg %p57
      %p252 = pneg %p81
      %p253 = pneg %p78
      %p254 = pneg %p102
      %p255 = pneg %p99
      %p256 = pneg %p123
      %p257 = pneg %p120
      %p258 = pneg %p144
      %p259 = pneg %p141
      %p260 = pneg %p165
      %p261 = pneg %p162
      %p262 = pneg %p191
      %p263 = pneg %p188
      %p264 = scmp.lt.s32.totalorder %s18, 1
      %s265 = scalar_select %p264, %s18, 1
      %s266 = smul.addr %s265, 7
      %s267 = smul.addr %s266, 8
      %s268 = scalar_lea.vmem %s7, %s267
      %p269 = scmp.lt.s32.totalorder %s18, 1
      %s270 = scalar_select %p269, %s18, 1
      %s271 = smul.addr %s270, 7
      %s272 = smul.addr %s271, 4
      %s273 = scalar_lea.vmem %s0, %s272
      %p274 = scmp.lt.s32.totalorder %s18, 1
      %s275 = scalar_select %p274, %s18, 1
      %s276 = smul.addr %s275, 7
      %s277 = smul.addr %s276, 8
      %s278 = scalar_lea.vmem %s7, %s277
      %v280 = vld [vmem:[%s273] sm:$0xf]
      %v281 = vld [vmem:[%s273 + $0x4] sm:$0xf]
      %v282 = vld [vmem:[%s273 + $0x8] sm:$0xf]
      %v283 = vld [vmem:[%s273 + $0xc] sm:$0xf]
      %v284 = vld [vmem:[%s273 + $0x10] sm:$0xf]
      %v285 = vld [vmem:[%s273 + $0x14] sm:$0xf]
      %v286 = vld [vmem:[%s273 + $0x18] sm:$0x1]
      %v287 = vld [vmem:[%s1] sm:$0xf]
      %v288 = vld [vmem:[%s1 + $0x4] sm:$0xf]
      %v289 = vld [vmem:[%s1 + $0x8] sm:$0xf]
      %v290 = vld [vmem:[%s1 + $0xc] sm:$0xf]
      %v291 = vld [vmem:[%s1 + $0x10] sm:$0xf]
      %v292 = vld [vmem:[%s1 + $0x14] sm:$0xf]
      %v293 = vld [vmem:[%s2] sm:$0x1]
      %v295 = vlaneseq
      %v296 = vshrl.u32 %v295, 7
      %v297 = vsub.s32 0, %v296
      %v298 = vrot.slane %v293, %v297
      %v307 = vunpack.c.l.b16 %v280
      %v308 = vunpack.c.l.b16 %v281
      %v309 = vunpack.c.l.b16 %v282
      %v310 = vunpack.c.l.b16 %v283
      %v311 = vunpack.c.l.b16 %v284
      %v312 = vunpack.c.l.b16 %v285
      %v313 = vunpack.c.l.b16 %v286
      %v314 = vpack.c.b16 %v308, %v307
      %v315 = vpack.c.b16 %v310, %v309
      %v316 = vpack.c.b16 %v312, %v311
      %v317 = vpack.c.b16 %v313, %v313
      %v324 = vunpack.c.l.b16 %v287
      %v325 = vunpack.c.l.b16 %v288
      %v326 = vunpack.c.l.b16 %v289
      %v327 = vunpack.c.l.b16 %v290
      %v328 = vunpack.c.l.b16 %v291
      %v329 = vunpack.c.l.b16 %v292
      %v330 = vpack.c.b16 %v325, %v324
      %v331 = vpack.c.b16 %v327, %v326
      %v332 = vpack.c.b16 %v329, %v328
      %vm336 = vcmask 392192
      %v338 = vsel %vm336, %v314, 0
      %v341 = vsel %vm336, %v315, 0
      %v344 = vsel %vm336, %v316, 0
      %v347 = vsel %vm336, %v317, 0
      %349 = vmatprep.subr.bf16.mxu0 0
      %350 = vmatpush1.bf16.msra.mxu0 %v330
      %351 = vmatprep.subr.bf16.mxu0 0
      %352 = vmatpush1.bf16.msra.mxu0 %v331
      %353 = vmatprep.subr.bf16.mxu0 0
      %354 = vmatpush1.bf16.msra.mxu0 %v332
      %355 = vmatprep.subr.bf16.mxu0 0
      %356 = vmatpush1.bf16.msra.mxu0 0
      %357 = vmatprep.subr.bf16.mxu0 0
      %358 = vmatpush1.bf16.msra.mxu0 0
      %359 = vmatprep.subr.bf16.mxu0 0
      %360 = vmatpush1.bf16.msra.mxu0 0
      %361 = vmatprep.subr.bf16.mxu0 0
      %362 = vmatpush1.bf16.msra.mxu0 0
      %363 = vmatprep.subr.bf16.mxu0 0
      %364 = vmatpush1.bf16.msra.mxu0 0
      %365 = vmatprep.subr.bf16.mxu0 0
      %366 = vmatpush1.bf16.msra.mxu0 0
      %367 = vmatprep.subr.bf16.mxu0 0
      %368 = vmatpush1.bf16.msra.mxu0 0
      %369 = vmatprep.subr.bf16.mxu0 0
      %370 = vmatpush1.bf16.msra.mxu0 0
      %371 = vmatprep.subr.bf16.mxu0 0
      %372 = vmatpush1.bf16.msra.mxu0 0
      %373 = vmatprep.subr.bf16.mxu0 0
      %374 = vmatpush1.bf16.msra.mxu0 0
      %375 = vmatprep.subr.bf16.mxu0 0
      %376 = vmatpush1.bf16.msra.mxu0 0
      %377 = vmatprep.subr.bf16.mxu0 0
      %378 = vmatpush1.bf16.msra.mxu0 0
      %379 = vmatprep.subr.bf16.mxu0 0
      %380 = vmatpush1.bf16.msra.mxu0 0
      %381 = vmatprep.mubr.bf16.mxu0 0
      %382 = vmatmul.mubr.bf16.gmra.mrb[0].mxu0 %v338
      %v383 = vpop.f32.mrb[0].mxu0
      %v384 = vadd.f32 %v298, %v383
      %v385 = vpop.f32.mrb[0].mxu0
      %v386 = vpop.f32.mrb[0].mxu0
      %v387 = vadd.f32 %v298, %v386
      %v388 = vpop.f32.mrb[0].mxu0
      %389 = vmatprep.mubr.bf16.mxu0 0
      %390 = vmatmul.mubr.bf16.gmra.mrb[0].mxu0 %v341
      %v391 = vpop.f32.mrb[0].mxu0
      %v392 = vadd.f32 %v298, %v391
      %v393 = vpop.f32.mrb[0].mxu0
      %v394 = vpop.f32.mrb[0].mxu0
      %v395 = vadd.f32 %v298, %v394
      %v396 = vpop.f32.mrb[0].mxu0
      %397 = vmatprep.mubr.bf16.mxu0 0
      %398 = vmatmul.mubr.bf16.gmra.mrb[0].mxu0 %v344
      %v399 = vpop.f32.mrb[0].mxu0
      %v400 = vadd.f32 %v298, %v399
      %v401 = vpop.f32.mrb[0].mxu0
      %v402 = vpop.f32.mrb[0].mxu0
      %v403 = vadd.f32 %v298, %v402
      %v404 = vpop.f32.mrb[0].mxu0
      %405 = vmatprep.mubr.bf16.mxu0 0
      %406 = vmatmul.mubr.bf16.gmra.mrb[0].mxu0 %v347
      %v407 = vpop.f32.mrb[0].mxu0
      %v408 = vadd.f32 %v298, %v407
      %v409 = vpop.f32.mrb[0].mxu0
      %v410 = vpop.f32.mrb[0].mxu0
      %v411 = vpop.f32.mrb[0].mxu0
      %412 = vdwg.mxu0
      %v413 = vadd.f32 %v384, %v387
      %v414 = vadd.f32 %v413, %v392
      %v415 = vadd.f32 %v414, %v395
      %v416 = vadd.f32 %v415, %v400
      %v417 = vadd.f32 %v416, %v403
      %vm418 = vcmask 1040384
      %v419 = vsel %vm418, %v408, 0.0
      %v420 = vadd.f32 %v417, %v419
      %v421 = vrot.slane %v420, 4
      %v422 = vadd.f32 %v420, %v421
      %v423 = vrot.slane %v422, 2
      %v424 = vadd.f32 %v422, %v423
      %v425 = vrot.slane %v424, 1
      %v426 = vadd.f32 %v424, %v425
      %v427 = vld [vmem:[%s5] sm:$0xff]
      %v428 = vld [vmem:[%s5 + $0x8] sm:$0xff]
      %v429 = vld [vmem:[%s5 + $0x10] sm:$0xff]
      %v430 = vld [vmem:[%s5 + $0x18] sm:$0xff]
      %v431 = vld [vmem:[%s5 + $0x20] sm:$0xff]
      %v432 = vld [vmem:[%s5 + $0x28] sm:$0xff]
      %v433 = vld [vmem:[%s5 + $0x30] sm:$0xff]
      %v434 = vld [vmem:[%s5 + $0x38] sm:$0xff]
      %v435 = vld [vmem:[%s5 + $0x40] sm:$0xff]
      %v436 = vld [vmem:[%s5 + $0x48] sm:$0xff]
      %v437 = vld [vmem:[%s5 + $0x50] sm:$0xff]
      %v438 = vld [vmem:[%s5 + $0x58] sm:$0xff]
      %v439 = vld [vmem:[%s5 + $0x60] sm:$0xff]
      %v440 = vld [vmem:[%s5 + $0x68] sm:$0xff]
      %v441 = vld [vmem:[%s5 + $0x70] sm:$0xff]
      %v442 = vld [vmem:[%s5 + $0x78] sm:$0xff]
      %443 = vmatprep.subr.mxu0 0.0
      %444 = vmatpush1.msra.mxu0 %v427
      %445 = vmatprep.subr.mxu0 0.0
      %446 = vmatpush1.msra.mxu0 %v428
      %447 = vmatprep.subr.mxu0 0.0
      %448 = vmatpush1.msra.mxu0 %v429
      %449 = vmatprep.subr.mxu0 0.0
      %450 = vmatpush1.msra.mxu0 %v430
      %451 = vmatprep.subr.mxu0 0.0
      %452 = vmatpush1.msra.mxu0 %v431
      %453 = vmatprep.subr.mxu0 0.0
      %454 = vmatpush1.msra.mxu0 %v432
      %455 = vmatprep.subr.mxu0 0.0
      %456 = vmatpush1.msra.mxu0 %v433
      %457 = vmatprep.subr.mxu0 0.0
      %458 = vmatpush1.msra.mxu0 %v434
      %459 = vmatprep.subr.mxu0 0.0
      %460 = vmatpush1.msra.mxu0 %v435
      %461 = vmatprep.subr.mxu0 0.0
      %462 = vmatpush1.msra.mxu0 %v436
      %463 = vmatprep.subr.mxu0 0.0
      %464 = vmatpush1.msra.mxu0 %v437
      %465 = vmatprep.subr.mxu0 0.0
      %466 = vmatpush1.msra.mxu0 %v438
      %467 = vmatprep.subr.mxu0 0.0
      %468 = vmatpush1.msra.mxu0 %v439
      %469 = vmatprep.subr.mxu0 0.0
      %470 = vmatpush1.msra.mxu0 %v440
      %471 = vmatprep.subr.mxu0 0.0
      %472 = vmatpush1.msra.mxu0 %v441
      %473 = vmatprep.subr.mxu0 0.0
      %474 = vmatpush1.msra.mxu0 %v442
      %475 = vmatprep.subr.mxu0 0.0
      %476 = vmatpush1.msra.mxu0 0.0
      %477 = vmatprep.subr.mxu0 0.0
      %478 = vmatpush1.msra.mxu0 0.0
      %479 = vmatprep.subr.mxu0 0.0
      %480 = vmatpush1.msra.mxu0 0.0
      %481 = vmatprep.subr.mxu0 0.0
      %482 = vmatpush1.msra.mxu0 0.0
      %483 = vmatprep.subr.mxu0 0.0
      %484 = vmatpush1.msra.mxu0 0.0
      %485 = vmatprep.subr.mxu0 0.0
      %486 = vmatpush1.msra.mxu0 0.0
      %487 = vmatprep.subr.mxu0 0.0
      %488 = vmatpush1.msra.mxu0 0.0
      %489 = vmatprep.subr.mxu0 0.0
      %490 = vmatpush1.msra.mxu0 0.0
      %491 = vmatprep.subr.mxu0 0.0
      %492 = vmatpush1.msra.mxu0 0.0
      %493 = vmatprep.subr.mxu0 0.0
      %494 = vmatpush1.msra.mxu0 0.0
      %495 = vmatprep.subr.mxu0 0.0
      %496 = vmatpush1.msra.mxu0 0.0
      %497 = vmatprep.subr.mxu0 0.0
      %498 = vmatpush1.msra.mxu0 0.0
      %499 = vmatprep.subr.mxu0 0.0
      %500 = vmatpush1.msra.mxu0 0.0
      %501 = vmatprep.subr.mxu0 0.0
      %502 = vmatpush1.msra.mxu0 0.0
      %503 = vmatprep.subr.mxu0 0.0
      %504 = vmatpush1.msra.mxu0 0.0
      %505 = vmatprep.subr.mxu0 0.0
      %506 = vmatpush1.msra.mxu0 0.0
      %507 = vmatprep.mubr.f32.mxu0 0.0
      %508 = vmatmul.mubr.f32.gmra.mrb[0].mxu0 %v426
      %v509 = vpop.f32.mrb[0].mxu0
      %v510 = vadd.f32 0.0, %v509
      %v511 = vpop.f32.mrb[0].mxu0
      %512 = vdwg.mxu0
      %v513 = vmul.f32 %v510, 0.0008503401
      %v514 = vld [vmem:[%s6] sm:$0xf]
      %vm515 = vcmask 31744
      %v517 = vsel %vm515, %v513, 0
      %vm519 = vcmask 1043456
      %v521 = vsel %vm519, %v514, 0
      %523 = vmatprep.subr.mxu0 0.0
      %524 = vmatpush1.msra.mxu0 %v521
      %525 = vmatprep.subr.mxu0 0.0
      %526 = vmatpush1.msra.mxu0 0.0
      %527 = vmatprep.subr.mxu0 0.0
      %528 = vmatpush1.msra.mxu0 0.0
      %529 = vmatprep.subr.mxu0 0.0
      %530 = vmatpush1.msra.mxu0 0.0
      %531 = vmatprep.subr.mxu0 0.0
      %532 = vmatpush1.msra.mxu0 0.0
      %533 = vmatprep.subr.mxu0 0.0
      %534 = vmatpush1.msra.mxu0 0.0
      %535 = vmatprep.subr.mxu0 0.0
      %536 = vmatpush1.msra.mxu0 0.0
      %537 = vmatprep.subr.mxu0 0.0
      %538 = vmatpush1.msra.mxu0 0.0
      %539 = vmatprep.subr.mxu0 0.0
      %540 = vmatpush1.msra.mxu0 0.0
      %541 = vmatprep.subr.mxu0 0.0
      %542 = vmatpush1.msra.mxu0 0.0
      %543 = vmatprep.subr.mxu0 0.0
      %544 = vmatpush1.msra.mxu0 0.0
      %545 = vmatprep.subr.mxu0 0.0
      %546 = vmatpush1.msra.mxu0 0.0
      %547 = vmatprep.subr.mxu0 0.0
      %548 = vmatpush1.msra.mxu0 0.0
      %549 = vmatprep.subr.mxu0 0.0
      %550 = vmatpush1.msra.mxu0 0.0
      %551 = vmatprep.subr.mxu0 0.0
      %552 = vmatpush1.msra.mxu0 0.0
      %553 = vmatprep.subr.mxu0 0.0
      %554 = vmatpush1.msra.mxu0 0.0
      %555 = vmatprep.subr.mxu0 0.0
      %556 = vmatpush1.msra.mxu0 0.0
      %557 = vmatprep.subr.mxu0 0.0
      %558 = vmatpush1.msra.mxu0 0.0
      %559 = vmatprep.subr.mxu0 0.0
      %560 = vmatpush1.msra.mxu0 0.0
      %561 = vmatprep.subr.mxu0 0.0
      %562 = vmatpush1.msra.mxu0 0.0
      %563 = vmatprep.subr.mxu0 0.0
      %564 = vmatpush1.msra.mxu0 0.0
      %565 = vmatprep.subr.mxu0 0.0
      %566 = vmatpush1.msra.mxu0 0.0
      %567 = vmatprep.subr.mxu0 0.0
      %568 = vmatpush1.msra.mxu0 0.0
      %569 = vmatprep.subr.mxu0 0.0
      %570 = vmatpush1.msra.mxu0 0.0
      %571 = vmatprep.subr.mxu0 0.0
      %572 = vmatpush1.msra.mxu0 0.0
      %573 = vmatprep.subr.mxu0 0.0
      %574 = vmatpush1.msra.mxu0 0.0
      %575 = vmatprep.subr.mxu0 0.0
      %576 = vmatpush1.msra.mxu0 0.0
      %577 = vmatprep.subr.mxu0 0.0
      %578 = vmatpush1.msra.mxu0 0.0
      %579 = vmatprep.subr.mxu0 0.0
      %580 = vmatpush1.msra.mxu0 0.0
      %581 = vmatprep.subr.mxu0 0.0
      %582 = vmatpush1.msra.mxu0 0.0
      %583 = vmatprep.subr.mxu0 0.0
      %584 = vmatpush1.msra.mxu0 0.0
      %585 = vmatprep.subr.mxu0 0.0
      %586 = vmatpush1.msra.mxu0 0.0
      %587 = vmatprep.mubr.f32.mxu0 0.0
      %588 = vmatmul.mubr.f32.gmra.mrb[0].mxu0 %v517
      %v589 = vpop.f32.mrb[0].mxu0
      %v590 = vadd.f32 0.0, %v589
      %v591 = vpop.f32.mrb[0].mxu0
      %592 = vdwg.mxu0
      %v593 = vlaneseq
      %v594 = vshrl.u32 %v593, 7
      %v595 = vsub.s32 0, %v594
      %v596 = vrot.slane %v590, %v595
      %v597 = vsub.f32 %v384, %v596
      %v598 = vsub.f32 %v387, %v596
      %v599 = vsub.f32 %v392, %v596
      %v600 = vsub.f32 %v395, %v596
      %v601 = vsub.f32 %v400, %v596
      %v602 = vsub.f32 %v403, %v596
      %v603 = vsub.f32 %v408, %v596
      %v604 = vmul.f32 %v597, %v597
      %v605 = vmul.f32 %v598, %v598
      %v606 = vmul.f32 %v599, %v599
      %v607 = vmul.f32 %v600, %v600
      %v608 = vmul.f32 %v601, %v601
      %v609 = vmul.f32 %v602, %v602
      %v610 = vmul.f32 %v603, %v603
      %v611 = vadd.f32 %v604, %v605
      %v612 = vadd.f32 %v611, %v606
      %v613 = vadd.f32 %v612, %v607
      %v614 = vadd.f32 %v613, %v608
      %v615 = vadd.f32 %v614, %v609
      %v616 = vsel %vm418, %v610, 0.0
      %v617 = vadd.f32 %v615, %v616
      %v618 = vrot.slane %v617, 4
      %v619 = vadd.f32 %v617, %v618
      %v620 = vrot.slane %v619, 2
      %v621 = vadd.f32 %v619, %v620
      %v622 = vrot.slane %v621, 1
      %v623 = vadd.f32 %v621, %v622
      %624 = vmatprep.subr.mxu0 0.0
      %625 = vmatpush1.msra.mxu0 %v427
      %626 = vmatprep.subr.mxu0 0.0
      %627 = vmatpush1.msra.mxu0 %v428
      %628 = vmatprep.subr.mxu0 0.0
      %629 = vmatpush1.msra.mxu0 %v429
      %630 = vmatprep.subr.mxu0 0.0
      %631 = vmatpush1.msra.mxu0 %v430
      %632 = vmatprep.subr.mxu0 0.0
      %633 = vmatpush1.msra.mxu0 %v431
      %634 = vmatprep.subr.mxu0 0.0
      %635 = vmatpush1.msra.mxu0 %v432
      %636 = vmatprep.subr.mxu0 0.0
      %637 = vmatpush1.msra.mxu0 %v433
      %638 = vmatprep.subr.mxu0 0.0
      %639 = vmatpush1.msra.mxu0 %v434
      %640 = vmatprep.subr.mxu0 0.0
      %641 = vmatpush1.msra.mxu0 %v435
      %642 = vmatprep.subr.mxu0 0.0
      %643 = vmatpush1.msra.mxu0 %v436
      %644 = vmatprep.subr.mxu0 0.0
      %645 = vmatpush1.msra.mxu0 %v437
      %646 = vmatprep.subr.mxu0 0.0
      %647 = vmatpush1.msra.mxu0 %v438
      %648 = vmatprep.subr.mxu0 0.0
      %649 = vmatpush1.msra.mxu0 %v439
      %650 = vmatprep.subr.mxu0 0.0
      %651 = vmatpush1.msra.mxu0 %v440
      %652 = vmatprep.subr.mxu0 0.0
      %653 = vmatpush1.msra.mxu0 %v441
      %654 = vmatprep.subr.mxu0 0.0
      %655 = vmatpush1.msra.mxu0 %v442
      %656 = vmatprep.subr.mxu0 0.0
      %657 = vmatpush1.msra.mxu0 0.0
      %658 = vmatprep.subr.mxu0 0.0
      %659 = vmatpush1.msra.mxu0 0.0
      %660 = vmatprep.subr.mxu0 0.0
      %661 = vmatpush1.msra.mxu0 0.0
      %662 = vmatprep.subr.mxu0 0.0
      %663 = vmatpush1.msra.mxu0 0.0
      %664 = vmatprep.subr.mxu0 0.0
      %665 = vmatpush1.msra.mxu0 0.0
      %666 = vmatprep.subr.mxu0 0.0
      %667 = vmatpush1.msra.mxu0 0.0
      %668 = vmatprep.subr.mxu0 0.0
      %669 = vmatpush1.msra.mxu0 0.0
      %670 = vmatprep.subr.mxu0 0.0
      %671 = vmatpush1.msra.mxu0 0.0
      %672 = vmatprep.subr.mxu0 0.0
      %673 = vmatpush1.msra.mxu0 0.0
      %674 = vmatprep.subr.mxu0 0.0
      %675 = vmatpush1.msra.mxu0 0.0
      %676 = vmatprep.subr.mxu0 0.0
      %677 = vmatpush1.msra.mxu0 0.0
      %678 = vmatprep.subr.mxu0 0.0
      %679 = vmatpush1.msra.mxu0 0.0
      %680 = vmatprep.subr.mxu0 0.0
      %681 = vmatpush1.msra.mxu0 0.0
      %682 = vmatprep.subr.mxu0 0.0
      %683 = vmatpush1.msra.mxu0 0.0
      %684 = vmatprep.subr.mxu0 0.0
      %685 = vmatpush1.msra.mxu0 0.0
      %686 = vmatprep.subr.mxu0 0.0
      %687 = vmatpush1.msra.mxu0 0.0
      %688 = vmatprep.mubr.f32.mxu0 0.0
      %689 = vmatmul.mubr.f32.gmra.mrb[0].mxu0 %v623
      %v690 = vpop.f32.mrb[0].mxu0
      %v691 = vadd.f32 0.0, %v690
      %v692 = vpop.f32.mrb[0].mxu0
      %693 = vdwg.mxu0
      %v694 = vmul.f32 %v691, 0.0008503401
      %v695 = vadd.f32 %v694, 0.001
      %v696 = vrsqrt.pop %v695
      %v698 = vsel %vm515, %v696, 0
      %700 = vmatprep.subr.mxu0 0.0
      %701 = vmatpush1.msra.mxu0 %v521
      %702 = vmatprep.subr.mxu0 0.0
      %703 = vmatpush1.msra.mxu0 0.0
      %704 = vmatprep.subr.mxu0 0.0
      %705 = vmatpush1.msra.mxu0 0.0
      %706 = vmatprep.subr.mxu0 0.0
      %707 = vmatpush1.msra.mxu0 0.0
      %708 = vmatprep.subr.mxu0 0.0
      %709 = vmatpush1.msra.mxu0 0.0
      %710 = vmatprep.subr.mxu0 0.0
      %711 = vmatpush1.msra.mxu0 0.0
      %712 = vmatprep.subr.mxu0 0.0
      %713 = vmatpush1.msra.mxu0 0.0
      %714 = vmatprep.subr.mxu0 0.0
      %715 = vmatpush1.msra.mxu0 0.0
      %716 = vmatprep.subr.mxu0 0.0
      %717 = vmatpush1.msra.mxu0 0.0
      %718 = vmatprep.subr.mxu0 0.0
      %719 = vmatpush1.msra.mxu0 0.0
      %720 = vmatprep.subr.mxu0 0.0
      %721 = vmatpush1.msra.mxu0 0.0
      %722 = vmatprep.subr.mxu0 0.0
      %723 = vmatpush1.msra.mxu0 0.0
      %724 = vmatprep.subr.mxu0 0.0
      %725 = vmatpush1.msra.mxu0 0.0
      %726 = vmatprep.subr.mxu0 0.0
      %727 = vmatpush1.msra.mxu0 0.0
      %728 = vmatprep.subr.mxu0 0.0
      %729 = vmatpush1.msra.mxu0 0.0
      %730 = vmatprep.subr.mxu0 0.0
      %731 = vmatpush1.msra.mxu0 0.0
      %732 = vmatprep.subr.mxu0 0.0
      %733 = vmatpush1.msra.mxu0 0.0
      %734 = vmatprep.subr.mxu0 0.0
      %735 = vmatpush1.msra.mxu0 0.0
      %736 = vmatprep.subr.mxu0 0.0
      %737 = vmatpush1.msra.mxu0 0.0
      %738 = vmatprep.subr.mxu0 0.0
      %739 = vmatpush1.msra.mxu0 0.0
      %740 = vmatprep.subr.mxu0 0.0
      %741 = vmatpush1.msra.mxu0 0.0
      %742 = vmatprep.subr.mxu0 0.0
      %743 = vmatpush1.msra.mxu0 0.0
      %744 = vmatprep.subr.mxu0 0.0
      %745 = vmatpush1.msra.mxu0 0.0
      %746 = vmatprep.subr.mxu0 0.0
      %747 = vmatpush1.msra.mxu0 0.0
      %748 = vmatprep.subr.mxu0 0.0
      %749 = vmatpush1.msra.mxu0 0.0
      %750 = vmatprep.subr.mxu0 0.0
      %751 = vmatpush1.msra.mxu0 0.0
      %752 = vmatprep.subr.mxu0 0.0
      %753 = vmatpush1.msra.mxu0 0.0
      %754 = vmatprep.subr.mxu0 0.0
      %755 = vmatpush1.msra.mxu0 0.0
      %756 = vmatprep.subr.mxu0 0.0
      %757 = vmatpush1.msra.mxu0 0.0
      %758 = vmatprep.subr.mxu0 0.0
      %759 = vmatpush1.msra.mxu0 0.0
      %760 = vmatprep.subr.mxu0 0.0
      %761 = vmatpush1.msra.mxu0 0.0
      %762 = vmatprep.subr.mxu0 0.0
      %763 = vmatpush1.msra.mxu0 0.0
      %764 = vmatprep.mubr.f32.mxu0 0.0
      %765 = vmatmul.mubr.f32.gmra.mrb[0].mxu0 %v698
      %v766 = vpop.f32.mrb[0].mxu0
      %v767 = vadd.f32 0.0, %v766
      %v768 = vpop.f32.mrb[0].mxu0
      %769 = vdwg.mxu0
      %v770 = vld [vmem:[%s3] sm:$0x1]
      %v771 = vmul.f32 %v767, %v770
      %v772 = vld [vmem:[%s4] sm:$0x1]
      %v773 = vmul.f32 %v590, %v771
      %v774 = vsub.f32 %v772, %v773
      %v775 = vlaneseq
      %v776 = vshrl.u32 %v775, 7
      %v777 = vsub.s32 0, %v776
      %v778 = vrot.slane %v771, %v777
      %v779 = vmul.f32 %v384, %v778
      %v780 = vmul.f32 %v387, %v778
      %v781 = vmul.f32 %v392, %v778
      %v782 = vmul.f32 %v395, %v778
      %v783 = vmul.f32 %v400, %v778
      %v784 = vmul.f32 %v403, %v778
      %v785 = vmul.f32 %v408, %v778
      %v787 = vlaneseq
      %v788 = vshrl.u32 %v787, 7
      %v789 = vsub.s32 0, %v788
      %v790 = vrot.slane %v774, %v789
      %v792 = vadd.f32 %v779, %v790
      %v793 = vadd.f32 %v780, %v790
      %v794 = vadd.f32 %v781, %v790
      %v795 = vadd.f32 %v782, %v790
      %v796 = vadd.f32 %v783, %v790
      %v797 = vadd.f32 %v784, %v790
      %v798 = vadd.f32 %v785, %v790
      %v799 = vmax.f32 %v792, 0.0
      %v800 = vmax.f32 %v793, 0.0
      %v801 = vmax.f32 %v794, 0.0
      %v802 = vmax.f32 %v795, 0.0
      %v803 = vmax.f32 %v796, 0.0
      %v804 = vmax.f32 %v797, 0.0
      %v805 = vmax.f32 %v798, 0.0
      %806 = vst [vmem:[%s278] sm:$0xff] %v799
      %807 = vst [vmem:[%s278 + $0x8] sm:$0xff] %v800
      %808 = vst [vmem:[%s278 + $0x10] sm:$0xff] %v801
      %809 = vst [vmem:[%s278 + $0x18] sm:$0xff] %v802
      %810 = vst [vmem:[%s278 + $0x20] sm:$0xff] %v803
      %811 = vst [vmem:[%s278 + $0x28] sm:$0xff] %v804
      %812 = vst [vmem:[%s278 + $0x30] sm:$0x1] %v805
      %p813 = scmp.lt.s32.totalorder %s18, 1
      %s814 = scalar_select %p813, %s18, 1
      %s815 = smul.addr %s814, 7
      %s816 = smul.addr %s815, 8
      %s817 = scalar_lea.vmem %s7, %s816
      // Predicated region
      $region49: #{inception_b_forward.5} parent=47 // pred_check
        %p818 = pneg %p188
      $region50: #{inception_b_forward.5} parent=47 // pred_check_branch
        %820 = sbr.rel (%p818) target = $region52
      $region51: #{inception_b_forward.5} parent=47 // pred_region
        _
      $region52: #{inception_b_forward.5} parent=47 // pred_fallthru
        _
    $region48: #{inception_b_forward.5} parent=5 // pred_fallthru
      _
    %p821 = scmp.le.s32.totalorder 2, %s13
    // Predicated region
    $region53: #{inception_b_forward.5} parent=5 // pred_check
      %p822 = pneg %p821
    $region54: #{inception_b_forward.5} parent=5 // pred_check_branch
      %824 = sbr.rel (%p822) target = $region56
    $region55: #{inception_b_forward.5} parent=5 // pred_region
      %s825 = ssub.s32 %s13, 2
      // Predicated region
      $region57: #{inception_b_forward.5} parent=55 // pred_check
        %p826 = pneg %p194
      $region58: #{inception_b_forward.5} parent=55 // pred_check_branch
        %828 = sbr.rel (%p826) target = $region60
      $region59: #{inception_b_forward.5} parent=55 // pred_region
        %p829 = scmp.lt.s32.totalorder %s19, 1
        %s830 = scalar_select %p829, %s19, 1
        %s831 = smul.addr %s830, 7
        %s832 = smul.addr %s831, 8
        %s833 = scalar_lea.vmem %s7, %s832
      $region60: #{inception_b_forward.5} parent=55 // pred_fallthru
        _
    $region56: #{inception_b_forward.5} parent=5 // pred_fallthru
      _
  $region6: #{inception_b_forward.5} parent=0 // loop_footer
    %s17 = sadd.s32 1, %s13
  $region7: #{inception_b_forward.5} parent=0 // loop_footer_branch
    %12 = sbr.rel target = $region3
  $region8: #{inception_b_forward.5} parent=0 // loop_exit
    _

// kernel: inception_b_forward.9
$region0: #{inception_b_forward.9}
  #allocation0 [shape = 'u32[]', space=smem, size = 0x4, offset = 0x4, fixed_abs, tag = 'smem constant byte address 0x4 - core index']
  #allocation1 [shape = 'u32[144,128]{1,0:T(1,128)}', space=vmem, size = 0x12000, scoped, tag = 'internal scratch']
  %s0 = inlined_call_operand.vmem [shape: f32[9,8,128], index: 0, kind: input, shape index: {}]
  %s1 = inlined_call_operand.vmem [shape: f32[8,128], index: 1, kind: output, shape index: {}]
  %s2 = sld [smem:[#allocation0]]
  $region14: #{inception_b_forward.9} parent=0
    _
  %s4 = ssub.s32 1, %s2
  %s5 = scalar_select 0, %s4, %s2
  // Predicated region
  $region2: #{inception_b_forward.9} parent=0 // pred_check
    _
  $region3: #{inception_b_forward.9} parent=0 // pred_check_branch
    %7 = sbr.rel (0) target = $region5
  $region4: #{inception_b_forward.9} parent=0 // pred_region
    _
  $region5: #{inception_b_forward.9} parent=0 // pred_fallthru
    _
  %v8 = vld [vmem:[%s0] sm:$0xff]
  %s9 = scalar_lea.vmem %s0, 8
  %v10 = vld [vmem:[%s9] sm:$0xff]
  %v11 = vmax.f32 %v8, %v10
  %s12 = scalar_lea.vmem %s0, 16
  %v13 = vld [vmem:[%s12] sm:$0xff]
  %v14 = vmax.f32 %v11, %v13
  %s15 = scalar_lea.vmem %s0, 24
  %v16 = vld [vmem:[%s15] sm:$0xff]
  %v17 = vmax.f32 %v14, %v16
  %s18 = scalar_lea.vmem %s0, 32
  %v19 = vld [vmem:[%s18] sm:$0xff]
  %v20 = vmax.f32 %v17, %v19
  %s21 = scalar_lea.vmem %s0, 40
  %v22 = vld [vmem:[%s21] sm:$0xff]
  %v23 = vmax.f32 %v20, %v22
  %s24 = scalar_lea.vmem %s0, 48
  %v25 = vld [vmem:[%s24] sm:$0xff]
  %v26 = vmax.f32 %v23, %v25
  %s27 = scalar_lea.vmem %s0, 56
  %v28 = vld [vmem:[%s27] sm:$0xff]
  %v29 = vmax.f32 %v26, %v28
  %s30 = scalar_lea.vmem %s0, 64
  %v31 = vld [vmem:[%s30] sm:$0xff]
  %v32 = vmax.f32 %v29, %v31
  %33 = vst [vmem:[%s1] sm:$0xff] %v32
  // Predicated region
  $region6: #{inception_b_forward.9} parent=0 // pred_check
    _
  $region7: #{inception_b_forward.9} parent=0 // pred_check_branch
    %35 = sbr.rel (0) target = $region9
  $region8: #{inception_b_forward.9} parent=0 // pred_region
    _
  $region9: #{inception_b_forward.9} parent=0 // pred_fallthru
    _
  // Predicated region
  $region10: #{inception_b_forward.9} parent=0 // pred_check
    _
  $region11: #{inception_b_forward.9} parent=0 // pred_check_branch
    %37 = sbr.rel (0) target = $region13
  $region12: #{inception_b_forward.9} parent=0 // pred_region
    _
  $region13: #{inception_b_forward.9} parent=0 // pred_fallthru
    _

</llo_original>
